<compile_context>
chip_gen: v5e
topology: v5e:2x2
jax: 0.10.0
libtpu: 0.0.40
codegen_flags: <defaults>
</compile_context>

<pallas_src>
import functools
import math

import jax
import jax.numpy as jnp
from jax.experimental import pallas as pl
from jax.experimental.pallas import tpu as pltpu


def _round_up(x, m):
    return ((x + m - 1) // m) * m


# ---------------------------------------------------------------------------
# In-kernel helper: 3x3 "same" conv over padded-flat activations
# ---------------------------------------------------------------------------
def _conv3x3_flat(src, wt, bias, H, W):
    """src : (Cin, P) f32 padded-flat activation (zero halo already present),
       wt  : (Cout, 9*Cin) bf16 im2col-transposed weights,
       bias: (Cout, 1) f32.
    Returns (Cout, Lq) f32 over the contiguous lane span covering all valid
    output pixels (junk values at the 2 halo columns per row; caller masks)."""
    Wp = W + 2
    q0 = Wp + 1              # flat index of output pixel (0, 0)
    Lq = H * Wp - 2          # contiguous span [q0, q0+Lq) covers all outputs
    taps = []
    for kh in range(3):
        for kw in range(3):
            off = (kh - 1) * Wp + (kw - 1)
            taps.append(src[:, q0 + off:q0 + off + Lq])      # lane-offset slice
    # One big patch, one MXU matmul with K = 9*Cin (f32 accumulation).
    patch = jnp.concatenate(taps, axis=0).astype(jnp.bfloat16)   # (9*Cin, Lq)
    acc = jnp.dot(wt, patch, preferred_element_type=jnp.float32)  # (Cout, Lq)
    return acc + bias


# ---------------------------------------------------------------------------
# Pallas kernels
# ---------------------------------------------------------------------------
def _conv_kernel(x_ref, mask_ref, wt_ref, b_ref, o_ref, *, H, W):
    Wp = W + 2
    q0 = Wp + 1
    Lq = H * Wp - 2
    acc = _conv3x3_flat(x_ref[0], wt_ref[...], b_ref[...], H, W)
    acc = acc * mask_ref[...]            # zero the per-row halo-column junk
    o_ref[...] = jnp.zeros_like(o_ref)   # keep the zero halo of the layout
    o_ref[0, :, q0:q0 + Lq] = acc


def _conv_skip_kernel(x_ref, skip_ref, mask_ref, wt_ref, b_ref, o_ref, *, H, W):
    Wp = W + 2
    q0 = Wp + 1
    Lq = H * Wp - 2
    acc = _conv3x3_flat(x_ref[0], wt_ref[...], b_ref[...], H, W)
    acc = (acc + skip_ref[0, :, q0:q0 + Lq]) * mask_ref[...]   # fused skip add
    o_ref[...] = jnp.zeros_like(o_ref)
    o_ref[0, :, q0:q0 + Lq] = acc


def _resblock_kernel(x_ref, mask_ref, w1_ref, b1_ref, w2_ref, b2_ref, o_ref,
                     h_ref, *, H, W, res_scale):
    """Fused ResBlock: conv1 + ReLU + conv2 + res_scale*. + residual add.
    The intermediate activation never leaves VMEM (h_ref scratch)."""
    Wp = W + 2
    q0 = Wp + 1
    Lq = H * Wp - 2
    x2 = x_ref[0]
    mask = mask_ref[...]

    h1 = jnp.maximum(_conv3x3_flat(x2, w1_ref[...], b1_ref[...], H, W), 0.0)
    h_ref[...] = jnp.zeros_like(h_ref)          # zero halo for conv2's padding
    h_ref[:, q0:q0 + Lq] = h1 * mask

    h2 = _conv3x3_flat(h_ref[...], w2_ref[...], b2_ref[...], H, W)
    out = (x2[:, q0:q0 + Lq] + res_scale * h2) * mask
    o_ref[...] = jnp.zeros_like(o_ref)
    o_ref[0, :, q0:q0 + Lq] = out


# ---------------------------------------------------------------------------
# pallas_call wrappers
# ---------------------------------------------------------------------------
def _compiler_params():
    return pltpu.CompilerParams(dimension_semantics=("parallel",))


def _full2(shape):
    return pl.BlockSpec(shape, lambda n: (0, 0))


def _conv3x3(x, mask, wt, b, H, W, skip=None):
    """One fused 3x3 conv layer on padded-flat activations; grid over batch."""
    N, Cin, P = x.shape
    Cout = wt.shape[0]
    x_spec = pl.BlockSpec((1, Cin, P), lambda n: (n, 0, 0))
    o_spec = pl.BlockSpec((1, Cout, P), lambda n: (n, 0, 0))
    out_shape = jax.ShapeDtypeStruct((N, Cout, P), jnp.float32)

    if skip is None:
        kern = functools.partial(_conv_kernel, H=H, W=W)
        return pl.pallas_call(
            kern, out_shape=out_shape, grid=(N,),
            in_specs=[x_spec, _full2(mask.shape), _full2(wt.shape),
                      _full2(b.shape)],
            out_specs=o_spec,
            compiler_params=_compiler_params(),
        )(x, mask, wt, b)

    skip_spec = pl.BlockSpec((1, skip.shape[1], P), lambda n: (n, 0, 0))
    kern = functools.partial(_conv_skip_kernel, H=H, W=W)
    return pl.pallas_call(
        kern, out_shape=out_shape, grid=(N,),
        in_specs=[x_spec, skip_spec, _full2(mask.shape), _full2(wt.shape),
                  _full2(b.shape)],
        out_specs=o_spec,
        compiler_params=_compiler_params(),
    )(x, skip, mask, wt, b)


def _resblock(x, mask, blk, H, W, res_scale):
    N, C, P = x.shape
    kern = functools.partial(_resblock_kernel, H=H, W=W, res_scale=res_scale)
    return pl.pallas_call(
        kern,
        out_shape=jax.ShapeDtypeStruct((N, C, P), jnp.float32),
        grid=(N,),
        in_specs=[
            pl.BlockSpec((1, C, P), lambda n: (n, 0, 0)),
            _full2(mask.shape),
            _full2(blk["conv1"]["wt"].shape), _full2(blk["conv1"]["b"].shape),
            _full2(blk["conv2"]["wt"].shape), _full2(blk["conv2"]["b"].shape),
        ],
        out_specs=pl.BlockSpec((1, C, P), lambda n: (n, 0, 0)),
        scratch_shapes=[pltpu.VMEM((C, P), jnp.float32)],
        compiler_params=_compiler_params(),
    )(x, mask, blk["conv1"]["wt"], blk["conv1"]["b"],
      blk["conv2"]["wt"], blk["conv2"]["b"])


# ---------------------------------------------------------------------------
# Layout / glue (plain JAX, only at the network boundaries + upsample stage)
# ---------------------------------------------------------------------------
def _pack(x_nchw, c_pad=None):
    """NCHW -> padded-flat (N, C_pad, (H+2)*(W+2)) with zero spatial halo."""
    N, C, H, W = x_nchw.shape
    cp = C if c_pad is None else c_pad
    xp = jnp.pad(x_nchw, ((0, 0), (0, cp - C), (1, 1), (1, 1)))
    return xp.reshape(N, cp, (H + 2) * (W + 2))


def _unpack(x_flat, H, W):
    N, C, _ = x_flat.shape
    return x_flat.reshape(N, C, H + 2, W + 2)[:, :, 1:H + 1, 1:W + 1]


def _span_mask(H, W):
    """(1, Lq) f32 mask: 1 at valid output pixels, 0 at per-row halo junk."""
    Wp = W + 2
    q = (Wp + 1) + jnp.arange(H * Wp - 2, dtype=jnp.int32)
    j = q % Wp
    return ((j >= 1) & (j <= W)).astype(jnp.float32)[None, :]


def _pixel_shuffle_nchw(x, r):
    N, Crr, H, W = x.shape
    C = Crr // (r * r)
    x = x.reshape(N, C, r, r, H, W)
    x = jnp.transpose(x, (0, 1, 4, 2, 5, 3))
    return x.reshape(N, C, H * r, W * r)


# ---------------------------------------------------------------------------
# Parameters (deterministic init, shapes mirror the PyTorch module)
# ---------------------------------------------------------------------------
def _prep_conv(key, cin, cout, cin_pad=None, fold_scale=None, fold_bias=None):
    kw_, kb_ = jax.random.split(key)
    w = jax.random.normal(kw_, (3, 3, cin, cout), jnp.float32) * 0.05
    b = jax.random.normal(kb_, (cout,), jnp.float32) * 0.01
    if fold_scale is not None:            # fold add_mean into the final conv
        w = w * fold_scale[None, None, None, :]
        b = b * fold_scale + fold_bias
    cp = cin if cin_pad is None else cin_pad
    if cp != cin:                         # zero-pad input channels to 8-align
        w = jnp.pad(w, ((0, 0), (0, 0), (0, cp - cin), (0, 0)))
    wt = w.reshape(9 * cp, cout).T.astype(jnp.bfloat16)   # (Cout, 9*Cin_pad)
    return {"wt": wt, "b": b.reshape(cout, 1)}


def init_edsr_params(key, n_colors, n_feats, n_resblocks, scale, rgb_range=1.0,
                     rgb_mean=(0.4488, 0.4371, 0.404), rgb_std=(1.0, 1.0, 1.0)):
    mean = jnp.asarray(rgb_mean, jnp.float32)
    std = jnp.asarray(rgb_std, jnp.float32)
    n_up = int(math.log2(scale))
    keys = iter(jax.random.split(key, 3 + 2 * n_resblocks + n_up))

    params = {"head": _prep_conv(next(keys), n_colors, n_feats,
                                 cin_pad=_round_up(n_colors, 8))}
    params["blocks"] = [
        {"conv1": _prep_conv(next(keys), n_feats, n_feats),
         "conv2": _prep_conv(next(keys), n_feats, n_feats)}
        for _ in range(n_resblocks)]
    params["body_tail"] = _prep_conv(next(keys), n_feats, n_feats)
    params["upsampler"] = [_prep_conv(next(keys), n_feats, 4 * n_feats)
                           for _ in range(n_up)]
    # add_mean (sign=+1): y/std + rgb_range*mean/std, folded into the last conv.
    params["tail"] = _prep_conv(next(keys), n_feats, n_colors,
                                fold_scale=1.0 / std,
                                fold_bias=rgb_range * mean / std)
    return params


# ---------------------------------------------------------------------------
# Forward pass (matches EDSR_Generator.forward; NCHW in, NCHW out)
# ---------------------------------------------------------------------------
def edsr_forward(x_nchw, params, *, rgb_range=1.0, res_scale=0.1,
                 rgb_mean=(0.4488, 0.4371, 0.404), rgb_std=(1.0, 1.0, 1.0)):
    N, C, H, W = x_nchw.shape
    mean = jnp.asarray(rgb_mean, jnp.float32)
    std = jnp.asarray(rgb_std, jnp.float32)

    # sub_mean (sign=-1) fused into the one-time packing of the 3-channel input.
    xs = x_nchw.astype(jnp.float32) / std[None, :, None, None] \
        - (rgb_range * mean / std)[None, :, None, None]
    x = _pack(xs, c_pad=params["head"]["wt"].shape[1] // 9)

    mask = _span_mask(H, W)

    # head
    x = _conv3x3(x, mask, params["head"]["wt"], params["head"]["b"], H, W)

    # body: fused ResBlocks, then trailing conv fused with the long skip add
    res = x
    for blk in params["blocks"]:
        res = _resblock(res, mask, blk, H, W, res_scale)
    res = _conv3x3(res, mask, params["body_tail"]["wt"],
                   params["body_tail"]["b"], H, W, skip=x)

    # tail: UpSampler (conv -> PixelShuffle(2)) x log2(scale), then final conv
    y, h, w = res, H, W
    for up in params["upsampler"]:
        y = _conv3x3(y, _span_mask(h, w), up["wt"], up["b"], h, w)
        y = _pixel_shuffle_nchw(_unpack(y, h, w), 2)
        h, w = 2 * h, 2 * w
        y = _pack(y)
    y = _conv3x3(y, _span_mask(h, w), params["tail"]["wt"],
                 params["tail"]["b"], h, w)   # add_mean already folded in
    return _unpack(y, h, w)


# ---------------------------------------------------------------------------
# Pure-JAX reference (same bf16-rounded params) for a correctness check
# ---------------------------------------------------------------------------
def _ref_conv(x, p):
    cout, k9 = p["wt"].shape
    cp = k9 // 9
    w = p["wt"].astype(jnp.float32).reshape(cout, 3, 3, cp).transpose(0, 3, 1, 2)
    if x.shape[1] < cp:
        x = jnp.pad(x, ((0, 0), (0, cp - x.shape[1]), (0, 0), (0, 0)))
    y = jax.lax.conv_general_dilated(
        x, w, window_strides=(1, 1), padding=((1, 1), (1, 1)),
        dimension_numbers=("NCHW", "OIHW", "NCHW"))
    return y + p["b"][:, 0][None, :, None, None]


def edsr_reference(x_nchw, params, *, rgb_range=1.0, res_scale=0.1,
                   rgb_mean=(0.4488, 0.4371, 0.404), rgb_std=(1.0, 1.0, 1.0)):
    mean = jnp.asarray(rgb_mean, jnp.float32)
    std = jnp.asarray(rgb_std, jnp.float32)
    x = x_nchw.astype(jnp.float32) / std[None, :, None, None] \
        - (rgb_range * mean / std)[None, :, None, None]
    x = _ref_conv(x, params["head"])
    res = x
    for blk in params["blocks"]:
        hh = jax.nn.relu(_ref_conv(res, blk["conv1"]))
        hh = _ref_conv(hh, blk["conv2"])
        res = res + res_scale * hh
    res = _ref_conv(res, params["body_tail"]) + x
    y = res
    for up in params["upsampler"]:
        y = _pixel_shuffle_nchw(_ref_conv(y, up), 2)
    return _ref_conv(y, params["tail"])


# ---------------------------------------------------------------------------
if __name__ == "__main__":
    args = {"n_resblocks": 2, "n_feats": 8, "scale": [2], "rgb_range": 1.0,
            "n_colors": 3, "res_scale": 0.1}
    N, C, H, W = 2, args["n_colors"], 16, 16

    key = jax.random.PRNGKey(0)
    k_x, k_p = jax.random.split(key)
    x = jax.random.uniform(k_x, (N, C, H, W), jnp.float32)       # NCHW input
    params = init_edsr_params(k_p, args["n_colors"], args["n_feats"],
                              args["n_resblocks"], args["scale"][0],
                              rgb_range=args["rgb_range"])

    fwd = jax.jit(functools.partial(edsr_forward, rgb_range=args["rgb_range"],
                                    res_scale=args["res_scale"]))
    out = jax.block_until_ready(fwd(x, params))

    expected = (N, C, H * args["scale"][0], W * args["scale"][0])
    assert out.shape == expected, (out.shape, expected)
    assert bool(jnp.all(jnp.isfinite(out)))

    ref = edsr_reference(x, params, rgb_range=args["rgb_range"],
                         res_scale=args["res_scale"])
    assert bool(jnp.allclose(out, ref, rtol=5e-2, atol=5e-3)), \
        float(jnp.max(jnp.abs(out - ref)))

    print("KERNEL_OK")
</pallas_src>

<mosaic_0001>
module attributes {stable_mosaic.version = 11 : i64} {
  func.func @_conv_kernel(%arg0: i32, %arg1: memref<1x8x324xf32, #tpu.memory_space<vmem>>, %arg2: memref<1x286xf32, #tpu.memory_space<vmem>>, %arg3: memref<8x72xbf16, #tpu.memory_space<vmem>>, %arg4: memref<8x1xf32, #tpu.memory_space<vmem>>, %arg5: memref<1x8x324xf32, #tpu.memory_space<vmem>>) attributes {dimension_semantics = [#tpu.dimension_semantics<parallel>], iteration_bounds = array<i64: 2>, scalar_prefetch = 0 : i64, scratch_operands = 0 : i64, tpu.core_type = #tpu.core_type<tc>, window_params = [{transform_indices = @transform_0, window_bounds = array<i64: 1, 8, 324>}, {pipeline_mode = #tpu.pipeline_mode<synchronous>, transform_indices = @transform_1, window_bounds = array<i64: 1, 286>}, {pipeline_mode = #tpu.pipeline_mode<synchronous>, transform_indices = @transform_2, window_bounds = array<i64: 8, 72>}, {pipeline_mode = #tpu.pipeline_mode<synchronous>, transform_indices = @transform_3, window_bounds = array<i64: 8, 1>}, {transform_indices = @transform_4, window_bounds = array<i64: 1, 8, 324>}]} {
    %c0 = arith.constant 0 : index
    %c0_0 = arith.constant 0 : index
    %c0_1 = arith.constant 0 : index
    %0 = vector.load %arg1[%c0, %c0_0, %c0_1] : memref<1x8x324xf32, #tpu.memory_space<vmem>>, vector<1x8x324xf32>
    %1 = vector.shape_cast %0 : vector<1x8x324xf32> to vector<8x324xf32>
    %c0_2 = arith.constant 0 : index
    %c0_3 = arith.constant 0 : index
    %2 = vector.load %arg3[%c0_2, %c0_3] : memref<8x72xbf16, #tpu.memory_space<vmem>>, vector<8x72xbf16>
    %c0_4 = arith.constant 0 : index
    %c0_5 = arith.constant 0 : index
    %3 = vector.load %arg4[%c0_4, %c0_5] : memref<8x1xf32, #tpu.memory_space<vmem>>, vector<8x1xf32>
    %4 = vector.extract_strided_slice %1 {offsets = [0, 0], sizes = [8, 286], strides = [1, 1]} : vector<8x324xf32> to vector<8x286xf32>
    %5 = vector.extract_strided_slice %1 {offsets = [0, 1], sizes = [8, 286], strides = [1, 1]} : vector<8x324xf32> to vector<8x286xf32>
    %6 = vector.extract_strided_slice %1 {offsets = [0, 2], sizes = [8, 286], strides = [1, 1]} : vector<8x324xf32> to vector<8x286xf32>
    %7 = vector.extract_strided_slice %1 {offsets = [0, 18], sizes = [8, 286], strides = [1, 1]} : vector<8x324xf32> to vector<8x286xf32>
    %8 = vector.extract_strided_slice %1 {offsets = [0, 19], sizes = [8, 286], strides = [1, 1]} : vector<8x324xf32> to vector<8x286xf32>
    %9 = vector.extract_strided_slice %1 {offsets = [0, 20], sizes = [8, 286], strides = [1, 1]} : vector<8x324xf32> to vector<8x286xf32>
    %10 = vector.extract_strided_slice %1 {offsets = [0, 36], sizes = [8, 286], strides = [1, 1]} : vector<8x324xf32> to vector<8x286xf32>
    %11 = vector.extract_strided_slice %1 {offsets = [0, 37], sizes = [8, 286], strides = [1, 1]} : vector<8x324xf32> to vector<8x286xf32>
    %12 = vector.extract_strided_slice %1 {offsets = [0, 38], sizes = [8, 286], strides = [1, 1]} : vector<8x324xf32> to vector<8x286xf32>
    %13 = tpu.concatenate %4, %5, %6, %7, %8, %9, %10, %11, %12 in 0 : vector<8x286xf32>, vector<8x286xf32>, vector<8x286xf32>, vector<8x286xf32>, vector<8x286xf32>, vector<8x286xf32>, vector<8x286xf32>, vector<8x286xf32>, vector<8x286xf32> -> vector<72x286xf32>
    %14 = arith.truncf %13 : vector<72x286xf32> to vector<72x286xbf16>
    %cst = arith.constant dense<0.000000e+00> : vector<8x286xf32>
    %15 = tpu.matmul %2, %14, %cst {dimension_numbers = #tpu.dot_dimension_numbers<[1], [0], [0], [1], [0, 0, 1, 1], [], []>} : vector<8x72xbf16>, vector<72x286xbf16>, vector<8x286xf32> -> vector<8x286xf32>
    %16 = vector.broadcast %3 : vector<8x1xf32> to vector<8x286xf32>
    %17 = arith.addf %15, %16 : vector<8x286xf32>
    %c0_6 = arith.constant 0 : index
    %c0_7 = arith.constant 0 : index
    %18 = vector.load %arg2[%c0_6, %c0_7] : memref<1x286xf32, #tpu.memory_space<vmem>>, vector<1x286xf32>
    %19 = vector.broadcast %18 : vector<1x286xf32> to vector<8x286xf32>
    %20 = arith.mulf %17, %19 : vector<8x286xf32>
    %cst_8 = arith.constant 0.000000e+00 : f32
    %21 = vector.broadcast %cst_8 : f32 to vector<1x8x324xf32>
    %c0_9 = arith.constant 0 : index
    %c0_10 = arith.constant 0 : index
    %c0_11 = arith.constant 0 : index
    %22 = vector.load %arg5[%c0_9, %c0_10, %c0_11] : memref<1x8x324xf32, #tpu.memory_space<vmem>>, vector<1x8x324xf32>
    tpu.vector_store %arg5[%c0_9, %c0_10, %c0_11], %21 {strides = array<i32>} : memref<1x8x324xf32, #tpu.memory_space<vmem>>, vector<1x8x324xf32>,
    %c0_12 = arith.constant 0 : index
    %c0_13 = arith.constant 0 : index
    %c19 = arith.constant 19 : index
    %23 = vector.load %arg5[%c0_12, %c0_13, %c19] : memref<1x8x324xf32, #tpu.memory_space<vmem>>, vector<1x8x286xf32>
    %24 = vector.shape_cast %23 : vector<1x8x286xf32> to vector<8x286xf32>
    %25 = vector.shape_cast %20 : vector<8x286xf32> to vector<1x8x286xf32>
    tpu.vector_store %arg5[%c0_12, %c0_13, %c19], %25 {strides = array<i32>} : memref<1x8x324xf32, #tpu.memory_space<vmem>>, vector<1x8x286xf32>,
    return
  }
  func.func @transform_0(%arg0: i32) -> (i32, i32, i32) {
    %c0_i32 = arith.constant 0 : i32
    %c0_i32_0 = arith.constant 0 : i32
    %c0_i32_1 = arith.constant 0 : i32
    return %arg0, %c0_i32, %c0_i32_0 : i32, i32, i32
  }
  func.func @transform_1(%arg0: i32) -> (i32, i32) {
    %c0_i32 = arith.constant 0 : i32
    %c0_i32_0 = arith.constant 0 : i32
    %c0_i32_1 = arith.constant 0 : i32
    return %c0_i32, %c0_i32_0 : i32, i32
  }
  func.func @transform_2(%arg0: i32) -> (i32, i32) {
    %c0_i32 = arith.constant 0 : i32
    %c0_i32_0 = arith.constant 0 : i32
    %c0_i32_1 = arith.constant 0 : i32
    return %c0_i32, %c0_i32_0 : i32, i32
  }
  func.func @transform_3(%arg0: i32) -> (i32, i32) {
    %c0_i32 = arith.constant 0 : i32
    %c0_i32_0 = arith.constant 0 : i32
    %c0_i32_1 = arith.constant 0 : i32
    return %c0_i32, %c0_i32_0 : i32, i32
  }
  func.func @transform_4(%arg0: i32) -> (i32, i32, i32) {
    %c0_i32 = arith.constant 0 : i32
    %c0_i32_0 = arith.constant 0 : i32
    %c0_i32_1 = arith.constant 0 : i32
    return %arg0, %c0_i32, %c0_i32_0 : i32, i32, i32
  }
}

module attributes {stable_mosaic.version = 11 : i64} {
  func.func @_resblock_kernel(%arg0: i32, %arg1: memref<1x8x324xf32, #tpu.memory_space<vmem>>, %arg2: memref<1x286xf32, #tpu.memory_space<vmem>>, %arg3: memref<8x72xbf16, #tpu.memory_space<vmem>>, %arg4: memref<8x1xf32, #tpu.memory_space<vmem>>, %arg5: memref<8x72xbf16, #tpu.memory_space<vmem>>, %arg6: memref<8x1xf32, #tpu.memory_space<vmem>>, %arg7: memref<1x8x324xf32, #tpu.memory_space<vmem>>, %arg8: memref<8x324xf32, #tpu.memory_space<vmem>>) attributes {dimension_semantics = [#tpu.dimension_semantics<parallel>], iteration_bounds = array<i64: 2>, scalar_prefetch = 0 : i64, scratch_operands = 1 : i64, tpu.core_type = #tpu.core_type<tc>, window_params = [{transform_indices = @transform_0, window_bounds = array<i64: 1, 8, 324>}, {pipeline_mode = #tpu.pipeline_mode<synchronous>, transform_indices = @transform_1, window_bounds = array<i64: 1, 286>}, {pipeline_mode = #tpu.pipeline_mode<synchronous>, transform_indices = @transform_2, window_bounds = array<i64: 8, 72>}, {pipeline_mode = #tpu.pipeline_mode<synchronous>, transform_indices = @transform_3, window_bounds = array<i64: 8, 1>}, {pipeline_mode = #tpu.pipeline_mode<synchronous>, transform_indices = @transform_4, window_bounds = array<i64: 8, 72>}, {pipeline_mode = #tpu.pipeline_mode<synchronous>, transform_indices = @transform_5, window_bounds = array<i64: 8, 1>}, {transform_indices = @transform_6, window_bounds = array<i64: 1, 8, 324>}]} {
    %c0 = arith.constant 0 : index
    %c0_0 = arith.constant 0 : index
    %c0_1 = arith.constant 0 : index
    %0 = vector.load %arg1[%c0, %c0_0, %c0_1] : memref<1x8x324xf32, #tpu.memory_space<vmem>>, vector<1x8x324xf32>
    %1 = vector.shape_cast %0 : vector<1x8x324xf32> to vector<8x324xf32>
    %c0_2 = arith.constant 0 : index
    %c0_3 = arith.constant 0 : index
    %2 = vector.load %arg2[%c0_2, %c0_3] : memref<1x286xf32, #tpu.memory_space<vmem>>, vector<1x286xf32>
    %c0_4 = arith.constant 0 : index
    %c0_5 = arith.constant 0 : index
    %3 = vector.load %arg3[%c0_4, %c0_5] : memref<8x72xbf16, #tpu.memory_space<vmem>>, vector<8x72xbf16>
    %c0_6 = arith.constant 0 : index
    %c0_7 = arith.constant 0 : index
    %4 = vector.load %arg4[%c0_6, %c0_7] : memref<8x1xf32, #tpu.memory_space<vmem>>, vector<8x1xf32>
    %5 = vector.extract_strided_slice %1 {offsets = [0, 0], sizes = [8, 286], strides = [1, 1]} : vector<8x324xf32> to vector<8x286xf32>
    %6 = vector.extract_strided_slice %1 {offsets = [0, 1], sizes = [8, 286], strides = [1, 1]} : vector<8x324xf32> to vector<8x286xf32>
    %7 = vector.extract_strided_slice %1 {offsets = [0, 2], sizes = [8, 286], strides = [1, 1]} : vector<8x324xf32> to vector<8x286xf32>
    %8 = vector.extract_strided_slice %1 {offsets = [0, 18], sizes = [8, 286], strides = [1, 1]} : vector<8x324xf32> to vector<8x286xf32>
    %9 = vector.extract_strided_slice %1 {offsets = [0, 19], sizes = [8, 286], strides = [1, 1]} : vector<8x324xf32> to vector<8x286xf32>
    %10 = vector.extract_strided_slice %1 {offsets = [0, 20], sizes = [8, 286], strides = [1, 1]} : vector<8x324xf32> to vector<8x286xf32>
    %11 = vector.extract_strided_slice %1 {offsets = [0, 36], sizes = [8, 286], strides = [1, 1]} : vector<8x324xf32> to vector<8x286xf32>
    %12 = vector.extract_strided_slice %1 {offsets = [0, 37], sizes = [8, 286], strides = [1, 1]} : vector<8x324xf32> to vector<8x286xf32>
    %13 = vector.extract_strided_slice %1 {offsets = [0, 38], sizes = [8, 286], strides = [1, 1]} : vector<8x324xf32> to vector<8x286xf32>
    %14 = tpu.concatenate %5, %6, %7, %8, %9, %10, %11, %12, %13 in 0 : vector<8x286xf32>, vector<8x286xf32>, vector<8x286xf32>, vector<8x286xf32>, vector<8x286xf32>, vector<8x286xf32>, vector<8x286xf32>, vector<8x286xf32>, vector<8x286xf32> -> vector<72x286xf32>
    %15 = arith.truncf %14 : vector<72x286xf32> to vector<72x286xbf16>
    %cst = arith.constant dense<0.000000e+00> : vector<8x286xf32>
    %16 = tpu.matmul %3, %15, %cst {dimension_numbers = #tpu.dot_dimension_numbers<[1], [0], [0], [1], [0, 0, 1, 1], [], []>} : vector<8x72xbf16>, vector<72x286xbf16>, vector<8x286xf32> -> vector<8x286xf32>
    %17 = vector.broadcast %4 : vector<8x1xf32> to vector<8x286xf32>
    %18 = arith.addf %16, %17 : vector<8x286xf32>
    %cst_8 = arith.constant 0.000000e+00 : f32
    %19 = vector.broadcast %cst_8 : f32 to vector<8x286xf32>
    %20 = arith.maximumf %18, %19 : vector<8x286xf32>
    %cst_9 = arith.constant 0.000000e+00 : f32
    %21 = vector.broadcast %cst_9 : f32 to vector<8x324xf32>
    %c0_10 = arith.constant 0 : index
    %c0_11 = arith.constant 0 : index
    %22 = vector.load %arg8[%c0_10, %c0_11] : memref<8x324xf32, #tpu.memory_space<vmem>>, vector<8x324xf32>
    tpu.vector_store %arg8[%c0_10, %c0_11], %21 {strides = array<i32>} : memref<8x324xf32, #tpu.memory_space<vmem>>, vector<8x324xf32>,
    %23 = vector.broadcast %2 : vector<1x286xf32> to vector<8x286xf32>
    %24 = arith.mulf %20, %23 : vector<8x286xf32>
    %c0_12 = arith.constant 0 : index
    %c19 = arith.constant 19 : index
    %25 = vector.load %arg8[%c0_12, %c19] : memref<8x324xf32, #tpu.memory_space<vmem>>, vector<8x286xf32>
    tpu.vector_store %arg8[%c0_12, %c19], %24 {strides = array<i32>} : memref<8x324xf32, #tpu.memory_space<vmem>>, vector<8x286xf32>,
    %c0_13 = arith.constant 0 : index
    %c0_14 = arith.constant 0 : index
    %26 = vector.load %arg8[%c0_13, %c0_14] : memref<8x324xf32, #tpu.memory_space<vmem>>, vector<8x324xf32>
    %c0_15 = arith.constant 0 : index
    %c0_16 = arith.constant 0 : index
    %27 = vector.load %arg5[%c0_15, %c0_16] : memref<8x72xbf16, #tpu.memory_space<vmem>>, vector<8x72xbf16>
    %c0_17 = arith.constant 0 : index
    %c0_18 = arith.constant 0 : index
    %28 = vector.load %arg6[%c0_17, %c0_18] : memref<8x1xf32, #tpu.memory_space<vmem>>, vector<8x1xf32>
    %29 = vector.extract_strided_slice %26 {offsets = [0, 0], sizes = [8, 286], strides = [1, 1]} : vector<8x324xf32> to vector<8x286xf32>
    %30 = vector.extract_strided_slice %26 {offsets = [0, 1], sizes = [8, 286], strides = [1, 1]} : vector<8x324xf32> to vector<8x286xf32>
    %31 = vector.extract_strided_slice %26 {offsets = [0, 2], sizes = [8, 286], strides = [1, 1]} : vector<8x324xf32> to vector<8x286xf32>
    %32 = vector.extract_strided_slice %26 {offsets = [0, 18], sizes = [8, 286], strides = [1, 1]} : vector<8x324xf32> to vector<8x286xf32>
    %33 = vector.extract_strided_slice %26 {offsets = [0, 19], sizes = [8, 286], strides = [1, 1]} : vector<8x324xf32> to vector<8x286xf32>
    %34 = vector.extract_strided_slice %26 {offsets = [0, 20], sizes = [8, 286], strides = [1, 1]} : vector<8x324xf32> to vector<8x286xf32>
    %35 = vector.extract_strided_slice %26 {offsets = [0, 36], sizes = [8, 286], strides = [1, 1]} : vector<8x324xf32> to vector<8x286xf32>
    %36 = vector.extract_strided_slice %26 {offsets = [0, 37], sizes = [8, 286], strides = [1, 1]} : vector<8x324xf32> to vector<8x286xf32>
    %37 = vector.extract_strided_slice %26 {offsets = [0, 38], sizes = [8, 286], strides = [1, 1]} : vector<8x324xf32> to vector<8x286xf32>
    %38 = tpu.concatenate %29, %30, %31, %32, %33, %34, %35, %36, %37 in 0 : vector<8x286xf32>, vector<8x286xf32>, vector<8x286xf32>, vector<8x286xf32>, vector<8x286xf32>, vector<8x286xf32>, vector<8x286xf32>, vector<8x286xf32>, vector<8x286xf32> -> vector<72x286xf32>
    %39 = arith.truncf %38 : vector<72x286xf32> to vector<72x286xbf16>
    %cst_19 = arith.constant dense<0.000000e+00> : vector<8x286xf32>
    %40 = tpu.matmul %27, %39, %cst_19 {dimension_numbers = #tpu.dot_dimension_numbers<[1], [0], [0], [1], [0, 0, 1, 1], [], []>} : vector<8x72xbf16>, vector<72x286xbf16>, vector<8x286xf32> -> vector<8x286xf32>
    %41 = vector.broadcast %28 : vector<8x1xf32> to vector<8x286xf32>
    %42 = arith.addf %40, %41 : vector<8x286xf32>
    %43 = vector.extract_strided_slice %1 {offsets = [0, 19], sizes = [8, 286], strides = [1, 1]} : vector<8x324xf32> to vector<8x286xf32>
    %cst_20 = arith.constant 1.000000e-01 : f32
    %44 = vector.broadcast %cst_20 : f32 to vector<8x286xf32>
    %45 = arith.mulf %44, %42 : vector<8x286xf32>
    %46 = arith.addf %43, %45 : vector<8x286xf32>
    %47 = vector.broadcast %2 : vector<1x286xf32> to vector<8x286xf32>
    %48 = arith.mulf %46, %47 : vector<8x286xf32>
    %cst_21 = arith.constant 0.000000e+00 : f32
    %49 = vector.broadcast %cst_21 : f32 to vector<1x8x324xf32>
    %c0_22 = arith.constant 0 : index
    %c0_23 = arith.constant 0 : index
    %c0_24 = arith.constant 0 : index
    %50 = vector.load %arg7[%c0_22, %c0_23, %c0_24] : memref<1x8x324xf32, #tpu.memory_space<vmem>>, vector<1x8x324xf32>
    tpu.vector_store %arg7[%c0_22, %c0_23, %c0_24], %49 {strides = array<i32>} : memref<1x8x324xf32, #tpu.memory_space<vmem>>, vector<1x8x324xf32>,
    %c0_25 = arith.constant 0 : index
    %c0_26 = arith.constant 0 : index
    %c19_27 = arith.constant 19 : index
    %51 = vector.load %arg7[%c0_25, %c0_26, %c19_27] : memref<1x8x324xf32, #tpu.memory_space<vmem>>, vector<1x8x286xf32>
    %52 = vector.shape_cast %51 : vector<1x8x286xf32> to vector<8x286xf32>
    %53 = vector.shape_cast %48 : vector<8x286xf32> to vector<1x8x286xf32>
    tpu.vector_store %arg7[%c0_25, %c0_26, %c19_27], %53 {strides = array<i32>} : memref<1x8x324xf32, #tpu.memory_space<vmem>>, vector<1x8x286xf32>,
    return
  }
  func.func @transform_0(%arg0: i32) -> (i32, i32, i32) {
    %c0_i32 = arith.constant 0 : i32
    %c0_i32_0 = arith.constant 0 : i32
    %c0_i32_1 = arith.constant 0 : i32
    return %arg0, %c0_i32, %c0_i32_0 : i32, i32, i32
  }
  func.func @transform_1(%arg0: i32) -> (i32, i32) {
    %c0_i32 = arith.constant 0 : i32
    %c0_i32_0 = arith.constant 0 : i32
    %c0_i32_1 = arith.constant 0 : i32
    return %c0_i32, %c0_i32_0 : i32, i32
  }
  func.func @transform_2(%arg0: i32) -> (i32, i32) {
    %c0_i32 = arith.constant 0 : i32
    %c0_i32_0 = arith.constant 0 : i32
    %c0_i32_1 = arith.constant 0 : i32
    return %c0_i32, %c0_i32_0 : i32, i32
  }
  func.func @transform_3(%arg0: i32) -> (i32, i32) {
    %c0_i32 = arith.constant 0 : i32
    %c0_i32_0 = arith.constant 0 : i32
    %c0_i32_1 = arith.constant 0 : i32
    return %c0_i32, %c0_i32_0 : i32, i32
  }
  func.func @transform_4(%arg0: i32) -> (i32, i32) {
    %c0_i32 = arith.constant 0 : i32
    %c0_i32_0 = arith.constant 0 : i32
    %c0_i32_1 = arith.constant 0 : i32
    return %c0_i32, %c0_i32_0 : i32, i32
  }
  func.func @transform_5(%arg0: i32) -> (i32, i32) {
    %c0_i32 = arith.constant 0 : i32
    %c0_i32_0 = arith.constant 0 : i32
    %c0_i32_1 = arith.constant 0 : i32
    return %c0_i32, %c0_i32_0 : i32, i32
  }
  func.func @transform_6(%arg0: i32) -> (i32, i32, i32) {
    %c0_i32 = arith.constant 0 : i32
    %c0_i32_0 = arith.constant 0 : i32
    %c0_i32_1 = arith.constant 0 : i32
    return %arg0, %c0_i32, %c0_i32_0 : i32, i32, i32
  }
}

module attributes {stable_mosaic.version = 11 : i64} {
  func.func @_conv_skip_kernel(%arg0: i32, %arg1: memref<1x8x324xf32, #tpu.memory_space<vmem>>, %arg2: memref<1x8x324xf32, #tpu.memory_space<vmem>>, %arg3: memref<1x286xf32, #tpu.memory_space<vmem>>, %arg4: memref<8x72xbf16, #tpu.memory_space<vmem>>, %arg5: memref<8x1xf32, #tpu.memory_space<vmem>>, %arg6: memref<1x8x324xf32, #tpu.memory_space<vmem>>) attributes {dimension_semantics = [#tpu.dimension_semantics<parallel>], iteration_bounds = array<i64: 2>, scalar_prefetch = 0 : i64, scratch_operands = 0 : i64, tpu.core_type = #tpu.core_type<tc>, window_params = [{transform_indices = @transform_0, window_bounds = array<i64: 1, 8, 324>}, {transform_indices = @transform_1, window_bounds = array<i64: 1, 8, 324>}, {pipeline_mode = #tpu.pipeline_mode<synchronous>, transform_indices = @transform_2, window_bounds = array<i64: 1, 286>}, {pipeline_mode = #tpu.pipeline_mode<synchronous>, transform_indices = @transform_3, window_bounds = array<i64: 8, 72>}, {pipeline_mode = #tpu.pipeline_mode<synchronous>, transform_indices = @transform_4, window_bounds = array<i64: 8, 1>}, {transform_indices = @transform_5, window_bounds = array<i64: 1, 8, 324>}]} {
    %c0 = arith.constant 0 : index
    %c0_0 = arith.constant 0 : index
    %c0_1 = arith.constant 0 : index
    %0 = vector.load %arg1[%c0, %c0_0, %c0_1] : memref<1x8x324xf32, #tpu.memory_space<vmem>>, vector<1x8x324xf32>
    %1 = vector.shape_cast %0 : vector<1x8x324xf32> to vector<8x324xf32>
    %c0_2 = arith.constant 0 : index
    %c0_3 = arith.constant 0 : index
    %2 = vector.load %arg4[%c0_2, %c0_3] : memref<8x72xbf16, #tpu.memory_space<vmem>>, vector<8x72xbf16>
    %c0_4 = arith.constant 0 : index
    %c0_5 = arith.constant 0 : index
    %3 = vector.load %arg5[%c0_4, %c0_5] : memref<8x1xf32, #tpu.memory_space<vmem>>, vector<8x1xf32>
    %4 = vector.extract_strided_slice %1 {offsets = [0, 0], sizes = [8, 286], strides = [1, 1]} : vector<8x324xf32> to vector<8x286xf32>
    %5 = vector.extract_strided_slice %1 {offsets = [0, 1], sizes = [8, 286], strides = [1, 1]} : vector<8x324xf32> to vector<8x286xf32>
    %6 = vector.extract_strided_slice %1 {offsets = [0, 2], sizes = [8, 286], strides = [1, 1]} : vector<8x324xf32> to vector<8x286xf32>
    %7 = vector.extract_strided_slice %1 {offsets = [0, 18], sizes = [8, 286], strides = [1, 1]} : vector<8x324xf32> to vector<8x286xf32>
    %8 = vector.extract_strided_slice %1 {offsets = [0, 19], sizes = [8, 286], strides = [1, 1]} : vector<8x324xf32> to vector<8x286xf32>
    %9 = vector.extract_strided_slice %1 {offsets = [0, 20], sizes = [8, 286], strides = [1, 1]} : vector<8x324xf32> to vector<8x286xf32>
    %10 = vector.extract_strided_slice %1 {offsets = [0, 36], sizes = [8, 286], strides = [1, 1]} : vector<8x324xf32> to vector<8x286xf32>
    %11 = vector.extract_strided_slice %1 {offsets = [0, 37], sizes = [8, 286], strides = [1, 1]} : vector<8x324xf32> to vector<8x286xf32>
    %12 = vector.extract_strided_slice %1 {offsets = [0, 38], sizes = [8, 286], strides = [1, 1]} : vector<8x324xf32> to vector<8x286xf32>
    %13 = tpu.concatenate %4, %5, %6, %7, %8, %9, %10, %11, %12 in 0 : vector<8x286xf32>, vector<8x286xf32>, vector<8x286xf32>, vector<8x286xf32>, vector<8x286xf32>, vector<8x286xf32>, vector<8x286xf32>, vector<8x286xf32>, vector<8x286xf32> -> vector<72x286xf32>
    %14 = arith.truncf %13 : vector<72x286xf32> to vector<72x286xbf16>
    %cst = arith.constant dense<0.000000e+00> : vector<8x286xf32>
    %15 = tpu.matmul %2, %14, %cst {dimension_numbers = #tpu.dot_dimension_numbers<[1], [0], [0], [1], [0, 0, 1, 1], [], []>} : vector<8x72xbf16>, vector<72x286xbf16>, vector<8x286xf32> -> vector<8x286xf32>
    %16 = vector.broadcast %3 : vector<8x1xf32> to vector<8x286xf32>
    %17 = arith.addf %15, %16 : vector<8x286xf32>
    %c0_6 = arith.constant 0 : index
    %c0_7 = arith.constant 0 : index
    %c19 = arith.constant 19 : index
    %18 = vector.load %arg2[%c0_6, %c0_7, %c19] : memref<1x8x324xf32, #tpu.memory_space<vmem>>, vector<1x8x286xf32>
    %19 = vector.shape_cast %18 : vector<1x8x286xf32> to vector<8x286xf32>
    %20 = arith.addf %17, %19 : vector<8x286xf32>
    %c0_8 = arith.constant 0 : index
    %c0_9 = arith.constant 0 : index
    %21 = vector.load %arg3[%c0_8, %c0_9] : memref<1x286xf32, #tpu.memory_space<vmem>>, vector<1x286xf32>
    %22 = vector.broadcast %21 : vector<1x286xf32> to vector<8x286xf32>
    %23 = arith.mulf %20, %22 : vector<8x286xf32>
    %cst_10 = arith.constant 0.000000e+00 : f32
    %24 = vector.broadcast %cst_10 : f32 to vector<1x8x324xf32>
    %c0_11 = arith.constant 0 : index
    %c0_12 = arith.constant 0 : index
    %c0_13 = arith.constant 0 : index
    %25 = vector.load %arg6[%c0_11, %c0_12, %c0_13] : memref<1x8x324xf32, #tpu.memory_space<vmem>>, vector<1x8x324xf32>
    tpu.vector_store %arg6[%c0_11, %c0_12, %c0_13], %24 {strides = array<i32>} : memref<1x8x324xf32, #tpu.memory_space<vmem>>, vector<1x8x324xf32>,
    %c0_14 = arith.constant 0 : index
    %c0_15 = arith.constant 0 : index
    %c19_16 = arith.constant 19 : index
    %26 = vector.load %arg6[%c0_14, %c0_15, %c19_16] : memref<1x8x324xf32, #tpu.memory_space<vmem>>, vector<1x8x286xf32>
    %27 = vector.shape_cast %26 : vector<1x8x286xf32> to vector<8x286xf32>
    %28 = vector.shape_cast %23 : vector<8x286xf32> to vector<1x8x286xf32>
    tpu.vector_store %arg6[%c0_14, %c0_15, %c19_16], %28 {strides = array<i32>} : memref<1x8x324xf32, #tpu.memory_space<vmem>>, vector<1x8x286xf32>,
    return
  }
  func.func @transform_0(%arg0: i32) -> (i32, i32, i32) {
    %c0_i32 = arith.constant 0 : i32
    %c0_i32_0 = arith.constant 0 : i32
    %c0_i32_1 = arith.constant 0 : i32
    return %arg0, %c0_i32, %c0_i32_0 : i32, i32, i32
  }
  func.func @transform_1(%arg0: i32) -> (i32, i32, i32) {
    %c0_i32 = arith.constant 0 : i32
    %c0_i32_0 = arith.constant 0 : i32
    %c0_i32_1 = arith.constant 0 : i32
    return %arg0, %c0_i32, %c0_i32_0 : i32, i32, i32
  }
  func.func @transform_2(%arg0: i32) -> (i32, i32) {
    %c0_i32 = arith.constant 0 : i32
    %c0_i32_0 = arith.constant 0 : i32
    %c0_i32_1 = arith.constant 0 : i32
    return %c0_i32, %c0_i32_0 : i32, i32
  }
  func.func @transform_3(%arg0: i32) -> (i32, i32) {
    %c0_i32 = arith.constant 0 : i32
    %c0_i32_0 = arith.constant 0 : i32
    %c0_i32_1 = arith.constant 0 : i32
    return %c0_i32, %c0_i32_0 : i32, i32
  }
  func.func @transform_4(%arg0: i32) -> (i32, i32) {
    %c0_i32 = arith.constant 0 : i32
    %c0_i32_0 = arith.constant 0 : i32
    %c0_i32_1 = arith.constant 0 : i32
    return %c0_i32, %c0_i32_0 : i32, i32
  }
  func.func @transform_5(%arg0: i32) -> (i32, i32, i32) {
    %c0_i32 = arith.constant 0 : i32
    %c0_i32_0 = arith.constant 0 : i32
    %c0_i32_1 = arith.constant 0 : i32
    return %arg0, %c0_i32, %c0_i32_0 : i32, i32, i32
  }
}

module attributes {stable_mosaic.version = 11 : i64} {
  func.func @_conv_kernel(%arg0: i32, %arg1: memref<1x8x324xf32, #tpu.memory_space<vmem>>, %arg2: memref<1x286xf32, #tpu.memory_space<vmem>>, %arg3: memref<32x72xbf16, #tpu.memory_space<vmem>>, %arg4: memref<32x1xf32, #tpu.memory_space<vmem>>, %arg5: memref<1x32x324xf32, #tpu.memory_space<vmem>>) attributes {dimension_semantics = [#tpu.dimension_semantics<parallel>], iteration_bounds = array<i64: 2>, scalar_prefetch = 0 : i64, scratch_operands = 0 : i64, tpu.core_type = #tpu.core_type<tc>, window_params = [{transform_indices = @transform_0, window_bounds = array<i64: 1, 8, 324>}, {pipeline_mode = #tpu.pipeline_mode<synchronous>, transform_indices = @transform_1, window_bounds = array<i64: 1, 286>}, {pipeline_mode = #tpu.pipeline_mode<synchronous>, transform_indices = @transform_2, window_bounds = array<i64: 32, 72>}, {pipeline_mode = #tpu.pipeline_mode<synchronous>, transform_indices = @transform_3, window_bounds = array<i64: 32, 1>}, {transform_indices = @transform_4, window_bounds = array<i64: 1, 32, 324>}]} {
    %c0 = arith.constant 0 : index
    %c0_0 = arith.constant 0 : index
    %c0_1 = arith.constant 0 : index
    %0 = vector.load %arg1[%c0, %c0_0, %c0_1] : memref<1x8x324xf32, #tpu.memory_space<vmem>>, vector<1x8x324xf32>
    %1 = vector.shape_cast %0 : vector<1x8x324xf32> to vector<8x324xf32>
    %c0_2 = arith.constant 0 : index
    %c0_3 = arith.constant 0 : index
    %2 = vector.load %arg3[%c0_2, %c0_3] : memref<32x72xbf16, #tpu.memory_space<vmem>>, vector<32x72xbf16>
    %c0_4 = arith.constant 0 : index
    %c0_5 = arith.constant 0 : index
    %3 = vector.load %arg4[%c0_4, %c0_5] : memref<32x1xf32, #tpu.memory_space<vmem>>, vector<32x1xf32>
    %4 = vector.extract_strided_slice %1 {offsets = [0, 0], sizes = [8, 286], strides = [1, 1]} : vector<8x324xf32> to vector<8x286xf32>
    %5 = vector.extract_strided_slice %1 {offsets = [0, 1], sizes = [8, 286], strides = [1, 1]} : vector<8x324xf32> to vector<8x286xf32>
    %6 = vector.extract_strided_slice %1 {offsets = [0, 2], sizes = [8, 286], strides = [1, 1]} : vector<8x324xf32> to vector<8x286xf32>
    %7 = vector.extract_strided_slice %1 {offsets = [0, 18], sizes = [8, 286], strides = [1, 1]} : vector<8x324xf32> to vector<8x286xf32>
    %8 = vector.extract_strided_slice %1 {offsets = [0, 19], sizes = [8, 286], strides = [1, 1]} : vector<8x324xf32> to vector<8x286xf32>
    %9 = vector.extract_strided_slice %1 {offsets = [0, 20], sizes = [8, 286], strides = [1, 1]} : vector<8x324xf32> to vector<8x286xf32>
    %10 = vector.extract_strided_slice %1 {offsets = [0, 36], sizes = [8, 286], strides = [1, 1]} : vector<8x324xf32> to vector<8x286xf32>
    %11 = vector.extract_strided_slice %1 {offsets = [0, 37], sizes = [8, 286], strides = [1, 1]} : vector<8x324xf32> to vector<8x286xf32>
    %12 = vector.extract_strided_slice %1 {offsets = [0, 38], sizes = [8, 286], strides = [1, 1]} : vector<8x324xf32> to vector<8x286xf32>
    %13 = tpu.concatenate %4, %5, %6, %7, %8, %9, %10, %11, %12 in 0 : vector<8x286xf32>, vector<8x286xf32>, vector<8x286xf32>, vector<8x286xf32>, vector<8x286xf32>, vector<8x286xf32>, vector<8x286xf32>, vector<8x286xf32>, vector<8x286xf32> -> vector<72x286xf32>
    %14 = arith.truncf %13 : vector<72x286xf32> to vector<72x286xbf16>
    %cst = arith.constant dense<0.000000e+00> : vector<32x286xf32>
    %15 = tpu.matmul %2, %14, %cst {dimension_numbers = #tpu.dot_dimension_numbers<[1], [0], [0], [1], [0, 0, 1, 1], [], []>} : vector<32x72xbf16>, vector<72x286xbf16>, vector<32x286xf32> -> vector<32x286xf32>
    %16 = vector.broadcast %3 : vector<32x1xf32> to vector<32x286xf32>
    %17 = arith.addf %15, %16 : vector<32x286xf32>
    %c0_6 = arith.constant 0 : index
    %c0_7 = arith.constant 0 : index
    %18 = vector.load %arg2[%c0_6, %c0_7] : memref<1x286xf32, #tpu.memory_space<vmem>>, vector<1x286xf32>
    %19 = vector.broadcast %18 : vector<1x286xf32> to vector<32x286xf32>
    %20 = arith.mulf %17, %19 : vector<32x286xf32>
    %cst_8 = arith.constant 0.000000e+00 : f32
    %21 = vector.broadcast %cst_8 : f32 to vector<1x32x324xf32>
    %c0_9 = arith.constant 0 : index
    %c0_10 = arith.constant 0 : index
    %c0_11 = arith.constant 0 : index
    %22 = vector.load %arg5[%c0_9, %c0_10, %c0_11] : memref<1x32x324xf32, #tpu.memory_space<vmem>>, vector<1x32x324xf32>
    tpu.vector_store %arg5[%c0_9, %c0_10, %c0_11], %21 {strides = array<i32>} : memref<1x32x324xf32, #tpu.memory_space<vmem>>, vector<1x32x324xf32>,
    %c0_12 = arith.constant 0 : index
    %c0_13 = arith.constant 0 : index
    %c19 = arith.constant 19 : index
    %23 = vector.load %arg5[%c0_12, %c0_13, %c19] : memref<1x32x324xf32, #tpu.memory_space<vmem>>, vector<1x32x286xf32>
    %24 = vector.shape_cast %23 : vector<1x32x286xf32> to vector<32x286xf32>
    %25 = vector.shape_cast %20 : vector<32x286xf32> to vector<1x32x286xf32>
    tpu.vector_store %arg5[%c0_12, %c0_13, %c19], %25 {strides = array<i32>} : memref<1x32x324xf32, #tpu.memory_space<vmem>>, vector<1x32x286xf32>,
    return
  }
  func.func @transform_0(%arg0: i32) -> (i32, i32, i32) {
    %c0_i32 = arith.constant 0 : i32
    %c0_i32_0 = arith.constant 0 : i32
    %c0_i32_1 = arith.constant 0 : i32
    return %arg0, %c0_i32, %c0_i32_0 : i32, i32, i32
  }
  func.func @transform_1(%arg0: i32) -> (i32, i32) {
    %c0_i32 = arith.constant 0 : i32
    %c0_i32_0 = arith.constant 0 : i32
    %c0_i32_1 = arith.constant 0 : i32
    return %c0_i32, %c0_i32_0 : i32, i32
  }
  func.func @transform_2(%arg0: i32) -> (i32, i32) {
    %c0_i32 = arith.constant 0 : i32
    %c0_i32_0 = arith.constant 0 : i32
    %c0_i32_1 = arith.constant 0 : i32
    return %c0_i32, %c0_i32_0 : i32, i32
  }
  func.func @transform_3(%arg0: i32) -> (i32, i32) {
    %c0_i32 = arith.constant 0 : i32
    %c0_i32_0 = arith.constant 0 : i32
    %c0_i32_1 = arith.constant 0 : i32
    return %c0_i32, %c0_i32_0 : i32, i32
  }
  func.func @transform_4(%arg0: i32) -> (i32, i32, i32) {
    %c0_i32 = arith.constant 0 : i32
    %c0_i32_0 = arith.constant 0 : i32
    %c0_i32_1 = arith.constant 0 : i32
    return %arg0, %c0_i32, %c0_i32_0 : i32, i32, i32
  }
}

module attributes {stable_mosaic.version = 11 : i64} {
  func.func @_conv_kernel(%arg0: i32, %arg1: memref<1x8x1156xf32, #tpu.memory_space<vmem>>, %arg2: memref<1x1086xf32, #tpu.memory_space<vmem>>, %arg3: memref<3x72xbf16, #tpu.memory_space<vmem>>, %arg4: memref<3x1xf32, #tpu.memory_space<vmem>>, %arg5: memref<1x3x1156xf32, #tpu.memory_space<vmem>>) attributes {dimension_semantics = [#tpu.dimension_semantics<parallel>], iteration_bounds = array<i64: 2>, scalar_prefetch = 0 : i64, scratch_operands = 0 : i64, tpu.core_type = #tpu.core_type<tc>, window_params = [{transform_indices = @transform_0, window_bounds = array<i64: 1, 8, 1156>}, {pipeline_mode = #tpu.pipeline_mode<synchronous>, transform_indices = @transform_1, window_bounds = array<i64: 1, 1086>}, {pipeline_mode = #tpu.pipeline_mode<synchronous>, transform_indices = @transform_2, window_bounds = array<i64: 3, 72>}, {pipeline_mode = #tpu.pipeline_mode<synchronous>, transform_indices = @transform_3, window_bounds = array<i64: 3, 1>}, {transform_indices = @transform_4, window_bounds = array<i64: 1, 3, 1156>}]} {
    %c0 = arith.constant 0 : index
    %c0_0 = arith.constant 0 : index
    %c0_1 = arith.constant 0 : index
    %0 = vector.load %arg1[%c0, %c0_0, %c0_1] : memref<1x8x1156xf32, #tpu.memory_space<vmem>>, vector<1x8x1156xf32>
    %1 = vector.shape_cast %0 : vector<1x8x1156xf32> to vector<8x1156xf32>
    %c0_2 = arith.constant 0 : index
    %c0_3 = arith.constant 0 : index
    %2 = vector.load %arg3[%c0_2, %c0_3] : memref<3x72xbf16, #tpu.memory_space<vmem>>, vector<3x72xbf16>
    %c0_4 = arith.constant 0 : index
    %c0_5 = arith.constant 0 : index
    %3 = vector.load %arg4[%c0_4, %c0_5] : memref<3x1xf32, #tpu.memory_space<vmem>>, vector<3x1xf32>
    %4 = vector.extract_strided_slice %1 {offsets = [0, 0], sizes = [8, 1086], strides = [1, 1]} : vector<8x1156xf32> to vector<8x1086xf32>
    %5 = vector.extract_strided_slice %1 {offsets = [0, 1], sizes = [8, 1086], strides = [1, 1]} : vector<8x1156xf32> to vector<8x1086xf32>
    %6 = vector.extract_strided_slice %1 {offsets = [0, 2], sizes = [8, 1086], strides = [1, 1]} : vector<8x1156xf32> to vector<8x1086xf32>
    %7 = vector.extract_strided_slice %1 {offsets = [0, 34], sizes = [8, 1086], strides = [1, 1]} : vector<8x1156xf32> to vector<8x1086xf32>
    %8 = vector.extract_strided_slice %1 {offsets = [0, 35], sizes = [8, 1086], strides = [1, 1]} : vector<8x1156xf32> to vector<8x1086xf32>
    %9 = vector.extract_strided_slice %1 {offsets = [0, 36], sizes = [8, 1086], strides = [1, 1]} : vector<8x1156xf32> to vector<8x1086xf32>
    %10 = vector.extract_strided_slice %1 {offsets = [0, 68], sizes = [8, 1086], strides = [1, 1]} : vector<8x1156xf32> to vector<8x1086xf32>
    %11 = vector.extract_strided_slice %1 {offsets = [0, 69], sizes = [8, 1086], strides = [1, 1]} : vector<8x1156xf32> to vector<8x1086xf32>
    %12 = vector.extract_strided_slice %1 {offsets = [0, 70], sizes = [8, 1086], strides = [1, 1]} : vector<8x1156xf32> to vector<8x1086xf32>
    %13 = tpu.concatenate %4, %5, %6, %7, %8, %9, %10, %11, %12 in 0 : vector<8x1086xf32>, vector<8x1086xf32>, vector<8x1086xf32>, vector<8x1086xf32>, vector<8x1086xf32>, vector<8x1086xf32>, vector<8x1086xf32>, vector<8x1086xf32>, vector<8x1086xf32> -> vector<72x1086xf32>
    %14 = arith.truncf %13 : vector<72x1086xf32> to vector<72x1086xbf16>
    %cst = arith.constant dense<0.000000e+00> : vector<3x1086xf32>
    %15 = tpu.matmul %2, %14, %cst {dimension_numbers = #tpu.dot_dimension_numbers<[1], [0], [0], [1], [0, 0, 1, 1], [], []>} : vector<3x72xbf16>, vector<72x1086xbf16>, vector<3x1086xf32> -> vector<3x1086xf32>
    %16 = vector.broadcast %3 : vector<3x1xf32> to vector<3x1086xf32>
    %17 = arith.addf %15, %16 : vector<3x1086xf32>
    %c0_6 = arith.constant 0 : index
    %c0_7 = arith.constant 0 : index
    %18 = vector.load %arg2[%c0_6, %c0_7] : memref<1x1086xf32, #tpu.memory_space<vmem>>, vector<1x1086xf32>
    %19 = vector.broadcast %18 : vector<1x1086xf32> to vector<3x1086xf32>
    %20 = arith.mulf %17, %19 : vector<3x1086xf32>
    %cst_8 = arith.constant 0.000000e+00 : f32
    %21 = vector.broadcast %cst_8 : f32 to vector<1x3x1156xf32>
    %c0_9 = arith.constant 0 : index
    %c0_10 = arith.constant 0 : index
    %c0_11 = arith.constant 0 : index
    %22 = vector.load %arg5[%c0_9, %c0_10, %c0_11] : memref<1x3x1156xf32, #tpu.memory_space<vmem>>, vector<1x3x1156xf32>
    tpu.vector_store %arg5[%c0_9, %c0_10, %c0_11], %21 {strides = array<i32>} : memref<1x3x1156xf32, #tpu.memory_space<vmem>>, vector<1x3x1156xf32>,
    %c0_12 = arith.constant 0 : index
    %c0_13 = arith.constant 0 : index
    %c35 = arith.constant 35 : index
    %23 = vector.load %arg5[%c0_12, %c0_13, %c35] : memref<1x3x1156xf32, #tpu.memory_space<vmem>>, vector<1x3x1086xf32>
    %24 = vector.shape_cast %23 : vector<1x3x1086xf32> to vector<3x1086xf32>
    %25 = vector.shape_cast %20 : vector<3x1086xf32> to vector<1x3x1086xf32>
    tpu.vector_store %arg5[%c0_12, %c0_13, %c35], %25 {strides = array<i32>} : memref<1x3x1156xf32, #tpu.memory_space<vmem>>, vector<1x3x1086xf32>,
    return
  }
  func.func @transform_0(%arg0: i32) -> (i32, i32, i32) {
    %c0_i32 = arith.constant 0 : i32
    %c0_i32_0 = arith.constant 0 : i32
    %c0_i32_1 = arith.constant 0 : i32
    return %arg0, %c0_i32, %c0_i32_0 : i32, i32, i32
  }
  func.func @transform_1(%arg0: i32) -> (i32, i32) {
    %c0_i32 = arith.constant 0 : i32
    %c0_i32_0 = arith.constant 0 : i32
    %c0_i32_1 = arith.constant 0 : i32
    return %c0_i32, %c0_i32_0 : i32, i32
  }
  func.func @transform_2(%arg0: i32) -> (i32, i32) {
    %c0_i32 = arith.constant 0 : i32
    %c0_i32_0 = arith.constant 0 : i32
    %c0_i32_1 = arith.constant 0 : i32
    return %c0_i32, %c0_i32_0 : i32, i32
  }
  func.func @transform_3(%arg0: i32) -> (i32, i32) {
    %c0_i32 = arith.constant 0 : i32
    %c0_i32_0 = arith.constant 0 : i32
    %c0_i32_1 = arith.constant 0 : i32
    return %c0_i32, %c0_i32_0 : i32, i32
  }
  func.func @transform_4(%arg0: i32) -> (i32, i32, i32) {
    %c0_i32 = arith.constant 0 : i32
    %c0_i32_0 = arith.constant 0 : i32
    %c0_i32_1 = arith.constant 0 : i32
    return %arg0, %c0_i32, %c0_i32_0 : i32, i32, i32
  }
}

</mosaic_0001>

<llo_original>
// kernel: edsr_forward.6
$region0: #{edsr_forward.6}
  #allocation0 [shape = 'u32[]', space=smem, size = 0x4, offset = 0x4, fixed_abs, tag = 'smem constant byte address 0x4 - core index']
  #allocation1 [shape = 'u32[72,128]{1,0:T(1,128)}', space=vmem, size = 0x9000, scoped, tag = 'internal scratch']
  %s0 = inlined_call_operand.vmem [shape: f32[2,8,324], index: 0, kind: input, shape index: {}]
  %s1 = inlined_call_operand.vmem [shape: f32[1,286], index: 1, kind: input, shape index: {}]
  %s2 = inlined_call_operand.vmem [shape: bf16[8,72], index: 2, kind: input, shape index: {}]
  %s3 = inlined_call_operand.vmem [shape: f32[8,1], index: 3, kind: input, shape index: {}]
  %s4 = inlined_call_operand.vmem [shape: f32[2,8,324], index: 4, kind: output, shape index: {}]
  %s5 = sld [smem:[#allocation0]]
  $region49: #{edsr_forward.6} parent=0
    _
  %s7 = ssub.s32 1, %s5
  %s8 = scalar_select 0, %s7, %s5
  loop: start=0, step=1, limit=4
  $region2: #{edsr_forward.6} parent=0 // loop_pre_header
    _
  $region3: #{edsr_forward.6} parent=0 // loop_header
    %s10 = sphi 0, %s14
    %p11 = scmp.ge.s32.totalorder %s10, 4
    %s20 = sphi 0, %s22
    %s23 = sphi 0, %s20
    %s24 = sphi 0, %s23
    %s40 = sphi 0, %s24
    %s44 = sphi 0, %s44
    %s46 = sphi 0, %s44
    %s47 = sphi 0, %s46
    %s61 = sphi 0, %s47
    %s65 = sphi 0, %s65
    %s67 = sphi 0, %s65
    %s68 = sphi 0, %s67
    %s82 = sphi 0, %s68
    %s86 = sphi 0, %s86
    %s88 = sphi 0, %s86
    %s89 = sphi 0, %s88
    %s103 = sphi 0, %s89
    %s109 = sphi 0, %s111
    %s112 = sphi 0, %s109
    %s113 = sphi 0, %s112
    %s129 = sphi 0, %s113
  $region4: #{edsr_forward.6} parent=0 // loop_header_branch
    %13 = sbr.rel (%p11) target = $region8
  $region5: #{edsr_forward.6} parent=0 // loop_body
    %s15 = ssub.s32 %s10, 1
    %s16 = ssub.s32 %s10, 2
    %s17 = sadd.s32 %s10, 1
    %s18 = ssub.s32 %s10, %s17
    %p19 = scmp.eq.s32.totalorder %s18, 0
    %s21 = sadd.s32 %s20, 1
    %s22 = scalar_select %p19, %s20, %s21
    %p25 = pneg %p19
    %p26 = scmp.eq.s32.totalorder %s10, 1
    %p27 = por %p25, %p26
    %p28 = scmp.ne.s32.totalorder %s20, %s23
    %p29 = scmp.eq.s32.totalorder %s10, 0
    %p30 = por %p28, %p29
    %p31 = scmp.ne.s32.totalorder %s20, %s23
    %p32 = scmp.eq.s32.totalorder %s15, 1
    %p33 = por %p31, %p32
    %p34 = scmp.ne.s32.totalorder %s23, %s24
    %p35 = scmp.eq.s32.totalorder %s15, 0
    %p36 = por %p34, %p35
    %p37 = scmp.ne.s32.totalorder %s23, %s24
    %p38 = scmp.eq.s32.totalorder %s16, 1
    %p39 = por %p37, %p38
    %p41 = scmp.ne.s32.totalorder %s24, %s40
    %p42 = scmp.eq.s32.totalorder %s16, 0
    %p43 = por %p41, %p42
    %s45 = sadd.s32 %s44, 1
    %p48 = scmp.eq.s32.totalorder %s10, 1
    %p49 = scmp.ne.s32.totalorder %s44, %s46
    %p50 = scmp.eq.s32.totalorder %s10, 0
    %p51 = por %p49, %p50
    %p52 = scmp.ne.s32.totalorder %s44, %s46
    %p53 = scmp.eq.s32.totalorder %s15, 1
    %p54 = por %p52, %p53
    %p55 = scmp.ne.s32.totalorder %s46, %s47
    %p56 = scmp.eq.s32.totalorder %s15, 0
    %p57 = por %p55, %p56
    %p58 = scmp.ne.s32.totalorder %s46, %s47
    %p59 = scmp.eq.s32.totalorder %s16, 1
    %p60 = por %p58, %p59
    %p62 = scmp.ne.s32.totalorder %s47, %s61
    %p63 = scmp.eq.s32.totalorder %s16, 0
    %p64 = por %p62, %p63
    %s66 = sadd.s32 %s65, 1
    %p69 = scmp.eq.s32.totalorder %s10, 1
    %p70 = scmp.ne.s32.totalorder %s65, %s67
    %p71 = scmp.eq.s32.totalorder %s10, 0
    %p72 = por %p70, %p71
    %p73 = scmp.ne.s32.totalorder %s65, %s67
    %p74 = scmp.eq.s32.totalorder %s15, 1
    %p75 = por %p73, %p74
    %p76 = scmp.ne.s32.totalorder %s67, %s68
    %p77 = scmp.eq.s32.totalorder %s15, 0
    %p78 = por %p76, %p77
    %p79 = scmp.ne.s32.totalorder %s67, %s68
    %p80 = scmp.eq.s32.totalorder %s16, 1
    %p81 = por %p79, %p80
    %p83 = scmp.ne.s32.totalorder %s68, %s82
    %p84 = scmp.eq.s32.totalorder %s16, 0
    %p85 = por %p83, %p84
    %s87 = sadd.s32 %s86, 1
    %p90 = scmp.eq.s32.totalorder %s10, 1
    %p91 = scmp.ne.s32.totalorder %s86, %s88
    %p92 = scmp.eq.s32.totalorder %s10, 0
    %p93 = por %p91, %p92
    %p94 = scmp.ne.s32.totalorder %s86, %s88
    %p95 = scmp.eq.s32.totalorder %s15, 1
    %p96 = por %p94, %p95
    %p97 = scmp.ne.s32.totalorder %s88, %s89
    %p98 = scmp.eq.s32.totalorder %s15, 0
    %p99 = por %p97, %p98
    %p100 = scmp.ne.s32.totalorder %s88, %s89
    %p101 = scmp.eq.s32.totalorder %s16, 1
    %p102 = por %p100, %p101
    %p104 = scmp.ne.s32.totalorder %s89, %s103
    %p105 = scmp.eq.s32.totalorder %s16, 0
    %p106 = por %p104, %p105
    %s107 = ssub.s32 %s10, %s17
    %p108 = scmp.eq.s32.totalorder %s107, 0
    %s110 = sadd.s32 %s109, 1
    %s111 = scalar_select %p108, %s109, %s110
    %p114 = pneg %p108
    %p115 = scmp.eq.s32.totalorder %s10, 1
    %p116 = por %p114, %p115
    %p117 = scmp.ne.s32.totalorder %s109, %s112
    %p118 = scmp.eq.s32.totalorder %s10, 0
    %p119 = por %p117, %p118
    %p120 = scmp.ne.s32.totalorder %s109, %s112
    %p121 = scmp.eq.s32.totalorder %s15, 1
    %p122 = por %p120, %p121
    %p123 = scmp.ne.s32.totalorder %s112, %s113
    %p124 = scmp.eq.s32.totalorder %s15, 0
    %p125 = por %p123, %p124
    %p126 = scmp.ne.s32.totalorder %s112, %s113
    %p127 = scmp.eq.s32.totalorder %s16, 1
    %p128 = por %p126, %p127
    %p130 = scmp.ne.s32.totalorder %s113, %s129
    %p131 = scmp.eq.s32.totalorder %s16, 0
    %p132 = por %p130, %p131
    %p133 = scmp.le.s32.totalorder 1, %s10
    %p134 = scmp.lt.s32.totalorder %s10, 3
    %p135 = pnand %p133, %p134
    %p136 = pneg %p135
    // Predicated region
    $region9: #{edsr_forward.6} parent=5 // pred_check
      _
    $region10: #{edsr_forward.6} parent=5 // pred_check_branch
      %138 = sbr.rel (%p135) target = $region12
    $region11: #{edsr_forward.6} parent=5 // pred_region
      %s139 = ssub.s32 %s10, 1
      // Predicated region
      $region13: #{edsr_forward.6} parent=11 // pred_check
        %p140 = pneg %p57
      $region14: #{edsr_forward.6} parent=11 // pred_check_branch
        %142 = sbr.rel (%p140) target = $region16
      $region15: #{edsr_forward.6} parent=11 // pred_region
        _
      $region16: #{edsr_forward.6} parent=11 // pred_fallthru
        _
      // Predicated region
      $region17: #{edsr_forward.6} parent=11 // pred_check
        %p143 = pneg %p78
      $region18: #{edsr_forward.6} parent=11 // pred_check_branch
        %145 = sbr.rel (%p143) target = $region20
      $region19: #{edsr_forward.6} parent=11 // pred_region
        _
      $region20: #{edsr_forward.6} parent=11 // pred_fallthru
        _
      // Predicated region
      $region21: #{edsr_forward.6} parent=11 // pred_check
        %p146 = pneg %p99
      $region22: #{edsr_forward.6} parent=11 // pred_check_branch
        %148 = sbr.rel (%p146) target = $region24
      $region23: #{edsr_forward.6} parent=11 // pred_region
        _
      $region24: #{edsr_forward.6} parent=11 // pred_fallthru
        _
    $region12: #{edsr_forward.6} parent=5 // pred_fallthru
      _
    %p149 = scmp.lt.s32.totalorder %s10, 2
    // Predicated region
    $region25: #{edsr_forward.6} parent=5 // pred_check
      %p150 = pneg %p149
    $region26: #{edsr_forward.6} parent=5 // pred_check_branch
      %152 = sbr.rel (%p150) target = $region28
    $region27: #{edsr_forward.6} parent=5 // pred_region
      // Predicated region
      $region29: #{edsr_forward.6} parent=27 // pred_check
        %p153 = pneg %p30
      $region30: #{edsr_forward.6} parent=27 // pred_check_branch
        %155 = sbr.rel (%p153) target = $region32
      $region31: #{edsr_forward.6} parent=27 // pred_region
        %p156 = scmp.lt.s32.totalorder %s10, 1
        %s157 = scalar_select %p156, %s10, 1
        %s158 = smul.addr %s157, 3
        %s159 = smul.addr %s158, 8
        %s160 = scalar_lea.vmem %s0, %s159
      $region32: #{edsr_forward.6} parent=27 // pred_fallthru
        _
    $region28: #{edsr_forward.6} parent=5 // pred_fallthru
      _
    %p161 = scmp.le.s32.totalorder 1, %s10
    %p162 = scmp.lt.s32.totalorder %s10, 3
    %p163 = pnand %p161, %p162
    %p164 = pneg %p163
    // Predicated region
    $region33: #{edsr_forward.6} parent=5 // pred_check
      _
    $region34: #{edsr_forward.6} parent=5 // pred_check_branch
      %166 = sbr.rel (%p163) target = $region36
    $region35: #{edsr_forward.6} parent=5 // pred_region
      %s167 = ssub.s32 %s10, 1
      %p168 = scmp.lt.s32.totalorder %s15, 1
      %s169 = scalar_select %p168, %s15, 1
      %s170 = smul.addr %s169, 3
      %s171 = smul.addr %s170, 8
      %s172 = scalar_lea.vmem %s0, %s171
      %p173 = pneg %p36
      %p174 = pneg %p33
      %p175 = pneg %p57
      %p176 = pneg %p54
      %p177 = pneg %p78
      %p178 = pneg %p75
      %p179 = pneg %p99
      %p180 = pneg %p96
      %p181 = pneg %p125
      %p182 = pneg %p122
      %p183 = scmp.lt.s32.totalorder %s15, 1
      %s184 = scalar_select %p183, %s15, 1
      %s185 = smul.addr %s184, 3
      %s186 = smul.addr %s185, 8
      %s187 = scalar_lea.vmem %s4, %s186
      %p188 = scmp.lt.s32.totalorder %s15, 1
      %s189 = scalar_select %p188, %s15, 1
      %s190 = smul.addr %s189, 3
      %s191 = smul.addr %s190, 8
      %s192 = scalar_lea.vmem %s0, %s191
      %p193 = scmp.lt.s32.totalorder %s15, 1
      %s194 = scalar_select %p193, %s15, 1
      %s195 = smul.addr %s194, 3
      %s196 = smul.addr %s195, 8
      %s197 = scalar_lea.vmem %s4, %s196
      %v199 = vld [vmem:[%s192] sm:$0xff]
      %v200 = vld [vmem:[%s192 + $0x8] sm:$0xff]
      %v201 = vld [vmem:[%s192 + $0x10] sm:$0xff]
      %v202 = vld [vmem:[%s2] sm:$0xf]
      %v203 = vld [vmem:[%s3] sm:$0xff]
      %207 = vrot.lane.b32.xlu0 %v199, 127
      %v208 = vpop.permute.xlu0 %207
      %209 = vrot.lane.b32.xlu0 %v200, 127
      %v210 = vpop.permute.xlu0 %209
      %211 = vrot.lane.b32.xlu0 %v201, 127
      %v212 = vpop.permute.xlu0 %211
      %vm213 = vcmask 1039360
      %v214 = vsel %vm213, %v208, %v210
      %v215 = vsel %vm213, %v210, %v212
      %219 = vrot.lane.b32.xlu0 %v199, 126
      %v220 = vpop.permute.xlu0 %219
      %221 = vrot.lane.b32.xlu0 %v200, 126
      %v222 = vpop.permute.xlu0 %221
      %223 = vrot.lane.b32.xlu0 %v201, 126
      %v224 = vpop.permute.xlu0 %223
      %vm225 = vcmask 1031168
      %v226 = vsel %vm225, %v220, %v222
      %v227 = vsel %vm225, %v222, %v224
      %231 = vrot.lane.b32.xlu0 %v199, 110
      %v232 = vpop.permute.xlu0 %231
      %233 = vrot.lane.b32.xlu0 %v200, 110
      %v234 = vpop.permute.xlu0 %233
      %235 = vrot.lane.b32.xlu0 %v201, 110
      %v236 = vpop.permute.xlu0 %235
      %vm237 = vcmask 900096
      %v238 = vsel %vm237, %v232, %v234
      %v239 = vsel %vm237, %v234, %v236
      %243 = vrot.lane.b32.xlu0 %v199, 109
      %v244 = vpop.permute.xlu0 %243
      %245 = vrot.lane.b32.xlu0 %v200, 109
      %v246 = vpop.permute.xlu0 %245
      %247 = vrot.lane.b32.xlu0 %v201, 109
      %v248 = vpop.permute.xlu0 %247
      %vm249 = vcmask 891904
      %v250 = vsel %vm249, %v244, %v246
      %v251 = vsel %vm249, %v246, %v248
      %255 = vrot.lane.b32.xlu0 %v199, 108
      %v256 = vpop.permute.xlu0 %255
      %257 = vrot.lane.b32.xlu0 %v200, 108
      %v258 = vpop.permute.xlu0 %257
      %259 = vrot.lane.b32.xlu0 %v201, 108
      %v260 = vpop.permute.xlu0 %259
      %vm261 = vcmask 883712
      %v262 = vsel %vm261, %v256, %v258
      %v263 = vsel %vm261, %v258, %v260
      %267 = vrot.lane.b32.xlu0 %v199, 92
      %v268 = vpop.permute.xlu0 %267
      %269 = vrot.lane.b32.xlu0 %v200, 92
      %v270 = vpop.permute.xlu0 %269
      %271 = vrot.lane.b32.xlu0 %v201, 92
      %v272 = vpop.permute.xlu0 %271
      %vm273 = vcmask 752640
      %v274 = vsel %vm273, %v268, %v270
      %v275 = vsel %vm273, %v270, %v272
      %279 = vrot.lane.b32.xlu0 %v199, 91
      %v280 = vpop.permute.xlu0 %279
      %281 = vrot.lane.b32.xlu0 %v200, 91
      %v282 = vpop.permute.xlu0 %281
      %283 = vrot.lane.b32.xlu0 %v201, 91
      %v284 = vpop.permute.xlu0 %283
      %vm285 = vcmask 744448
      %v286 = vsel %vm285, %v280, %v282
      %v287 = vsel %vm285, %v282, %v284
      %291 = vrot.lane.b32.xlu0 %v199, 90
      %v292 = vpop.permute.xlu0 %291
      %293 = vrot.lane.b32.xlu0 %v200, 90
      %v294 = vpop.permute.xlu0 %293
      %295 = vrot.lane.b32.xlu0 %v201, 90
      %v296 = vpop.permute.xlu0 %295
      %vm297 = vcmask 736256
      %v298 = vsel %vm297, %v292, %v294
      %v299 = vsel %vm297, %v294, %v296
      %v303 = vpack.c.bf16 %v214, %v199
      %v304 = vpack.c.bf16 %v215, %v200
      %v305 = vpack.c.bf16 %v212, %v201
      %v306 = vpack.c.bf16 %v238, %v226
      %v307 = vpack.c.bf16 %v239, %v227
      %v308 = vpack.c.bf16 %v236, %v224
      %v309 = vpack.c.bf16 %v262, %v250
      %v310 = vpack.c.bf16 %v263, %v251
      %v311 = vpack.c.bf16 %v260, %v248
      %v312 = vpack.c.bf16 %v286, %v274
      %v313 = vpack.c.bf16 %v287, %v275
      %v314 = vpack.c.bf16 %v284, %v272
      %v315 = vpack.c.bf16 %v298, %v298
      %v316 = vpack.c.bf16 %v299, %v299
      %v317 = vpack.c.bf16 %v296, %v296
      %319 = vset.pattern.permute.xlu0 0
      %320 = vperm.xlu0 %319, %v203
      %v321 = vpop.permute.xlu0 %320
      %vm323 = vcmask 588800
      %v325 = vsel %vm323, %v202, 0
      %vm327 = vcmask 1043456
      %v329 = vsel %vm327, %v315, 0
      %v332 = vsel %vm327, %v316, 0
      %v335 = vsel %vm327, %v317, 0
      %337 = vmatpush.bf16.msra.mxu0 0
      %338 = vmatpush.bf16.msra.mxu0 0
      %339 = vmatpush.bf16.msra.mxu0 0
      %340 = vmatpush.bf16.msra.mxu0 %v329
      %341 = vmatpush.bf16.msra.mxu0 %v312
      %342 = vmatpush.bf16.msra.mxu0 %v309
      %343 = vmatpush.bf16.msra.mxu0 %v306
      %344 = vmatpush.bf16.msra.mxu0 %v303
      %345 = vmatmul.bf16.gmra.mxu0 %v325
      %v346 = vpop.f32.mrf.mxu0
      %v347 = vadd.f32 %v321, %v346
      %v348 = vpop.f32.mrf.mxu0
      %349 = vdwg.mxu0
      %350 = vmatpush.bf16.msra.mxu0 0
      %351 = vmatpush.bf16.msra.mxu0 0
      %352 = vmatpush.bf16.msra.mxu0 0
      %353 = vmatpush.bf16.msra.mxu0 %v332
      %354 = vmatpush.bf16.msra.mxu0 %v313
      %355 = vmatpush.bf16.msra.mxu0 %v310
      %356 = vmatpush.bf16.msra.mxu0 %v307
      %357 = vmatpush.bf16.msra.mxu0 %v304
      %358 = vmatmul.bf16.gmra.mxu0 %v325
      %v359 = vpop.f32.mrf.mxu0
      %v360 = vadd.f32 %v321, %v359
      %v361 = vpop.f32.mrf.mxu0
      %362 = vdwg.mxu0
      %363 = vmatpush.bf16.msra.mxu0 0
      %364 = vmatpush.bf16.msra.mxu0 0
      %365 = vmatpush.bf16.msra.mxu0 0
      %366 = vmatpush.bf16.msra.mxu0 %v335
      %367 = vmatpush.bf16.msra.mxu0 %v314
      %368 = vmatpush.bf16.msra.mxu0 %v311
      %369 = vmatpush.bf16.msra.mxu0 %v308
      %370 = vmatpush.bf16.msra.mxu0 %v305
      %371 = vmatmul.bf16.gmra.mxu0 %v325
      %v372 = vpop.f32.mrf.mxu0
      %v373 = vadd.f32 %v321, %v372
      %v374 = vpop.f32.mrf.mxu0
      %375 = vdwg.mxu0
      %v376 = vld [vmem:[%s1] sm:$0x7]
      %v378 = vperm.slane %v376, 0
      %v379 = vperm.slane %v376, 1
      %v380 = vperm.slane %v376, 2
      %v384 = vmul.f32 %v347, %v378
      %v385 = vmul.f32 %v360, %v379
      %v386 = vmul.f32 %v373, %v380
      %387 = vst [vmem:[%s197] sm:$0xff] 0.0
      %388 = vst [vmem:[%s197 + $0x8] sm:$0xff] 0.0
      %vm389 = vcmask 556032
      %390 = vst.msk [vmem:[%s197 + $0x10] sm:$0xff] %vm389, 0.0
      %394 = vrot.lane.b32.xlu0 %v384, 19
      %v395 = vpop.permute.xlu0 %394
      %396 = vrot.lane.b32.xlu0 %v385, 19
      %v397 = vpop.permute.xlu0 %396
      %398 = vrot.lane.b32.xlu0 %v386, 19
      %v399 = vpop.permute.xlu0 %398
      %vm400 = vcmask 154624
      %v401 = vsel %vm400, %v395, %v397
      %v402 = vsel %vm400, %v397, %v399
      %vm406 = vcmask 1047704
      %407 = vst.msk [vmem:[%s197] sm:$0xff] %vm406, %v395
      %408 = vst [vmem:[%s197 + $0x8] sm:$0xff] %v401
      %vm409 = vcmask 400384
      %410 = vst.msk [vmem:[%s197 + $0x10] sm:$0xff] %vm409, %v402
      %p411 = scmp.lt.s32.totalorder %s15, 1
      %s412 = scalar_select %p411, %s15, 1
      %s413 = smul.addr %s412, 3
      %s414 = smul.addr %s413, 8
      %s415 = scalar_lea.vmem %s4, %s414
      // Predicated region
      $region37: #{edsr_forward.6} parent=35 // pred_check
        %p416 = pneg %p122
      $region38: #{edsr_forward.6} parent=35 // pred_check_branch
        %418 = sbr.rel (%p416) target = $region40
      $region39: #{edsr_forward.6} parent=35 // pred_region
        _
      $region40: #{edsr_forward.6} parent=35 // pred_fallthru
        _
    $region36: #{edsr_forward.6} parent=5 // pred_fallthru
      _
    %p419 = scmp.le.s32.totalorder 2, %s10
    // Predicated region
    $region41: #{edsr_forward.6} parent=5 // pred_check
      %p420 = pneg %p419
    $region42: #{edsr_forward.6} parent=5 // pred_check_branch
      %422 = sbr.rel (%p420) target = $region44
    $region43: #{edsr_forward.6} parent=5 // pred_region
      %s423 = ssub.s32 %s10, 2
      // Predicated region
      $region45: #{edsr_forward.6} parent=43 // pred_check
        %p424 = pneg %p128
      $region46: #{edsr_forward.6} parent=43 // pred_check_branch
        %426 = sbr.rel (%p424) target = $region48
      $region47: #{edsr_forward.6} parent=43 // pred_region
        %p427 = scmp.lt.s32.totalorder %s16, 1
        %s428 = scalar_select %p427, %s16, 1
        %s429 = smul.addr %s428, 3
        %s430 = smul.addr %s429, 8
        %s431 = scalar_lea.vmem %s4, %s430
      $region48: #{edsr_forward.6} parent=43 // pred_fallthru
        _
    $region44: #{edsr_forward.6} parent=5 // pred_fallthru
      _
  $region6: #{edsr_forward.6} parent=0 // loop_footer
    %s14 = sadd.s32 1, %s10
  $region7: #{edsr_forward.6} parent=0 // loop_footer_branch
    %9 = sbr.rel target = $region3
  $region8: #{edsr_forward.6} parent=0 // loop_exit
    _

// kernel: edsr_forward.9
$region0: #{edsr_forward.9}
  #allocation0 [shape = 'u32[]', space=smem, size = 0x4, offset = 0x4, fixed_abs, tag = 'smem constant byte address 0x4 - core index']
  #allocation1 [shape = 'u32[72,128]{1,0:T(1,128)}', space=vmem, size = 0x9000, scoped, tag = 'internal scratch']
  %s0 = inlined_call_operand.vmem [shape: f32[2,8,324], index: 0, kind: input, shape index: {}]
  %s1 = inlined_call_operand.vmem [shape: f32[2,8,324], index: 1, kind: input, shape index: {}]
  %s2 = inlined_call_operand.vmem [shape: f32[1,286], index: 2, kind: input, shape index: {}]
  %s3 = inlined_call_operand.vmem [shape: bf16[8,72], index: 3, kind: input, shape index: {}]
  %s4 = inlined_call_operand.vmem [shape: f32[8,1], index: 4, kind: input, shape index: {}]
  %s5 = inlined_call_operand.vmem [shape: f32[2,8,324], index: 5, kind: output, shape index: {}]
  %s6 = sld [smem:[#allocation0]]
  $region53: #{edsr_forward.9} parent=0
    _
  %s8 = ssub.s32 1, %s6
  %s9 = scalar_select 0, %s8, %s6
  loop: start=0, step=1, limit=4
  $region2: #{edsr_forward.9} parent=0 // loop_pre_header
    _
  $region3: #{edsr_forward.9} parent=0 // loop_header
    %s11 = sphi 0, %s15
    %p12 = scmp.ge.s32.totalorder %s11, 4
    %s21 = sphi 0, %s23
    %s24 = sphi 0, %s21
    %s25 = sphi 0, %s24
    %s41 = sphi 0, %s25
    %s47 = sphi 0, %s49
    %s50 = sphi 0, %s47
    %s51 = sphi 0, %s50
    %s67 = sphi 0, %s51
    %s71 = sphi 0, %s71
    %s73 = sphi 0, %s71
    %s74 = sphi 0, %s73
    %s88 = sphi 0, %s74
    %s92 = sphi 0, %s92
    %s94 = sphi 0, %s92
    %s95 = sphi 0, %s94
    %s109 = sphi 0, %s95
    %s113 = sphi 0, %s113
    %s115 = sphi 0, %s113
    %s116 = sphi 0, %s115
    %s130 = sphi 0, %s116
    %s136 = sphi 0, %s138
    %s139 = sphi 0, %s136
    %s140 = sphi 0, %s139
    %s156 = sphi 0, %s140
  $region4: #{edsr_forward.9} parent=0 // loop_header_branch
    %14 = sbr.rel (%p12) target = $region8
  $region5: #{edsr_forward.9} parent=0 // loop_body
    %s16 = ssub.s32 %s11, 1
    %s17 = ssub.s32 %s11, 2
    %s18 = sadd.s32 %s11, 1
    %s19 = ssub.s32 %s11, %s18
    %p20 = scmp.eq.s32.totalorder %s19, 0
    %s22 = sadd.s32 %s21, 1
    %s23 = scalar_select %p20, %s21, %s22
    %p26 = pneg %p20
    %p27 = scmp.eq.s32.totalorder %s11, 1
    %p28 = por %p26, %p27
    %p29 = scmp.ne.s32.totalorder %s21, %s24
    %p30 = scmp.eq.s32.totalorder %s11, 0
    %p31 = por %p29, %p30
    %p32 = scmp.ne.s32.totalorder %s21, %s24
    %p33 = scmp.eq.s32.totalorder %s16, 1
    %p34 = por %p32, %p33
    %p35 = scmp.ne.s32.totalorder %s24, %s25
    %p36 = scmp.eq.s32.totalorder %s16, 0
    %p37 = por %p35, %p36
    %p38 = scmp.ne.s32.totalorder %s24, %s25
    %p39 = scmp.eq.s32.totalorder %s17, 1
    %p40 = por %p38, %p39
    %p42 = scmp.ne.s32.totalorder %s25, %s41
    %p43 = scmp.eq.s32.totalorder %s17, 0
    %p44 = por %p42, %p43
    %s45 = ssub.s32 %s11, %s18
    %p46 = scmp.eq.s32.totalorder %s45, 0
    %s48 = sadd.s32 %s47, 1
    %s49 = scalar_select %p46, %s47, %s48
    %p52 = pneg %p46
    %p53 = scmp.eq.s32.totalorder %s11, 1
    %p54 = por %p52, %p53
    %p55 = scmp.ne.s32.totalorder %s47, %s50
    %p56 = scmp.eq.s32.totalorder %s11, 0
    %p57 = por %p55, %p56
    %p58 = scmp.ne.s32.totalorder %s47, %s50
    %p59 = scmp.eq.s32.totalorder %s16, 1
    %p60 = por %p58, %p59
    %p61 = scmp.ne.s32.totalorder %s50, %s51
    %p62 = scmp.eq.s32.totalorder %s16, 0
    %p63 = por %p61, %p62
    %p64 = scmp.ne.s32.totalorder %s50, %s51
    %p65 = scmp.eq.s32.totalorder %s17, 1
    %p66 = por %p64, %p65
    %p68 = scmp.ne.s32.totalorder %s51, %s67
    %p69 = scmp.eq.s32.totalorder %s17, 0
    %p70 = por %p68, %p69
    %s72 = sadd.s32 %s71, 1
    %p75 = scmp.eq.s32.totalorder %s11, 1
    %p76 = scmp.ne.s32.totalorder %s71, %s73
    %p77 = scmp.eq.s32.totalorder %s11, 0
    %p78 = por %p76, %p77
    %p79 = scmp.ne.s32.totalorder %s71, %s73
    %p80 = scmp.eq.s32.totalorder %s16, 1
    %p81 = por %p79, %p80
    %p82 = scmp.ne.s32.totalorder %s73, %s74
    %p83 = scmp.eq.s32.totalorder %s16, 0
    %p84 = por %p82, %p83
    %p85 = scmp.ne.s32.totalorder %s73, %s74
    %p86 = scmp.eq.s32.totalorder %s17, 1
    %p87 = por %p85, %p86
    %p89 = scmp.ne.s32.totalorder %s74, %s88
    %p90 = scmp.eq.s32.totalorder %s17, 0
    %p91 = por %p89, %p90
    %s93 = sadd.s32 %s92, 1
    %p96 = scmp.eq.s32.totalorder %s11, 1
    %p97 = scmp.ne.s32.totalorder %s92, %s94
    %p98 = scmp.eq.s32.totalorder %s11, 0
    %p99 = por %p97, %p98
    %p100 = scmp.ne.s32.totalorder %s92, %s94
    %p101 = scmp.eq.s32.totalorder %s16, 1
    %p102 = por %p100, %p101
    %p103 = scmp.ne.s32.totalorder %s94, %s95
    %p104 = scmp.eq.s32.totalorder %s16, 0
    %p105 = por %p103, %p104
    %p106 = scmp.ne.s32.totalorder %s94, %s95
    %p107 = scmp.eq.s32.totalorder %s17, 1
    %p108 = por %p106, %p107
    %p110 = scmp.ne.s32.totalorder %s95, %s109
    %p111 = scmp.eq.s32.totalorder %s17, 0
    %p112 = por %p110, %p111
    %s114 = sadd.s32 %s113, 1
    %p117 = scmp.eq.s32.totalorder %s11, 1
    %p118 = scmp.ne.s32.totalorder %s113, %s115
    %p119 = scmp.eq.s32.totalorder %s11, 0
    %p120 = por %p118, %p119
    %p121 = scmp.ne.s32.totalorder %s113, %s115
    %p122 = scmp.eq.s32.totalorder %s16, 1
    %p123 = por %p121, %p122
    %p124 = scmp.ne.s32.totalorder %s115, %s116
    %p125 = scmp.eq.s32.totalorder %s16, 0
    %p126 = por %p124, %p125
    %p127 = scmp.ne.s32.totalorder %s115, %s116
    %p128 = scmp.eq.s32.totalorder %s17, 1
    %p129 = por %p127, %p128
    %p131 = scmp.ne.s32.totalorder %s116, %s130
    %p132 = scmp.eq.s32.totalorder %s17, 0
    %p133 = por %p131, %p132
    %s134 = ssub.s32 %s11, %s18
    %p135 = scmp.eq.s32.totalorder %s134, 0
    %s137 = sadd.s32 %s136, 1
    %s138 = scalar_select %p135, %s136, %s137
    %p141 = pneg %p135
    %p142 = scmp.eq.s32.totalorder %s11, 1
    %p143 = por %p141, %p142
    %p144 = scmp.ne.s32.totalorder %s136, %s139
    %p145 = scmp.eq.s32.totalorder %s11, 0
    %p146 = por %p144, %p145
    %p147 = scmp.ne.s32.totalorder %s136, %s139
    %p148 = scmp.eq.s32.totalorder %s16, 1
    %p149 = por %p147, %p148
    %p150 = scmp.ne.s32.totalorder %s139, %s140
    %p151 = scmp.eq.s32.totalorder %s16, 0
    %p152 = por %p150, %p151
    %p153 = scmp.ne.s32.totalorder %s139, %s140
    %p154 = scmp.eq.s32.totalorder %s17, 1
    %p155 = por %p153, %p154
    %p157 = scmp.ne.s32.totalorder %s140, %s156
    %p158 = scmp.eq.s32.totalorder %s17, 0
    %p159 = por %p157, %p158
    %p160 = scmp.le.s32.totalorder 1, %s11
    %p161 = scmp.lt.s32.totalorder %s11, 3
    %p162 = pnand %p160, %p161
    %p163 = pneg %p162
    // Predicated region
    $region9: #{edsr_forward.9} parent=5 // pred_check
      _
    $region10: #{edsr_forward.9} parent=5 // pred_check_branch
      %165 = sbr.rel (%p162) target = $region12
    $region11: #{edsr_forward.9} parent=5 // pred_region
      %s166 = ssub.s32 %s11, 1
      // Predicated region
      $region13: #{edsr_forward.9} parent=11 // pred_check
        %p167 = pneg %p84
      $region14: #{edsr_forward.9} parent=11 // pred_check_branch
        %169 = sbr.rel (%p167) target = $region16
      $region15: #{edsr_forward.9} parent=11 // pred_region
        _
      $region16: #{edsr_forward.9} parent=11 // pred_fallthru
        _
      // Predicated region
      $region17: #{edsr_forward.9} parent=11 // pred_check
        %p170 = pneg %p105
      $region18: #{edsr_forward.9} parent=11 // pred_check_branch
        %172 = sbr.rel (%p170) target = $region20
      $region19: #{edsr_forward.9} parent=11 // pred_region
        _
      $region20: #{edsr_forward.9} parent=11 // pred_fallthru
        _
      // Predicated region
      $region21: #{edsr_forward.9} parent=11 // pred_check
        %p173 = pneg %p126
      $region22: #{edsr_forward.9} parent=11 // pred_check_branch
        %175 = sbr.rel (%p173) target = $region24
      $region23: #{edsr_forward.9} parent=11 // pred_region
        _
      $region24: #{edsr_forward.9} parent=11 // pred_fallthru
        _
    $region12: #{edsr_forward.9} parent=5 // pred_fallthru
      _
    %p176 = scmp.lt.s32.totalorder %s11, 2
    // Predicated region
    $region25: #{edsr_forward.9} parent=5 // pred_check
      %p177 = pneg %p176
    $region26: #{edsr_forward.9} parent=5 // pred_check_branch
      %179 = sbr.rel (%p177) target = $region28
    $region27: #{edsr_forward.9} parent=5 // pred_region
      // Predicated region
      $region29: #{edsr_forward.9} parent=27 // pred_check
        %p180 = pneg %p31
      $region30: #{edsr_forward.9} parent=27 // pred_check_branch
        %182 = sbr.rel (%p180) target = $region32
      $region31: #{edsr_forward.9} parent=27 // pred_region
        %p183 = scmp.lt.s32.totalorder %s11, 1
        %s184 = scalar_select %p183, %s11, 1
        %s185 = smul.addr %s184, 3
        %s186 = smul.addr %s185, 8
        %s187 = scalar_lea.vmem %s0, %s186
      $region32: #{edsr_forward.9} parent=27 // pred_fallthru
        _
      // Predicated region
      $region33: #{edsr_forward.9} parent=27 // pred_check
        %p188 = pneg %p57
      $region34: #{edsr_forward.9} parent=27 // pred_check_branch
        %190 = sbr.rel (%p188) target = $region36
      $region35: #{edsr_forward.9} parent=27 // pred_region
        %p191 = scmp.lt.s32.totalorder %s11, 1
        %s192 = scalar_select %p191, %s11, 1
        %s193 = smul.addr %s192, 3
        %s194 = smul.addr %s193, 8
        %s195 = scalar_lea.vmem %s1, %s194
      $region36: #{edsr_forward.9} parent=27 // pred_fallthru
        _
    $region28: #{edsr_forward.9} parent=5 // pred_fallthru
      _
    %p196 = scmp.le.s32.totalorder 1, %s11
    %p197 = scmp.lt.s32.totalorder %s11, 3
    %p198 = pnand %p196, %p197
    %p199 = pneg %p198
    // Predicated region
    $region37: #{edsr_forward.9} parent=5 // pred_check
      _
    $region38: #{edsr_forward.9} parent=5 // pred_check_branch
      %201 = sbr.rel (%p198) target = $region40
    $region39: #{edsr_forward.9} parent=5 // pred_region
      %s202 = ssub.s32 %s11, 1
      %p203 = scmp.lt.s32.totalorder %s16, 1
      %s204 = scalar_select %p203, %s16, 1
      %s205 = smul.addr %s204, 3
      %s206 = smul.addr %s205, 8
      %s207 = scalar_lea.vmem %s0, %s206
      %p208 = pneg %p37
      %p209 = pneg %p34
      %p210 = scmp.lt.s32.totalorder %s16, 1
      %s211 = scalar_select %p210, %s16, 1
      %s212 = smul.addr %s211, 3
      %s213 = smul.addr %s212, 8
      %s214 = scalar_lea.vmem %s1, %s213
      %p215 = pneg %p63
      %p216 = pneg %p60
      %p217 = pneg %p84
      %p218 = pneg %p81
      %p219 = pneg %p105
      %p220 = pneg %p102
      %p221 = pneg %p126
      %p222 = pneg %p123
      %p223 = pneg %p152
      %p224 = pneg %p149
      %p225 = scmp.lt.s32.totalorder %s16, 1
      %s226 = scalar_select %p225, %s16, 1
      %s227 = smul.addr %s226, 3
      %s228 = smul.addr %s227, 8
      %s229 = scalar_lea.vmem %s5, %s228
      %p230 = scmp.lt.s32.totalorder %s16, 1
      %s231 = scalar_select %p230, %s16, 1
      %s232 = smul.addr %s231, 3
      %s233 = smul.addr %s232, 8
      %s234 = scalar_lea.vmem %s0, %s233
      %p235 = scmp.lt.s32.totalorder %s16, 1
      %s236 = scalar_select %p235, %s16, 1
      %s237 = smul.addr %s236, 3
      %s238 = smul.addr %s237, 8
      %s239 = scalar_lea.vmem %s1, %s238
      %p240 = scmp.lt.s32.totalorder %s16, 1
      %s241 = scalar_select %p240, %s16, 1
      %s242 = smul.addr %s241, 3
      %s243 = smul.addr %s242, 8
      %s244 = scalar_lea.vmem %s5, %s243
      %v246 = vld [vmem:[%s234] sm:$0xff]
      %v247 = vld [vmem:[%s234 + $0x8] sm:$0xff]
      %v248 = vld [vmem:[%s234 + $0x10] sm:$0xff]
      %v249 = vld [vmem:[%s3] sm:$0xf]
      %v250 = vld [vmem:[%s4] sm:$0xff]
      %254 = vrot.lane.b32.xlu0 %v246, 127
      %v255 = vpop.permute.xlu0 %254
      %256 = vrot.lane.b32.xlu0 %v247, 127
      %v257 = vpop.permute.xlu0 %256
      %258 = vrot.lane.b32.xlu0 %v248, 127
      %v259 = vpop.permute.xlu0 %258
      %vm260 = vcmask 1039360
      %v261 = vsel %vm260, %v255, %v257
      %v262 = vsel %vm260, %v257, %v259
      %266 = vrot.lane.b32.xlu0 %v246, 126
      %v267 = vpop.permute.xlu0 %266
      %268 = vrot.lane.b32.xlu0 %v247, 126
      %v269 = vpop.permute.xlu0 %268
      %270 = vrot.lane.b32.xlu0 %v248, 126
      %v271 = vpop.permute.xlu0 %270
      %vm272 = vcmask 1031168
      %v273 = vsel %vm272, %v267, %v269
      %v274 = vsel %vm272, %v269, %v271
      %278 = vrot.lane.b32.xlu0 %v246, 110
      %v279 = vpop.permute.xlu0 %278
      %280 = vrot.lane.b32.xlu0 %v247, 110
      %v281 = vpop.permute.xlu0 %280
      %282 = vrot.lane.b32.xlu0 %v248, 110
      %v283 = vpop.permute.xlu0 %282
      %vm284 = vcmask 900096
      %v285 = vsel %vm284, %v279, %v281
      %v286 = vsel %vm284, %v281, %v283
      %290 = vrot.lane.b32.xlu0 %v246, 109
      %v291 = vpop.permute.xlu0 %290
      %292 = vrot.lane.b32.xlu0 %v247, 109
      %v293 = vpop.permute.xlu0 %292
      %294 = vrot.lane.b32.xlu0 %v248, 109
      %v295 = vpop.permute.xlu0 %294
      %vm296 = vcmask 891904
      %v297 = vsel %vm296, %v291, %v293
      %v298 = vsel %vm296, %v293, %v295
      %302 = vrot.lane.b32.xlu0 %v246, 108
      %v303 = vpop.permute.xlu0 %302
      %304 = vrot.lane.b32.xlu0 %v247, 108
      %v305 = vpop.permute.xlu0 %304
      %306 = vrot.lane.b32.xlu0 %v248, 108
      %v307 = vpop.permute.xlu0 %306
      %vm308 = vcmask 883712
      %v309 = vsel %vm308, %v303, %v305
      %v310 = vsel %vm308, %v305, %v307
      %314 = vrot.lane.b32.xlu0 %v246, 92
      %v315 = vpop.permute.xlu0 %314
      %316 = vrot.lane.b32.xlu0 %v247, 92
      %v317 = vpop.permute.xlu0 %316
      %318 = vrot.lane.b32.xlu0 %v248, 92
      %v319 = vpop.permute.xlu0 %318
      %vm320 = vcmask 752640
      %v321 = vsel %vm320, %v315, %v317
      %v322 = vsel %vm320, %v317, %v319
      %326 = vrot.lane.b32.xlu0 %v246, 91
      %v327 = vpop.permute.xlu0 %326
      %328 = vrot.lane.b32.xlu0 %v247, 91
      %v329 = vpop.permute.xlu0 %328
      %330 = vrot.lane.b32.xlu0 %v248, 91
      %v331 = vpop.permute.xlu0 %330
      %vm332 = vcmask 744448
      %v333 = vsel %vm332, %v327, %v329
      %v334 = vsel %vm332, %v329, %v331
      %338 = vrot.lane.b32.xlu0 %v246, 90
      %v339 = vpop.permute.xlu0 %338
      %340 = vrot.lane.b32.xlu0 %v247, 90
      %v341 = vpop.permute.xlu0 %340
      %342 = vrot.lane.b32.xlu0 %v248, 90
      %v343 = vpop.permute.xlu0 %342
      %vm344 = vcmask 736256
      %v345 = vsel %vm344, %v339, %v341
      %v346 = vsel %vm344, %v341, %v343
      %v350 = vpack.c.bf16 %v261, %v246
      %v351 = vpack.c.bf16 %v262, %v247
      %v352 = vpack.c.bf16 %v259, %v248
      %v353 = vpack.c.bf16 %v285, %v273
      %v354 = vpack.c.bf16 %v286, %v274
      %v355 = vpack.c.bf16 %v283, %v271
      %v356 = vpack.c.bf16 %v309, %v297
      %v357 = vpack.c.bf16 %v310, %v298
      %v358 = vpack.c.bf16 %v307, %v295
      %v359 = vpack.c.bf16 %v333, %v321
      %v360 = vpack.c.bf16 %v334, %v322
      %v361 = vpack.c.bf16 %v331, %v319
      %v362 = vpack.c.bf16 %v345, %v345
      %v363 = vpack.c.bf16 %v346, %v346
      %v364 = vpack.c.bf16 %v343, %v343
      %366 = vset.pattern.permute.xlu0 0
      %367 = vperm.xlu0 %366, %v250
      %v368 = vpop.permute.xlu0 %367
      %vm370 = vcmask 588800
      %v372 = vsel %vm370, %v249, 0
      %vm374 = vcmask 1043456
      %v376 = vsel %vm374, %v362, 0
      %v379 = vsel %vm374, %v363, 0
      %v382 = vsel %vm374, %v364, 0
      %384 = vmatpush.bf16.msra.mxu0 0
      %385 = vmatpush.bf16.msra.mxu0 0
      %386 = vmatpush.bf16.msra.mxu0 0
      %387 = vmatpush.bf16.msra.mxu0 %v376
      %388 = vmatpush.bf16.msra.mxu0 %v359
      %389 = vmatpush.bf16.msra.mxu0 %v356
      %390 = vmatpush.bf16.msra.mxu0 %v353
      %391 = vmatpush.bf16.msra.mxu0 %v350
      %392 = vmatmul.bf16.gmra.mxu0 %v372
      %v393 = vpop.f32.mrf.mxu0
      %v394 = vadd.f32 %v368, %v393
      %v395 = vpop.f32.mrf.mxu0
      %396 = vdwg.mxu0
      %397 = vmatpush.bf16.msra.mxu0 0
      %398 = vmatpush.bf16.msra.mxu0 0
      %399 = vmatpush.bf16.msra.mxu0 0
      %400 = vmatpush.bf16.msra.mxu0 %v379
      %401 = vmatpush.bf16.msra.mxu0 %v360
      %402 = vmatpush.bf16.msra.mxu0 %v357
      %403 = vmatpush.bf16.msra.mxu0 %v354
      %404 = vmatpush.bf16.msra.mxu0 %v351
      %405 = vmatmul.bf16.gmra.mxu0 %v372
      %v406 = vpop.f32.mrf.mxu0
      %v407 = vadd.f32 %v368, %v406
      %v408 = vpop.f32.mrf.mxu0
      %409 = vdwg.mxu0
      %410 = vmatpush.bf16.msra.mxu0 0
      %411 = vmatpush.bf16.msra.mxu0 0
      %412 = vmatpush.bf16.msra.mxu0 0
      %413 = vmatpush.bf16.msra.mxu0 %v382
      %414 = vmatpush.bf16.msra.mxu0 %v361
      %415 = vmatpush.bf16.msra.mxu0 %v358
      %416 = vmatpush.bf16.msra.mxu0 %v355
      %417 = vmatpush.bf16.msra.mxu0 %v352
      %418 = vmatmul.bf16.gmra.mxu0 %v372
      %v419 = vpop.f32.mrf.mxu0
      %v420 = vadd.f32 %v368, %v419
      %v421 = vpop.f32.mrf.mxu0
      %422 = vdwg.mxu0
      %v423 = vld [vmem:[%s239] sm:$0xff]
      %v424 = vld [vmem:[%s239 + $0x8] sm:$0xff]
      %v425 = vld [vmem:[%s239 + $0x10] sm:$0xff]
      %429 = vrot.lane.b32.xlu0 %v423, 109
      %v430 = vpop.permute.xlu0 %429
      %431 = vrot.lane.b32.xlu0 %v424, 109
      %v432 = vpop.permute.xlu0 %431
      %433 = vrot.lane.b32.xlu0 %v425, 109
      %v434 = vpop.permute.xlu0 %433
      %v435 = vsel %vm296, %v430, %v432
      %v436 = vsel %vm296, %v432, %v434
      %v440 = vadd.f32 %v394, %v435
      %v441 = vadd.f32 %v407, %v436
      %v442 = vadd.f32 %v420, %v434
      %v443 = vld [vmem:[%s2] sm:$0x7]
      %v445 = vperm.slane %v443, 0
      %v446 = vperm.slane %v443, 1
      %v447 = vperm.slane %v443, 2
      %v451 = vmul.f32 %v440, %v445
      %v452 = vmul.f32 %v441, %v446
      %v453 = vmul.f32 %v442, %v447
      %454 = vst [vmem:[%s244] sm:$0xff] 0.0
      %455 = vst [vmem:[%s244 + $0x8] sm:$0xff] 0.0
      %vm456 = vcmask 556032
      %457 = vst.msk [vmem:[%s244 + $0x10] sm:$0xff] %vm456, 0.0
      %461 = vrot.lane.b32.xlu0 %v451, 19
      %v462 = vpop.permute.xlu0 %461
      %463 = vrot.lane.b32.xlu0 %v452, 19
      %v464 = vpop.permute.xlu0 %463
      %465 = vrot.lane.b32.xlu0 %v453, 19
      %v466 = vpop.permute.xlu0 %465
      %vm467 = vcmask 154624
      %v468 = vsel %vm467, %v462, %v464
      %v469 = vsel %vm467, %v464, %v466
      %vm473 = vcmask 1047704
      %474 = vst.msk [vmem:[%s244] sm:$0xff] %vm473, %v462
      %475 = vst [vmem:[%s244 + $0x8] sm:$0xff] %v468
      %vm476 = vcmask 400384
      %477 = vst.msk [vmem:[%s244 + $0x10] sm:$0xff] %vm476, %v469
      %p478 = scmp.lt.s32.totalorder %s16, 1
      %s479 = scalar_select %p478, %s16, 1
      %s480 = smul.addr %s479, 3
      %s481 = smul.addr %s480, 8
      %s482 = scalar_lea.vmem %s5, %s481
      // Predicated region
      $region41: #{edsr_forward.9} parent=39 // pred_check
        %p483 = pneg %p149
      $region42: #{edsr_forward.9} parent=39 // pred_check_branch
        %485 = sbr.rel (%p483) target = $region44
      $region43: #{edsr_forward.9} parent=39 // pred_region
        _
      $region44: #{edsr_forward.9} parent=39 // pred_fallthru
        _
    $region40: #{edsr_forward.9} parent=5 // pred_fallthru
      _
    %p486 = scmp.le.s32.totalorder 2, %s11
    // Predicated region
    $region45: #{edsr_forward.9} parent=5 // pred_check
      %p487 = pneg %p486
    $region46: #{edsr_forward.9} parent=5 // pred_check_branch
      %489 = sbr.rel (%p487) target = $region48
    $region47: #{edsr_forward.9} parent=5 // pred_region
      %s490 = ssub.s32 %s11, 2
      // Predicated region
      $region49: #{edsr_forward.9} parent=47 // pred_check
        %p491 = pneg %p155
      $region50: #{edsr_forward.9} parent=47 // pred_check_branch
        %493 = sbr.rel (%p491) target = $region52
      $region51: #{edsr_forward.9} parent=47 // pred_region
        %p494 = scmp.lt.s32.totalorder %s17, 1
        %s495 = scalar_select %p494, %s17, 1
        %s496 = smul.addr %s495, 3
        %s497 = smul.addr %s496, 8
        %s498 = scalar_lea.vmem %s5, %s497
      $region52: #{edsr_forward.9} parent=47 // pred_fallthru
        _
    $region48: #{edsr_forward.9} parent=5 // pred_fallthru
      _
  $region6: #{edsr_forward.9} parent=0 // loop_footer
    %s15 = sadd.s32 1, %s11
  $region7: #{edsr_forward.9} parent=0 // loop_footer_branch
    %10 = sbr.rel target = $region3
  $region8: #{edsr_forward.9} parent=0 // loop_exit
    _

// kernel: edsr_forward.7
$region0: #{edsr_forward.7}
  #allocation0 [shape = 'u32[]', space=smem, size = 0x4, offset = 0x4, fixed_abs, tag = 'smem constant byte address 0x4 - core index']
  #allocation1 [shape = 'u32[72,128]{1,0:T(1,128)}', space=vmem, size = 0x9000, scoped, tag = 'internal scratch']
  #allocation2 [shape = 'f32[8,324]{1,0:T(8,128)}', space=vmem, size = 0x3000, scoped, tag = 'scratch operand']
  %s0 = inlined_call_operand.vmem [shape: f32[2,8,324], index: 0, kind: input, shape index: {}]
  %s1 = inlined_call_operand.vmem [shape: f32[1,286], index: 1, kind: input, shape index: {}]
  %s2 = inlined_call_operand.vmem [shape: bf16[8,72], index: 2, kind: input, shape index: {}]
  %s3 = inlined_call_operand.vmem [shape: f32[8,1], index: 3, kind: input, shape index: {}]
  %s4 = inlined_call_operand.vmem [shape: bf16[8,72], index: 4, kind: input, shape index: {}]
  %s5 = inlined_call_operand.vmem [shape: f32[8,1], index: 5, kind: input, shape index: {}]
  %s6 = inlined_call_operand.vmem [shape: f32[2,8,324], index: 6, kind: output, shape index: {}]
  %s7 = sld [smem:[#allocation0]]
  $region57: #{edsr_forward.7} parent=0
    _
  %s9 = ssub.s32 1, %s7
  %s10 = scalar_select 0, %s9, %s7
  loop: start=0, step=1, limit=4
  $region2: #{edsr_forward.7} parent=0 // loop_pre_header
    _
  $region3: #{edsr_forward.7} parent=0 // loop_header
    %s12 = sphi 0, %s16
    %p13 = scmp.ge.s32.totalorder %s12, 4
    %s22 = sphi 0, %s24
    %s25 = sphi 0, %s22
    %s26 = sphi 0, %s25
    %s42 = sphi 0, %s26
    %s46 = sphi 0, %s46
    %s48 = sphi 0, %s46
    %s49 = sphi 0, %s48
    %s63 = sphi 0, %s49
    %s67 = sphi 0, %s67
    %s69 = sphi 0, %s67
    %s70 = sphi 0, %s69
    %s84 = sphi 0, %s70
    %s88 = sphi 0, %s88
    %s90 = sphi 0, %s88
    %s91 = sphi 0, %s90
    %s105 = sphi 0, %s91
    %s109 = sphi 0, %s109
    %s111 = sphi 0, %s109
    %s112 = sphi 0, %s111
    %s126 = sphi 0, %s112
    %s130 = sphi 0, %s130
    %s132 = sphi 0, %s130
    %s133 = sphi 0, %s132
    %s147 = sphi 0, %s133
    %s153 = sphi 0, %s155
    %s156 = sphi 0, %s153
    %s157 = sphi 0, %s156
    %s173 = sphi 0, %s157
  $region4: #{edsr_forward.7} parent=0 // loop_header_branch
    %15 = sbr.rel (%p13) target = $region8
  $region5: #{edsr_forward.7} parent=0 // loop_body
    %s17 = ssub.s32 %s12, 1
    %s18 = ssub.s32 %s12, 2
    %s19 = sadd.s32 %s12, 1
    %s20 = ssub.s32 %s12, %s19
    %p21 = scmp.eq.s32.totalorder %s20, 0
    %s23 = sadd.s32 %s22, 1
    %s24 = scalar_select %p21, %s22, %s23
    %p27 = pneg %p21
    %p28 = scmp.eq.s32.totalorder %s12, 1
    %p29 = por %p27, %p28
    %p30 = scmp.ne.s32.totalorder %s22, %s25
    %p31 = scmp.eq.s32.totalorder %s12, 0
    %p32 = por %p30, %p31
    %p33 = scmp.ne.s32.totalorder %s22, %s25
    %p34 = scmp.eq.s32.totalorder %s17, 1
    %p35 = por %p33, %p34
    %p36 = scmp.ne.s32.totalorder %s25, %s26
    %p37 = scmp.eq.s32.totalorder %s17, 0
    %p38 = por %p36, %p37
    %p39 = scmp.ne.s32.totalorder %s25, %s26
    %p40 = scmp.eq.s32.totalorder %s18, 1
    %p41 = por %p39, %p40
    %p43 = scmp.ne.s32.totalorder %s26, %s42
    %p44 = scmp.eq.s32.totalorder %s18, 0
    %p45 = por %p43, %p44
    %s47 = sadd.s32 %s46, 1
    %p50 = scmp.eq.s32.totalorder %s12, 1
    %p51 = scmp.ne.s32.totalorder %s46, %s48
    %p52 = scmp.eq.s32.totalorder %s12, 0
    %p53 = por %p51, %p52
    %p54 = scmp.ne.s32.totalorder %s46, %s48
    %p55 = scmp.eq.s32.totalorder %s17, 1
    %p56 = por %p54, %p55
    %p57 = scmp.ne.s32.totalorder %s48, %s49
    %p58 = scmp.eq.s32.totalorder %s17, 0
    %p59 = por %p57, %p58
    %p60 = scmp.ne.s32.totalorder %s48, %s49
    %p61 = scmp.eq.s32.totalorder %s18, 1
    %p62 = por %p60, %p61
    %p64 = scmp.ne.s32.totalorder %s49, %s63
    %p65 = scmp.eq.s32.totalorder %s18, 0
    %p66 = por %p64, %p65
    %s68 = sadd.s32 %s67, 1
    %p71 = scmp.eq.s32.totalorder %s12, 1
    %p72 = scmp.ne.s32.totalorder %s67, %s69
    %p73 = scmp.eq.s32.totalorder %s12, 0
    %p74 = por %p72, %p73
    %p75 = scmp.ne.s32.totalorder %s67, %s69
    %p76 = scmp.eq.s32.totalorder %s17, 1
    %p77 = por %p75, %p76
    %p78 = scmp.ne.s32.totalorder %s69, %s70
    %p79 = scmp.eq.s32.totalorder %s17, 0
    %p80 = por %p78, %p79
    %p81 = scmp.ne.s32.totalorder %s69, %s70
    %p82 = scmp.eq.s32.totalorder %s18, 1
    %p83 = por %p81, %p82
    %p85 = scmp.ne.s32.totalorder %s70, %s84
    %p86 = scmp.eq.s32.totalorder %s18, 0
    %p87 = por %p85, %p86
    %s89 = sadd.s32 %s88, 1
    %p92 = scmp.eq.s32.totalorder %s12, 1
    %p93 = scmp.ne.s32.totalorder %s88, %s90
    %p94 = scmp.eq.s32.totalorder %s12, 0
    %p95 = por %p93, %p94
    %p96 = scmp.ne.s32.totalorder %s88, %s90
    %p97 = scmp.eq.s32.totalorder %s17, 1
    %p98 = por %p96, %p97
    %p99 = scmp.ne.s32.totalorder %s90, %s91
    %p100 = scmp.eq.s32.totalorder %s17, 0
    %p101 = por %p99, %p100
    %p102 = scmp.ne.s32.totalorder %s90, %s91
    %p103 = scmp.eq.s32.totalorder %s18, 1
    %p104 = por %p102, %p103
    %p106 = scmp.ne.s32.totalorder %s91, %s105
    %p107 = scmp.eq.s32.totalorder %s18, 0
    %p108 = por %p106, %p107
    %s110 = sadd.s32 %s109, 1
    %p113 = scmp.eq.s32.totalorder %s12, 1
    %p114 = scmp.ne.s32.totalorder %s109, %s111
    %p115 = scmp.eq.s32.totalorder %s12, 0
    %p116 = por %p114, %p115
    %p117 = scmp.ne.s32.totalorder %s109, %s111
    %p118 = scmp.eq.s32.totalorder %s17, 1
    %p119 = por %p117, %p118
    %p120 = scmp.ne.s32.totalorder %s111, %s112
    %p121 = scmp.eq.s32.totalorder %s17, 0
    %p122 = por %p120, %p121
    %p123 = scmp.ne.s32.totalorder %s111, %s112
    %p124 = scmp.eq.s32.totalorder %s18, 1
    %p125 = por %p123, %p124
    %p127 = scmp.ne.s32.totalorder %s112, %s126
    %p128 = scmp.eq.s32.totalorder %s18, 0
    %p129 = por %p127, %p128
    %s131 = sadd.s32 %s130, 1
    %p134 = scmp.eq.s32.totalorder %s12, 1
    %p135 = scmp.ne.s32.totalorder %s130, %s132
    %p136 = scmp.eq.s32.totalorder %s12, 0
    %p137 = por %p135, %p136
    %p138 = scmp.ne.s32.totalorder %s130, %s132
    %p139 = scmp.eq.s32.totalorder %s17, 1
    %p140 = por %p138, %p139
    %p141 = scmp.ne.s32.totalorder %s132, %s133
    %p142 = scmp.eq.s32.totalorder %s17, 0
    %p143 = por %p141, %p142
    %p144 = scmp.ne.s32.totalorder %s132, %s133
    %p145 = scmp.eq.s32.totalorder %s18, 1
    %p146 = por %p144, %p145
    %p148 = scmp.ne.s32.totalorder %s133, %s147
    %p149 = scmp.eq.s32.totalorder %s18, 0
    %p150 = por %p148, %p149
    %s151 = ssub.s32 %s12, %s19
    %p152 = scmp.eq.s32.totalorder %s151, 0
    %s154 = sadd.s32 %s153, 1
    %s155 = scalar_select %p152, %s153, %s154
    %p158 = pneg %p152
    %p159 = scmp.eq.s32.totalorder %s12, 1
    %p160 = por %p158, %p159
    %p161 = scmp.ne.s32.totalorder %s153, %s156
    %p162 = scmp.eq.s32.totalorder %s12, 0
    %p163 = por %p161, %p162
    %p164 = scmp.ne.s32.totalorder %s153, %s156
    %p165 = scmp.eq.s32.totalorder %s17, 1
    %p166 = por %p164, %p165
    %p167 = scmp.ne.s32.totalorder %s156, %s157
    %p168 = scmp.eq.s32.totalorder %s17, 0
    %p169 = por %p167, %p168
    %p170 = scmp.ne.s32.totalorder %s156, %s157
    %p171 = scmp.eq.s32.totalorder %s18, 1
    %p172 = por %p170, %p171
    %p174 = scmp.ne.s32.totalorder %s157, %s173
    %p175 = scmp.eq.s32.totalorder %s18, 0
    %p176 = por %p174, %p175
    %p177 = scmp.le.s32.totalorder 1, %s12
    %p178 = scmp.lt.s32.totalorder %s12, 3
    %p179 = pnand %p177, %p178
    %p180 = pneg %p179
    // Predicated region
    $region9: #{edsr_forward.7} parent=5 // pred_check
      _
    $region10: #{edsr_forward.7} parent=5 // pred_check_branch
      %182 = sbr.rel (%p179) target = $region12
    $region11: #{edsr_forward.7} parent=5 // pred_region
      %s183 = ssub.s32 %s12, 1
      // Predicated region
      $region13: #{edsr_forward.7} parent=11 // pred_check
        %p184 = pneg %p59
      $region14: #{edsr_forward.7} parent=11 // pred_check_branch
        %186 = sbr.rel (%p184) target = $region16
      $region15: #{edsr_forward.7} parent=11 // pred_region
        _
      $region16: #{edsr_forward.7} parent=11 // pred_fallthru
        _
      // Predicated region
      $region17: #{edsr_forward.7} parent=11 // pred_check
        %p187 = pneg %p80
      $region18: #{edsr_forward.7} parent=11 // pred_check_branch
        %189 = sbr.rel (%p187) target = $region20
      $region19: #{edsr_forward.7} parent=11 // pred_region
        _
      $region20: #{edsr_forward.7} parent=11 // pred_fallthru
        _
      // Predicated region
      $region21: #{edsr_forward.7} parent=11 // pred_check
        %p190 = pneg %p101
      $region22: #{edsr_forward.7} parent=11 // pred_check_branch
        %192 = sbr.rel (%p190) target = $region24
      $region23: #{edsr_forward.7} parent=11 // pred_region
        _
      $region24: #{edsr_forward.7} parent=11 // pred_fallthru
        _
      // Predicated region
      $region25: #{edsr_forward.7} parent=11 // pred_check
        %p193 = pneg %p122
      $region26: #{edsr_forward.7} parent=11 // pred_check_branch
        %195 = sbr.rel (%p193) target = $region28
      $region27: #{edsr_forward.7} parent=11 // pred_region
        _
      $region28: #{edsr_forward.7} parent=11 // pred_fallthru
        _
      // Predicated region
      $region29: #{edsr_forward.7} parent=11 // pred_check
        %p196 = pneg %p143
      $region30: #{edsr_forward.7} parent=11 // pred_check_branch
        %198 = sbr.rel (%p196) target = $region32
      $region31: #{edsr_forward.7} parent=11 // pred_region
        _
      $region32: #{edsr_forward.7} parent=11 // pred_fallthru
        _
    $region12: #{edsr_forward.7} parent=5 // pred_fallthru
      _
    %p199 = scmp.lt.s32.totalorder %s12, 2
    // Predicated region
    $region33: #{edsr_forward.7} parent=5 // pred_check
      %p200 = pneg %p199
    $region34: #{edsr_forward.7} parent=5 // pred_check_branch
      %202 = sbr.rel (%p200) target = $region36
    $region35: #{edsr_forward.7} parent=5 // pred_region
      // Predicated region
      $region37: #{edsr_forward.7} parent=35 // pred_check
        %p203 = pneg %p32
      $region38: #{edsr_forward.7} parent=35 // pred_check_branch
        %205 = sbr.rel (%p203) target = $region40
      $region39: #{edsr_forward.7} parent=35 // pred_region
        %p206 = scmp.lt.s32.totalorder %s12, 1
        %s207 = scalar_select %p206, %s12, 1
        %s208 = smul.addr %s207, 3
        %s209 = smul.addr %s208, 8
        %s210 = scalar_lea.vmem %s0, %s209
      $region40: #{edsr_forward.7} parent=35 // pred_fallthru
        _
    $region36: #{edsr_forward.7} parent=5 // pred_fallthru
      _
    %p211 = scmp.le.s32.totalorder 1, %s12
    %p212 = scmp.lt.s32.totalorder %s12, 3
    %p213 = pnand %p211, %p212
    %p214 = pneg %p213
    // Predicated region
    $region41: #{edsr_forward.7} parent=5 // pred_check
      _
    $region42: #{edsr_forward.7} parent=5 // pred_check_branch
      %216 = sbr.rel (%p213) target = $region44
    $region43: #{edsr_forward.7} parent=5 // pred_region
      %s217 = ssub.s32 %s12, 1
      %p218 = scmp.lt.s32.totalorder %s17, 1
      %s219 = scalar_select %p218, %s17, 1
      %s220 = smul.addr %s219, 3
      %s221 = smul.addr %s220, 8
      %s222 = scalar_lea.vmem %s0, %s221
      %p223 = pneg %p38
      %p224 = pneg %p35
      %p225 = pneg %p59
      %p226 = pneg %p56
      %p227 = pneg %p80
      %p228 = pneg %p77
      %p229 = pneg %p101
      %p230 = pneg %p98
      %p231 = pneg %p122
      %p232 = pneg %p119
      %p233 = pneg %p143
      %p234 = pneg %p140
      %p235 = pneg %p169
      %p236 = pneg %p166
      %p237 = scmp.lt.s32.totalorder %s17, 1
      %s238 = scalar_select %p237, %s17, 1
      %s239 = smul.addr %s238, 3
      %s240 = smul.addr %s239, 8
      %s241 = scalar_lea.vmem %s6, %s240
      %p242 = scmp.lt.s32.totalorder %s17, 1
      %s243 = scalar_select %p242, %s17, 1
      %s244 = smul.addr %s243, 3
      %s245 = smul.addr %s244, 8
      %s246 = scalar_lea.vmem %s0, %s245
      %p247 = scmp.lt.s32.totalorder %s17, 1
      %s248 = scalar_select %p247, %s17, 1
      %s249 = smul.addr %s248, 3
      %s250 = smul.addr %s249, 8
      %s251 = scalar_lea.vmem %s6, %s250
      %v253 = vld [vmem:[%s246] sm:$0xff]
      %v254 = vld [vmem:[%s246 + $0x8] sm:$0xff]
      %v255 = vld [vmem:[%s246 + $0x10] sm:$0xff]
      %v256 = vld [vmem:[%s1] sm:$0x7]
      %v257 = vld [vmem:[%s2] sm:$0xf]
      %v258 = vld [vmem:[%s3] sm:$0xff]
      %262 = vrot.lane.b32.xlu0 %v253, 127
      %v263 = vpop.permute.xlu0 %262
      %264 = vrot.lane.b32.xlu0 %v254, 127
      %v265 = vpop.permute.xlu0 %264
      %266 = vrot.lane.b32.xlu0 %v255, 127
      %v267 = vpop.permute.xlu0 %266
      %vm268 = vcmask 1039360
      %v269 = vsel %vm268, %v263, %v265
      %v270 = vsel %vm268, %v265, %v267
      %274 = vrot.lane.b32.xlu0 %v253, 126
      %v275 = vpop.permute.xlu0 %274
      %276 = vrot.lane.b32.xlu0 %v254, 126
      %v277 = vpop.permute.xlu0 %276
      %278 = vrot.lane.b32.xlu0 %v255, 126
      %v279 = vpop.permute.xlu0 %278
      %vm280 = vcmask 1031168
      %v281 = vsel %vm280, %v275, %v277
      %v282 = vsel %vm280, %v277, %v279
      %286 = vrot.lane.b32.xlu0 %v253, 110
      %v287 = vpop.permute.xlu0 %286
      %288 = vrot.lane.b32.xlu0 %v254, 110
      %v289 = vpop.permute.xlu0 %288
      %290 = vrot.lane.b32.xlu0 %v255, 110
      %v291 = vpop.permute.xlu0 %290
      %vm292 = vcmask 900096
      %v293 = vsel %vm292, %v287, %v289
      %v294 = vsel %vm292, %v289, %v291
      %298 = vrot.lane.b32.xlu0 %v253, 109
      %v299 = vpop.permute.xlu0 %298
      %300 = vrot.lane.b32.xlu0 %v254, 109
      %v301 = vpop.permute.xlu0 %300
      %302 = vrot.lane.b32.xlu0 %v255, 109
      %v303 = vpop.permute.xlu0 %302
      %vm304 = vcmask 891904
      %v305 = vsel %vm304, %v299, %v301
      %v306 = vsel %vm304, %v301, %v303
      %310 = vrot.lane.b32.xlu0 %v253, 108
      %v311 = vpop.permute.xlu0 %310
      %312 = vrot.lane.b32.xlu0 %v254, 108
      %v313 = vpop.permute.xlu0 %312
      %314 = vrot.lane.b32.xlu0 %v255, 108
      %v315 = vpop.permute.xlu0 %314
      %vm316 = vcmask 883712
      %v317 = vsel %vm316, %v311, %v313
      %v318 = vsel %vm316, %v313, %v315
      %322 = vrot.lane.b32.xlu0 %v253, 92
      %v323 = vpop.permute.xlu0 %322
      %324 = vrot.lane.b32.xlu0 %v254, 92
      %v325 = vpop.permute.xlu0 %324
      %326 = vrot.lane.b32.xlu0 %v255, 92
      %v327 = vpop.permute.xlu0 %326
      %vm328 = vcmask 752640
      %v329 = vsel %vm328, %v323, %v325
      %v330 = vsel %vm328, %v325, %v327
      %334 = vrot.lane.b32.xlu0 %v253, 91
      %v335 = vpop.permute.xlu0 %334
      %336 = vrot.lane.b32.xlu0 %v254, 91
      %v337 = vpop.permute.xlu0 %336
      %338 = vrot.lane.b32.xlu0 %v255, 91
      %v339 = vpop.permute.xlu0 %338
      %vm340 = vcmask 744448
      %v341 = vsel %vm340, %v335, %v337
      %v342 = vsel %vm340, %v337, %v339
      %346 = vrot.lane.b32.xlu0 %v253, 90
      %v347 = vpop.permute.xlu0 %346
      %348 = vrot.lane.b32.xlu0 %v254, 90
      %v349 = vpop.permute.xlu0 %348
      %350 = vrot.lane.b32.xlu0 %v255, 90
      %v351 = vpop.permute.xlu0 %350
      %vm352 = vcmask 736256
      %v353 = vsel %vm352, %v347, %v349
      %v354 = vsel %vm352, %v349, %v351
      %v358 = vpack.c.bf16 %v269, %v253
      %v359 = vpack.c.bf16 %v270, %v254
      %v360 = vpack.c.bf16 %v267, %v255
      %v361 = vpack.c.bf16 %v293, %v281
      %v362 = vpack.c.bf16 %v294, %v282
      %v363 = vpack.c.bf16 %v291, %v279
      %v364 = vpack.c.bf16 %v317, %v305
      %v365 = vpack.c.bf16 %v318, %v306
      %v366 = vpack.c.bf16 %v315, %v303
      %v367 = vpack.c.bf16 %v341, %v329
      %v368 = vpack.c.bf16 %v342, %v330
      %v369 = vpack.c.bf16 %v339, %v327
      %v370 = vpack.c.bf16 %v353, %v353
      %v371 = vpack.c.bf16 %v354, %v354
      %v372 = vpack.c.bf16 %v351, %v351
      %374 = vset.pattern.permute.xlu0 0
      %375 = vperm.xlu0 %374, %v258
      %v376 = vpop.permute.xlu0 %375
      %vm378 = vcmask 588800
      %v380 = vsel %vm378, %v257, 0
      %vm382 = vcmask 1043456
      %v384 = vsel %vm382, %v370, 0
      %v387 = vsel %vm382, %v371, 0
      %v390 = vsel %vm382, %v372, 0
      %392 = vmatpush.bf16.msra.mxu0 0
      %393 = vmatpush.bf16.msra.mxu0 0
      %394 = vmatpush.bf16.msra.mxu0 0
      %395 = vmatpush.bf16.msra.mxu0 %v384
      %396 = vmatpush.bf16.msra.mxu0 %v367
      %397 = vmatpush.bf16.msra.mxu0 %v364
      %398 = vmatpush.bf16.msra.mxu0 %v361
      %399 = vmatpush.bf16.msra.mxu0 %v358
      %400 = vmatmul.bf16.gmra.mxu0 %v380
      %v401 = vpop.f32.mrf.mxu0
      %v402 = vadd.f32 %v376, %v401
      %v403 = vpop.f32.mrf.mxu0
      %404 = vdwg.mxu0
      %405 = vmatpush.bf16.msra.mxu0 0
      %406 = vmatpush.bf16.msra.mxu0 0
      %407 = vmatpush.bf16.msra.mxu0 0
      %408 = vmatpush.bf16.msra.mxu0 %v387
      %409 = vmatpush.bf16.msra.mxu0 %v368
      %410 = vmatpush.bf16.msra.mxu0 %v365
      %411 = vmatpush.bf16.msra.mxu0 %v362
      %412 = vmatpush.bf16.msra.mxu0 %v359
      %413 = vmatmul.bf16.gmra.mxu0 %v380
      %v414 = vpop.f32.mrf.mxu0
      %v415 = vadd.f32 %v376, %v414
      %v416 = vpop.f32.mrf.mxu0
      %417 = vdwg.mxu0
      %418 = vmatpush.bf16.msra.mxu0 0
      %419 = vmatpush.bf16.msra.mxu0 0
      %420 = vmatpush.bf16.msra.mxu0 0
      %421 = vmatpush.bf16.msra.mxu0 %v390
      %422 = vmatpush.bf16.msra.mxu0 %v369
      %423 = vmatpush.bf16.msra.mxu0 %v366
      %424 = vmatpush.bf16.msra.mxu0 %v363
      %425 = vmatpush.bf16.msra.mxu0 %v360
      %426 = vmatmul.bf16.gmra.mxu0 %v380
      %v427 = vpop.f32.mrf.mxu0
      %v428 = vadd.f32 %v376, %v427
      %v429 = vpop.f32.mrf.mxu0
      %430 = vdwg.mxu0
      %v431 = vmax.f32 %v402, 0.0
      %v432 = vmax.f32 %v415, 0.0
      %v433 = vmax.f32 %v428, 0.0
      %434 = vst [vmem:[#allocation2] sm:$0xff] 0.0
      %435 = vst [vmem:[#allocation2 + $0x8] sm:$0xff] 0.0
      %vm436 = vcmask 556032
      %437 = vst.msk [vmem:[#allocation2 + $0x10] sm:$0xff] %vm436, 0.0
      %v439 = vperm.slane %v256, 0
      %v440 = vperm.slane %v256, 1
      %v441 = vperm.slane %v256, 2
      %v445 = vmul.f32 %v431, %v439
      %v446 = vmul.f32 %v432, %v440
      %v447 = vmul.f32 %v433, %v441
      %451 = vrot.lane.b32.xlu0 %v445, 19
      %v452 = vpop.permute.xlu0 %451
      %453 = vrot.lane.b32.xlu0 %v446, 19
      %v454 = vpop.permute.xlu0 %453
      %455 = vrot.lane.b32.xlu0 %v447, 19
      %v456 = vpop.permute.xlu0 %455
      %vm457 = vcmask 154624
      %v458 = vsel %vm457, %v452, %v454
      %v459 = vsel %vm457, %v454, %v456
      %vm463 = vcmask 1047704
      %464 = vst.msk [vmem:[#allocation2] sm:$0xff] %vm463, %v452
      %465 = vst [vmem:[#allocation2 + $0x8] sm:$0xff] %v458
      %vm466 = vcmask 400384
      %467 = vst.msk [vmem:[#allocation2 + $0x10] sm:$0xff] %vm466, %v459
      %v468 = vld [vmem:[#allocation2] sm:$0xff]
      %v469 = vld [vmem:[#allocation2 + $0x8] sm:$0xff]
      %v470 = vld [vmem:[#allocation2 + $0x10] sm:$0xff]
      %v471 = vld [vmem:[%s4] sm:$0xf]
      %v472 = vld [vmem:[%s5] sm:$0xff]
      %476 = vrot.lane.b32.xlu0 %v468, 127
      %v477 = vpop.permute.xlu0 %476
      %478 = vrot.lane.b32.xlu0 %v469, 127
      %v479 = vpop.permute.xlu0 %478
      %480 = vrot.lane.b32.xlu0 %v470, 127
      %v481 = vpop.permute.xlu0 %480
      %v482 = vsel %vm268, %v477, %v479
      %v483 = vsel %vm268, %v479, %v481
      %487 = vrot.lane.b32.xlu0 %v468, 126
      %v488 = vpop.permute.xlu0 %487
      %489 = vrot.lane.b32.xlu0 %v469, 126
      %v490 = vpop.permute.xlu0 %489
      %491 = vrot.lane.b32.xlu0 %v470, 126
      %v492 = vpop.permute.xlu0 %491
      %v493 = vsel %vm280, %v488, %v490
      %v494 = vsel %vm280, %v490, %v492
      %498 = vrot.lane.b32.xlu0 %v468, 110
      %v499 = vpop.permute.xlu0 %498
      %500 = vrot.lane.b32.xlu0 %v469, 110
      %v501 = vpop.permute.xlu0 %500
      %502 = vrot.lane.b32.xlu0 %v470, 110
      %v503 = vpop.permute.xlu0 %502
      %v504 = vsel %vm292, %v499, %v501
      %v505 = vsel %vm292, %v501, %v503
      %509 = vrot.lane.b32.xlu0 %v468, 109
      %v510 = vpop.permute.xlu0 %509
      %511 = vrot.lane.b32.xlu0 %v469, 109
      %v512 = vpop.permute.xlu0 %511
      %513 = vrot.lane.b32.xlu0 %v470, 109
      %v514 = vpop.permute.xlu0 %513
      %v515 = vsel %vm304, %v510, %v512
      %v516 = vsel %vm304, %v512, %v514
      %520 = vrot.lane.b32.xlu0 %v468, 108
      %v521 = vpop.permute.xlu0 %520
      %522 = vrot.lane.b32.xlu0 %v469, 108
      %v523 = vpop.permute.xlu0 %522
      %524 = vrot.lane.b32.xlu0 %v470, 108
      %v525 = vpop.permute.xlu0 %524
      %v526 = vsel %vm316, %v521, %v523
      %v527 = vsel %vm316, %v523, %v525
      %531 = vrot.lane.b32.xlu0 %v468, 92
      %v532 = vpop.permute.xlu0 %531
      %533 = vrot.lane.b32.xlu0 %v469, 92
      %v534 = vpop.permute.xlu0 %533
      %535 = vrot.lane.b32.xlu0 %v470, 92
      %v536 = vpop.permute.xlu0 %535
      %v537 = vsel %vm328, %v532, %v534
      %v538 = vsel %vm328, %v534, %v536
      %542 = vrot.lane.b32.xlu0 %v468, 91
      %v543 = vpop.permute.xlu0 %542
      %544 = vrot.lane.b32.xlu0 %v469, 91
      %v545 = vpop.permute.xlu0 %544
      %546 = vrot.lane.b32.xlu0 %v470, 91
      %v547 = vpop.permute.xlu0 %546
      %v548 = vsel %vm340, %v543, %v545
      %v549 = vsel %vm340, %v545, %v547
      %553 = vrot.lane.b32.xlu0 %v468, 90
      %v554 = vpop.permute.xlu0 %553
      %555 = vrot.lane.b32.xlu0 %v469, 90
      %v556 = vpop.permute.xlu0 %555
      %557 = vrot.lane.b32.xlu0 %v470, 90
      %v558 = vpop.permute.xlu0 %557
      %v559 = vsel %vm352, %v554, %v556
      %v560 = vsel %vm352, %v556, %v558
      %v564 = vpack.c.bf16 %v482, %v468
      %v565 = vpack.c.bf16 %v483, %v469
      %v566 = vpack.c.bf16 %v481, %v470
      %v567 = vpack.c.bf16 %v504, %v493
      %v568 = vpack.c.bf16 %v505, %v494
      %v569 = vpack.c.bf16 %v503, %v492
      %v570 = vpack.c.bf16 %v526, %v515
      %v571 = vpack.c.bf16 %v527, %v516
      %v572 = vpack.c.bf16 %v525, %v514
      %v573 = vpack.c.bf16 %v548, %v537
      %v574 = vpack.c.bf16 %v549, %v538
      %v575 = vpack.c.bf16 %v547, %v536
      %v576 = vpack.c.bf16 %v559, %v559
      %v577 = vpack.c.bf16 %v560, %v560
      %v578 = vpack.c.bf16 %v558, %v558
      %580 = vset.pattern.permute.xlu0 0
      %581 = vperm.xlu0 %580, %v472
      %v582 = vpop.permute.xlu0 %581
      %v585 = vsel %vm378, %v471, 0
      %v588 = vsel %vm382, %v576, 0
      %v591 = vsel %vm382, %v577, 0
      %v594 = vsel %vm382, %v578, 0
      %596 = vmatpush.bf16.msra.mxu0 0
      %597 = vmatpush.bf16.msra.mxu0 0
      %598 = vmatpush.bf16.msra.mxu0 0
      %599 = vmatpush.bf16.msra.mxu0 %v588
      %600 = vmatpush.bf16.msra.mxu0 %v573
      %601 = vmatpush.bf16.msra.mxu0 %v570
      %602 = vmatpush.bf16.msra.mxu0 %v567
      %603 = vmatpush.bf16.msra.mxu0 %v564
      %604 = vmatmul.bf16.gmra.mxu0 %v585
      %v605 = vpop.f32.mrf.mxu0
      %v606 = vadd.f32 %v582, %v605
      %v607 = vpop.f32.mrf.mxu0
      %608 = vdwg.mxu0
      %609 = vmatpush.bf16.msra.mxu0 0
      %610 = vmatpush.bf16.msra.mxu0 0
      %611 = vmatpush.bf16.msra.mxu0 0
      %612 = vmatpush.bf16.msra.mxu0 %v591
      %613 = vmatpush.bf16.msra.mxu0 %v574
      %614 = vmatpush.bf16.msra.mxu0 %v571
      %615 = vmatpush.bf16.msra.mxu0 %v568
      %616 = vmatpush.bf16.msra.mxu0 %v565
      %617 = vmatmul.bf16.gmra.mxu0 %v585
      %v618 = vpop.f32.mrf.mxu0
      %v619 = vadd.f32 %v582, %v618
      %v620 = vpop.f32.mrf.mxu0
      %621 = vdwg.mxu0
      %622 = vmatpush.bf16.msra.mxu0 0
      %623 = vmatpush.bf16.msra.mxu0 0
      %624 = vmatpush.bf16.msra.mxu0 0
      %625 = vmatpush.bf16.msra.mxu0 %v594
      %626 = vmatpush.bf16.msra.mxu0 %v575
      %627 = vmatpush.bf16.msra.mxu0 %v572
      %628 = vmatpush.bf16.msra.mxu0 %v569
      %629 = vmatpush.bf16.msra.mxu0 %v566
      %630 = vmatmul.bf16.gmra.mxu0 %v585
      %v631 = vpop.f32.mrf.mxu0
      %v632 = vadd.f32 %v582, %v631
      %v633 = vpop.f32.mrf.mxu0
      %634 = vdwg.mxu0
      %v635 = vmul.f32 %v606, 0.1
      %v636 = vmul.f32 %v619, 0.1
      %v637 = vmul.f32 %v632, 0.1
      %641 = vrot.lane.b32.xlu0 %v635, 19
      %v642 = vpop.permute.xlu0 %641
      %643 = vrot.lane.b32.xlu0 %v636, 19
      %v644 = vpop.permute.xlu0 %643
      %645 = vrot.lane.b32.xlu0 %v637, 19
      %v646 = vpop.permute.xlu0 %645
      %v647 = vsel %vm457, %v642, %v644
      %v648 = vsel %vm457, %v644, %v646
      %v652 = vadd.f32 %v253, %v642
      %v653 = vadd.f32 %v254, %v647
      %v654 = vadd.f32 %v255, %v648
      %655 = vrot.lane.b32.xlu0 %v439, 19
      %v656 = vpop.permute.xlu0 %655
      %657 = vrot.lane.b32.xlu0 %v440, 19
      %v658 = vpop.permute.xlu0 %657
      %659 = vrot.lane.b32.xlu0 %v441, 19
      %v660 = vpop.permute.xlu0 %659
      %v661 = vsel %vm457, %v656, %v658
      %v662 = vsel %vm457, %v658, %v660
      %v666 = vmul.f32 %v652, %v656
      %v667 = vmul.f32 %v653, %v661
      %v668 = vmul.f32 %v654, %v662
      %669 = vst [vmem:[%s251] sm:$0xff] 0.0
      %670 = vst [vmem:[%s251 + $0x8] sm:$0xff] 0.0
      %671 = vst.msk [vmem:[%s251 + $0x10] sm:$0xff] %vm436, 0.0
      %672 = vst.msk [vmem:[%s251] sm:$0xff] %vm463, %v666
      %673 = vst [vmem:[%s251 + $0x8] sm:$0xff] %v667
      %674 = vst.msk [vmem:[%s251 + $0x10] sm:$0xff] %vm466, %v668
      %p675 = scmp.lt.s32.totalorder %s17, 1
      %s676 = scalar_select %p675, %s17, 1
      %s677 = smul.addr %s676, 3
      %s678 = smul.addr %s677, 8
      %s679 = scalar_lea.vmem %s6, %s678
      // Predicated region
      $region45: #{edsr_forward.7} parent=43 // pred_check
        %p680 = pneg %p166
      $region46: #{edsr_forward.7} parent=43 // pred_check_branch
        %682 = sbr.rel (%p680) target = $region48
      $region47: #{edsr_forward.7} parent=43 // pred_region
        _
      $region48: #{edsr_forward.7} parent=43 // pred_fallthru
        _
    $region44: #{edsr_forward.7} parent=5 // pred_fallthru
      _
    %p683 = scmp.le.s32.totalorder 2, %s12
    // Predicated region
    $region49: #{edsr_forward.7} parent=5 // pred_check
      %p684 = pneg %p683
    $region50: #{edsr_forward.7} parent=5 // pred_check_branch
      %686 = sbr.rel (%p684) target = $region52
    $region51: #{edsr_forward.7} parent=5 // pred_region
      %s687 = ssub.s32 %s12, 2
      // Predicated region
      $region53: #{edsr_forward.7} parent=51 // pred_check
        %p688 = pneg %p172
      $region54: #{edsr_forward.7} parent=51 // pred_check_branch
        %690 = sbr.rel (%p688) target = $region56
      $region55: #{edsr_forward.7} parent=51 // pred_region
        %p691 = scmp.lt.s32.totalorder %s18, 1
        %s692 = scalar_select %p691, %s18, 1
        %s693 = smul.addr %s692, 3
        %s694 = smul.addr %s693, 8
        %s695 = scalar_lea.vmem %s6, %s694
      $region56: #{edsr_forward.7} parent=51 // pred_fallthru
        _
    $region52: #{edsr_forward.7} parent=5 // pred_fallthru
      _
  $region6: #{edsr_forward.7} parent=0 // loop_footer
    %s16 = sadd.s32 1, %s12
  $region7: #{edsr_forward.7} parent=0 // loop_footer_branch
    %11 = sbr.rel target = $region3
  $region8: #{edsr_forward.7} parent=0 // loop_exit
    _

// kernel: edsr_forward.10
$region0: #{edsr_forward.10}
  #allocation0 [shape = 'u32[]', space=smem, size = 0x4, offset = 0x4, fixed_abs, tag = 'smem constant byte address 0x4 - core index']
  #allocation1 [shape = 'u32[72,128]{1,0:T(1,128)}', space=vmem, size = 0x9000, scoped, tag = 'internal scratch']
  %s0 = inlined_call_operand.vmem [shape: f32[2,8,324], index: 0, kind: input, shape index: {}]
  %s1 = inlined_call_operand.vmem [shape: f32[1,286], index: 1, kind: input, shape index: {}]
  %s2 = inlined_call_operand.vmem [shape: bf16[32,72], index: 2, kind: input, shape index: {}]
  %s3 = inlined_call_operand.vmem [shape: f32[32,1], index: 3, kind: input, shape index: {}]
  %s4 = inlined_call_operand.vmem [shape: f32[2,32,324], index: 4, kind: output, shape index: {}]
  %s5 = sld [smem:[#allocation0]]
  $region49: #{edsr_forward.10} parent=0
    _
  %s7 = ssub.s32 1, %s5
  %s8 = scalar_select 0, %s7, %s5
  loop: start=0, step=1, limit=4
  $region2: #{edsr_forward.10} parent=0 // loop_pre_header
    _
  $region3: #{edsr_forward.10} parent=0 // loop_header
    %s10 = sphi 0, %s14
    %p11 = scmp.ge.s32.totalorder %s10, 4
    %s20 = sphi 0, %s22
    %s23 = sphi 0, %s20
    %s24 = sphi 0, %s23
    %s40 = sphi 0, %s24
    %s44 = sphi 0, %s44
    %s46 = sphi 0, %s44
    %s47 = sphi 0, %s46
    %s61 = sphi 0, %s47
    %s65 = sphi 0, %s65
    %s67 = sphi 0, %s65
    %s68 = sphi 0, %s67
    %s82 = sphi 0, %s68
    %s86 = sphi 0, %s86
    %s88 = sphi 0, %s86
    %s89 = sphi 0, %s88
    %s103 = sphi 0, %s89
    %s109 = sphi 0, %s111
    %s112 = sphi 0, %s109
    %s113 = sphi 0, %s112
    %s129 = sphi 0, %s113
  $region4: #{edsr_forward.10} parent=0 // loop_header_branch
    %13 = sbr.rel (%p11) target = $region8
  $region5: #{edsr_forward.10} parent=0 // loop_body
    %s15 = ssub.s32 %s10, 1
    %s16 = ssub.s32 %s10, 2
    %s17 = sadd.s32 %s10, 1
    %s18 = ssub.s32 %s10, %s17
    %p19 = scmp.eq.s32.totalorder %s18, 0
    %s21 = sadd.s32 %s20, 1
    %s22 = scalar_select %p19, %s20, %s21
    %p25 = pneg %p19
    %p26 = scmp.eq.s32.totalorder %s10, 1
    %p27 = por %p25, %p26
    %p28 = scmp.ne.s32.totalorder %s20, %s23
    %p29 = scmp.eq.s32.totalorder %s10, 0
    %p30 = por %p28, %p29
    %p31 = scmp.ne.s32.totalorder %s20, %s23
    %p32 = scmp.eq.s32.totalorder %s15, 1
    %p33 = por %p31, %p32
    %p34 = scmp.ne.s32.totalorder %s23, %s24
    %p35 = scmp.eq.s32.totalorder %s15, 0
    %p36 = por %p34, %p35
    %p37 = scmp.ne.s32.totalorder %s23, %s24
    %p38 = scmp.eq.s32.totalorder %s16, 1
    %p39 = por %p37, %p38
    %p41 = scmp.ne.s32.totalorder %s24, %s40
    %p42 = scmp.eq.s32.totalorder %s16, 0
    %p43 = por %p41, %p42
    %s45 = sadd.s32 %s44, 1
    %p48 = scmp.eq.s32.totalorder %s10, 1
    %p49 = scmp.ne.s32.totalorder %s44, %s46
    %p50 = scmp.eq.s32.totalorder %s10, 0
    %p51 = por %p49, %p50
    %p52 = scmp.ne.s32.totalorder %s44, %s46
    %p53 = scmp.eq.s32.totalorder %s15, 1
    %p54 = por %p52, %p53
    %p55 = scmp.ne.s32.totalorder %s46, %s47
    %p56 = scmp.eq.s32.totalorder %s15, 0
    %p57 = por %p55, %p56
    %p58 = scmp.ne.s32.totalorder %s46, %s47
    %p59 = scmp.eq.s32.totalorder %s16, 1
    %p60 = por %p58, %p59
    %p62 = scmp.ne.s32.totalorder %s47, %s61
    %p63 = scmp.eq.s32.totalorder %s16, 0
    %p64 = por %p62, %p63
    %s66 = sadd.s32 %s65, 1
    %p69 = scmp.eq.s32.totalorder %s10, 1
    %p70 = scmp.ne.s32.totalorder %s65, %s67
    %p71 = scmp.eq.s32.totalorder %s10, 0
    %p72 = por %p70, %p71
    %p73 = scmp.ne.s32.totalorder %s65, %s67
    %p74 = scmp.eq.s32.totalorder %s15, 1
    %p75 = por %p73, %p74
    %p76 = scmp.ne.s32.totalorder %s67, %s68
    %p77 = scmp.eq.s32.totalorder %s15, 0
    %p78 = por %p76, %p77
    %p79 = scmp.ne.s32.totalorder %s67, %s68
    %p80 = scmp.eq.s32.totalorder %s16, 1
    %p81 = por %p79, %p80
    %p83 = scmp.ne.s32.totalorder %s68, %s82
    %p84 = scmp.eq.s32.totalorder %s16, 0
    %p85 = por %p83, %p84
    %s87 = sadd.s32 %s86, 1
    %p90 = scmp.eq.s32.totalorder %s10, 1
    %p91 = scmp.ne.s32.totalorder %s86, %s88
    %p92 = scmp.eq.s32.totalorder %s10, 0
    %p93 = por %p91, %p92
    %p94 = scmp.ne.s32.totalorder %s86, %s88
    %p95 = scmp.eq.s32.totalorder %s15, 1
    %p96 = por %p94, %p95
    %p97 = scmp.ne.s32.totalorder %s88, %s89
    %p98 = scmp.eq.s32.totalorder %s15, 0
    %p99 = por %p97, %p98
    %p100 = scmp.ne.s32.totalorder %s88, %s89
    %p101 = scmp.eq.s32.totalorder %s16, 1
    %p102 = por %p100, %p101
    %p104 = scmp.ne.s32.totalorder %s89, %s103
    %p105 = scmp.eq.s32.totalorder %s16, 0
    %p106 = por %p104, %p105
    %s107 = ssub.s32 %s10, %s17
    %p108 = scmp.eq.s32.totalorder %s107, 0
    %s110 = sadd.s32 %s109, 1
    %s111 = scalar_select %p108, %s109, %s110
    %p114 = pneg %p108
    %p115 = scmp.eq.s32.totalorder %s10, 1
    %p116 = por %p114, %p115
    %p117 = scmp.ne.s32.totalorder %s109, %s112
    %p118 = scmp.eq.s32.totalorder %s10, 0
    %p119 = por %p117, %p118
    %p120 = scmp.ne.s32.totalorder %s109, %s112
    %p121 = scmp.eq.s32.totalorder %s15, 1
    %p122 = por %p120, %p121
    %p123 = scmp.ne.s32.totalorder %s112, %s113
    %p124 = scmp.eq.s32.totalorder %s15, 0
    %p125 = por %p123, %p124
    %p126 = scmp.ne.s32.totalorder %s112, %s113
    %p127 = scmp.eq.s32.totalorder %s16, 1
    %p128 = por %p126, %p127
    %p130 = scmp.ne.s32.totalorder %s113, %s129
    %p131 = scmp.eq.s32.totalorder %s16, 0
    %p132 = por %p130, %p131
    %p133 = scmp.le.s32.totalorder 1, %s10
    %p134 = scmp.lt.s32.totalorder %s10, 3
    %p135 = pnand %p133, %p134
    %p136 = pneg %p135
    // Predicated region
    $region9: #{edsr_forward.10} parent=5 // pred_check
      _
    $region10: #{edsr_forward.10} parent=5 // pred_check_branch
      %138 = sbr.rel (%p135) target = $region12
    $region11: #{edsr_forward.10} parent=5 // pred_region
      %s139 = ssub.s32 %s10, 1
      // Predicated region
      $region13: #{edsr_forward.10} parent=11 // pred_check
        %p140 = pneg %p57
      $region14: #{edsr_forward.10} parent=11 // pred_check_branch
        %142 = sbr.rel (%p140) target = $region16
      $region15: #{edsr_forward.10} parent=11 // pred_region
        _
      $region16: #{edsr_forward.10} parent=11 // pred_fallthru
        _
      // Predicated region
      $region17: #{edsr_forward.10} parent=11 // pred_check
        %p143 = pneg %p78
      $region18: #{edsr_forward.10} parent=11 // pred_check_branch
        %145 = sbr.rel (%p143) target = $region20
      $region19: #{edsr_forward.10} parent=11 // pred_region
        _
      $region20: #{edsr_forward.10} parent=11 // pred_fallthru
        _
      // Predicated region
      $region21: #{edsr_forward.10} parent=11 // pred_check
        %p146 = pneg %p99
      $region22: #{edsr_forward.10} parent=11 // pred_check_branch
        %148 = sbr.rel (%p146) target = $region24
      $region23: #{edsr_forward.10} parent=11 // pred_region
        _
      $region24: #{edsr_forward.10} parent=11 // pred_fallthru
        _
    $region12: #{edsr_forward.10} parent=5 // pred_fallthru
      _
    %p149 = scmp.lt.s32.totalorder %s10, 2
    // Predicated region
    $region25: #{edsr_forward.10} parent=5 // pred_check
      %p150 = pneg %p149
    $region26: #{edsr_forward.10} parent=5 // pred_check_branch
      %152 = sbr.rel (%p150) target = $region28
    $region27: #{edsr_forward.10} parent=5 // pred_region
      // Predicated region
      $region29: #{edsr_forward.10} parent=27 // pred_check
        %p153 = pneg %p30
      $region30: #{edsr_forward.10} parent=27 // pred_check_branch
        %155 = sbr.rel (%p153) target = $region32
      $region31: #{edsr_forward.10} parent=27 // pred_region
        %p156 = scmp.lt.s32.totalorder %s10, 1
        %s157 = scalar_select %p156, %s10, 1
        %s158 = smul.addr %s157, 3
        %s159 = smul.addr %s158, 8
        %s160 = scalar_lea.vmem %s0, %s159
      $region32: #{edsr_forward.10} parent=27 // pred_fallthru
        _
    $region28: #{edsr_forward.10} parent=5 // pred_fallthru
      _
    %p161 = scmp.le.s32.totalorder 1, %s10
    %p162 = scmp.lt.s32.totalorder %s10, 3
    %p163 = pnand %p161, %p162
    %p164 = pneg %p163
    // Predicated region
    $region33: #{edsr_forward.10} parent=5 // pred_check
      _
    $region34: #{edsr_forward.10} parent=5 // pred_check_branch
      %166 = sbr.rel (%p163) target = $region36
    $region35: #{edsr_forward.10} parent=5 // pred_region
      %s167 = ssub.s32 %s10, 1
      %p168 = scmp.lt.s32.totalorder %s15, 1
      %s169 = scalar_select %p168, %s15, 1
      %s170 = smul.addr %s169, 3
      %s171 = smul.addr %s170, 8
      %s172 = scalar_lea.vmem %s0, %s171
      %p173 = pneg %p36
      %p174 = pneg %p33
      %p175 = pneg %p57
      %p176 = pneg %p54
      %p177 = pneg %p78
      %p178 = pneg %p75
      %p179 = pneg %p99
      %p180 = pneg %p96
      %p181 = pneg %p125
      %p182 = pneg %p122
      %p183 = scmp.lt.s32.totalorder %s15, 1
      %s184 = scalar_select %p183, %s15, 1
      %s185 = smul.addr %s184, 12
      %s186 = smul.addr %s185, 8
      %s187 = scalar_lea.vmem %s4, %s186
      %p188 = scmp.lt.s32.totalorder %s15, 1
      %s189 = scalar_select %p188, %s15, 1
      %s190 = smul.addr %s189, 3
      %s191 = smul.addr %s190, 8
      %s192 = scalar_lea.vmem %s0, %s191
      %p193 = scmp.lt.s32.totalorder %s15, 1
      %s194 = scalar_select %p193, %s15, 1
      %s195 = smul.addr %s194, 12
      %s196 = smul.addr %s195, 8
      %s197 = scalar_lea.vmem %s4, %s196
      %v199 = vld [vmem:[%s192] sm:$0xff]
      %v200 = vld [vmem:[%s192 + $0x8] sm:$0xff]
      %v201 = vld [vmem:[%s192 + $0x10] sm:$0xff]
      %v202 = vld [vmem:[%s2] sm:$0xf]
      %v203 = vld [vmem:[%s2 + $0x4] sm:$0xf]
      %v204 = vld [vmem:[%s2 + $0x8] sm:$0xf]
      %v205 = vld [vmem:[%s2 + $0xc] sm:$0xf]
      %v206 = vld [vmem:[%s3] sm:$0xff]
      %v207 = vld [vmem:[%s3 + $0x8] sm:$0xff]
      %v208 = vld [vmem:[%s3 + $0x10] sm:$0xff]
      %v209 = vld [vmem:[%s3 + $0x18] sm:$0xff]
      %213 = vrot.lane.b32.xlu0 %v199, 127
      %v214 = vpop.permute.xlu0 %213
      %215 = vrot.lane.b32.xlu0 %v200, 127
      %v216 = vpop.permute.xlu0 %215
      %217 = vrot.lane.b32.xlu0 %v201, 127
      %v218 = vpop.permute.xlu0 %217
      %vm219 = vcmask 1039360
      %v220 = vsel %vm219, %v214, %v216
      %v221 = vsel %vm219, %v216, %v218
      %225 = vrot.lane.b32.xlu0 %v199, 126
      %v226 = vpop.permute.xlu0 %225
      %227 = vrot.lane.b32.xlu0 %v200, 126
      %v228 = vpop.permute.xlu0 %227
      %229 = vrot.lane.b32.xlu0 %v201, 126
      %v230 = vpop.permute.xlu0 %229
      %vm231 = vcmask 1031168
      %v232 = vsel %vm231, %v226, %v228
      %v233 = vsel %vm231, %v228, %v230
      %237 = vrot.lane.b32.xlu0 %v199, 110
      %v238 = vpop.permute.xlu0 %237
      %239 = vrot.lane.b32.xlu0 %v200, 110
      %v240 = vpop.permute.xlu0 %239
      %241 = vrot.lane.b32.xlu0 %v201, 110
      %v242 = vpop.permute.xlu0 %241
      %vm243 = vcmask 900096
      %v244 = vsel %vm243, %v238, %v240
      %v245 = vsel %vm243, %v240, %v242
      %249 = vrot.lane.b32.xlu0 %v199, 109
      %v250 = vpop.permute.xlu0 %249
      %251 = vrot.lane.b32.xlu0 %v200, 109
      %v252 = vpop.permute.xlu0 %251
      %253 = vrot.lane.b32.xlu0 %v201, 109
      %v254 = vpop.permute.xlu0 %253
      %vm255 = vcmask 891904
      %v256 = vsel %vm255, %v250, %v252
      %v257 = vsel %vm255, %v252, %v254
      %261 = vrot.lane.b32.xlu0 %v199, 108
      %v262 = vpop.permute.xlu0 %261
      %263 = vrot.lane.b32.xlu0 %v200, 108
      %v264 = vpop.permute.xlu0 %263
      %265 = vrot.lane.b32.xlu0 %v201, 108
      %v266 = vpop.permute.xlu0 %265
      %vm267 = vcmask 883712
      %v268 = vsel %vm267, %v262, %v264
      %v269 = vsel %vm267, %v264, %v266
      %273 = vrot.lane.b32.xlu0 %v199, 92
      %v274 = vpop.permute.xlu0 %273
      %275 = vrot.lane.b32.xlu0 %v200, 92
      %v276 = vpop.permute.xlu0 %275
      %277 = vrot.lane.b32.xlu0 %v201, 92
      %v278 = vpop.permute.xlu0 %277
      %vm279 = vcmask 752640
      %v280 = vsel %vm279, %v274, %v276
      %v281 = vsel %vm279, %v276, %v278
      %285 = vrot.lane.b32.xlu0 %v199, 91
      %v286 = vpop.permute.xlu0 %285
      %287 = vrot.lane.b32.xlu0 %v200, 91
      %v288 = vpop.permute.xlu0 %287
      %289 = vrot.lane.b32.xlu0 %v201, 91
      %v290 = vpop.permute.xlu0 %289
      %vm291 = vcmask 744448
      %v292 = vsel %vm291, %v286, %v288
      %v293 = vsel %vm291, %v288, %v290
      %297 = vrot.lane.b32.xlu0 %v199, 90
      %v298 = vpop.permute.xlu0 %297
      %299 = vrot.lane.b32.xlu0 %v200, 90
      %v300 = vpop.permute.xlu0 %299
      %301 = vrot.lane.b32.xlu0 %v201, 90
      %v302 = vpop.permute.xlu0 %301
      %vm303 = vcmask 736256
      %v304 = vsel %vm303, %v298, %v300
      %v305 = vsel %vm303, %v300, %v302
      %v309 = vpack.c.bf16 %v220, %v199
      %v310 = vpack.c.bf16 %v221, %v200
      %v311 = vpack.c.bf16 %v218, %v201
      %v312 = vpack.c.bf16 %v244, %v232
      %v313 = vpack.c.bf16 %v245, %v233
      %v314 = vpack.c.bf16 %v242, %v230
      %v315 = vpack.c.bf16 %v268, %v256
      %v316 = vpack.c.bf16 %v269, %v257
      %v317 = vpack.c.bf16 %v266, %v254
      %v318 = vpack.c.bf16 %v292, %v280
      %v319 = vpack.c.bf16 %v293, %v281
      %v320 = vpack.c.bf16 %v290, %v278
      %v321 = vpack.c.bf16 %v304, %v304
      %v322 = vpack.c.bf16 %v305, %v305
      %v323 = vpack.c.bf16 %v302, %v302
      %325 = vset.pattern.permute.xlu0 0
      %326 = vperm.xlu0 %325, %v206
      %v327 = vpop.permute.xlu0 %326
      %330 = vset.pattern.permute.xlu0 0
      %331 = vperm.xlu0 %330, %v207
      %v332 = vpop.permute.xlu0 %331
      %335 = vset.pattern.permute.xlu0 0
      %336 = vperm.xlu0 %335, %v208
      %v337 = vpop.permute.xlu0 %336
      %340 = vset.pattern.permute.xlu0 0
      %341 = vperm.xlu0 %340, %v209
      %v342 = vpop.permute.xlu0 %341
      %v348 = vunpack.c.l.b16 %v202
      %v349 = vunpack.c.l.b16 %v203
      %v350 = vunpack.c.l.b16 %v204
      %v351 = vunpack.c.l.b16 %v205
      %v352 = vpack.c.b16 %v349, %v348
      %v353 = vpack.c.b16 %v351, %v350
      %vm354 = vcmask 588800
      %v356 = vsel %vm354, %v352, 0
      %v359 = vsel %vm354, %v353, 0
      %vm361 = vcmask 1043456
      %v363 = vsel %vm361, %v321, 0
      %v366 = vsel %vm361, %v322, 0
      %v369 = vsel %vm361, %v323, 0
      %371 = vmatpush.bf16.msra.mxu0 0
      %372 = vmatpush.bf16.msra.mxu0 0
      %373 = vmatpush.bf16.msra.mxu0 0
      %374 = vmatpush.bf16.msra.mxu0 %v363
      %375 = vmatpush.bf16.msra.mxu0 %v318
      %376 = vmatpush.bf16.msra.mxu0 %v315
      %377 = vmatpush.bf16.msra.mxu0 %v312
      %378 = vmatpush.bf16.msra.mxu0 %v309
      %379 = vmatmul.bf16.gmra.mxu0 %v356
      %v380 = vpop.f32.mrf.mxu0
      %v381 = vadd.f32 %v327, %v380
      %v382 = vpop.f32.mrf.mxu0
      %v383 = vadd.f32 %v332, %v382
      %384 = vmatmul.bf16.gmra.mxu0 %v359
      %v385 = vpop.f32.mrf.mxu0
      %v386 = vadd.f32 %v337, %v385
      %v387 = vpop.f32.mrf.mxu0
      %v388 = vadd.f32 %v342, %v387
      %389 = vdwg.mxu0
      %390 = vmatpush.bf16.msra.mxu0 0
      %391 = vmatpush.bf16.msra.mxu0 0
      %392 = vmatpush.bf16.msra.mxu0 0
      %393 = vmatpush.bf16.msra.mxu0 %v366
      %394 = vmatpush.bf16.msra.mxu0 %v319
      %395 = vmatpush.bf16.msra.mxu0 %v316
      %396 = vmatpush.bf16.msra.mxu0 %v313
      %397 = vmatpush.bf16.msra.mxu0 %v310
      %398 = vmatmul.bf16.gmra.mxu0 %v356
      %v399 = vpop.f32.mrf.mxu0
      %v400 = vadd.f32 %v327, %v399
      %v401 = vpop.f32.mrf.mxu0
      %v402 = vadd.f32 %v332, %v401
      %403 = vmatmul.bf16.gmra.mxu0 %v359
      %v404 = vpop.f32.mrf.mxu0
      %v405 = vadd.f32 %v337, %v404
      %v406 = vpop.f32.mrf.mxu0
      %v407 = vadd.f32 %v342, %v406
      %408 = vdwg.mxu0
      %409 = vmatpush.bf16.msra.mxu0 0
      %410 = vmatpush.bf16.msra.mxu0 0
      %411 = vmatpush.bf16.msra.mxu0 0
      %412 = vmatpush.bf16.msra.mxu0 %v369
      %413 = vmatpush.bf16.msra.mxu0 %v320
      %414 = vmatpush.bf16.msra.mxu0 %v317
      %415 = vmatpush.bf16.msra.mxu0 %v314
      %416 = vmatpush.bf16.msra.mxu0 %v311
      %417 = vmatmul.bf16.gmra.mxu0 %v356
      %v418 = vpop.f32.mrf.mxu0
      %v419 = vadd.f32 %v327, %v418
      %v420 = vpop.f32.mrf.mxu0
      %v421 = vadd.f32 %v332, %v420
      %422 = vmatmul.bf16.gmra.mxu0 %v359
      %v423 = vpop.f32.mrf.mxu0
      %v424 = vadd.f32 %v337, %v423
      %v425 = vpop.f32.mrf.mxu0
      %v426 = vadd.f32 %v342, %v425
      %427 = vdwg.mxu0
      %v428 = vld [vmem:[%s1] sm:$0x7]
      %v430 = vperm.slane %v428, 0
      %v431 = vperm.slane %v428, 1
      %v432 = vperm.slane %v428, 2
      %v436 = vmul.f32 %v381, %v430
      %v437 = vmul.f32 %v400, %v431
      %v438 = vmul.f32 %v419, %v432
      %v439 = vmul.f32 %v383, %v430
      %v440 = vmul.f32 %v402, %v431
      %v441 = vmul.f32 %v421, %v432
      %v442 = vmul.f32 %v386, %v430
      %v443 = vmul.f32 %v405, %v431
      %v444 = vmul.f32 %v424, %v432
      %v445 = vmul.f32 %v388, %v430
      %v446 = vmul.f32 %v407, %v431
      %v447 = vmul.f32 %v426, %v432
      %448 = vst [vmem:[%s197] sm:$0xff] 0.0
      %449 = vst [vmem:[%s197 + $0x8] sm:$0xff] 0.0
      %vm450 = vcmask 556032
      %451 = vst.msk [vmem:[%s197 + $0x10] sm:$0xff] %vm450, 0.0
      %452 = vst [vmem:[%s197 + $0x18] sm:$0xff] 0.0
      %453 = vst [vmem:[%s197 + $0x20] sm:$0xff] 0.0
      %454 = vst.msk [vmem:[%s197 + $0x28] sm:$0xff] %vm450, 0.0
      %455 = vst [vmem:[%s197 + $0x30] sm:$0xff] 0.0
      %456 = vst [vmem:[%s197 + $0x38] sm:$0xff] 0.0
      %457 = vst.msk [vmem:[%s197 + $0x40] sm:$0xff] %vm450, 0.0
      %458 = vst [vmem:[%s197 + $0x48] sm:$0xff] 0.0
      %459 = vst [vmem:[%s197 + $0x50] sm:$0xff] 0.0
      %460 = vst.msk [vmem:[%s197 + $0x58] sm:$0xff] %vm450, 0.0
      %473 = vrot.lane.b32.xlu0 %v436, 19
      %v474 = vpop.permute.xlu0 %473
      %475 = vrot.lane.b32.xlu0 %v437, 19
      %v476 = vpop.permute.xlu0 %475
      %477 = vrot.lane.b32.xlu0 %v438, 19
      %v478 = vpop.permute.xlu0 %477
      %479 = vrot.lane.b32.xlu0 %v439, 19
      %v480 = vpop.permute.xlu0 %479
      %481 = vrot.lane.b32.xlu0 %v440, 19
      %v482 = vpop.permute.xlu0 %481
      %483 = vrot.lane.b32.xlu0 %v441, 19
      %v484 = vpop.permute.xlu0 %483
      %485 = vrot.lane.b32.xlu0 %v442, 19
      %v486 = vpop.permute.xlu0 %485
      %487 = vrot.lane.b32.xlu0 %v443, 19
      %v488 = vpop.permute.xlu0 %487
      %489 = vrot.lane.b32.xlu0 %v444, 19
      %v490 = vpop.permute.xlu0 %489
      %491 = vrot.lane.b32.xlu0 %v445, 19
      %v492 = vpop.permute.xlu0 %491
      %493 = vrot.lane.b32.xlu0 %v446, 19
      %v494 = vpop.permute.xlu0 %493
      %495 = vrot.lane.b32.xlu0 %v447, 19
      %v496 = vpop.permute.xlu0 %495
      %vm497 = vcmask 154624
      %v498 = vsel %vm497, %v474, %v476
      %v499 = vsel %vm497, %v476, %v478
      %v500 = vsel %vm497, %v480, %v482
      %v501 = vsel %vm497, %v482, %v484
      %v502 = vsel %vm497, %v486, %v488
      %v503 = vsel %vm497, %v488, %v490
      %v504 = vsel %vm497, %v492, %v494
      %v505 = vsel %vm497, %v494, %v496
      %vm518 = vcmask 1047704
      %519 = vst.msk [vmem:[%s197] sm:$0xff] %vm518, %v474
      %520 = vst [vmem:[%s197 + $0x8] sm:$0xff] %v498
      %vm521 = vcmask 400384
      %522 = vst.msk [vmem:[%s197 + $0x10] sm:$0xff] %vm521, %v499
      %523 = vst.msk [vmem:[%s197 + $0x18] sm:$0xff] %vm518, %v480
      %524 = vst [vmem:[%s197 + $0x20] sm:$0xff] %v500
      %525 = vst.msk [vmem:[%s197 + $0x28] sm:$0xff] %vm521, %v501
      %526 = vst.msk [vmem:[%s197 + $0x30] sm:$0xff] %vm518, %v486
      %527 = vst [vmem:[%s197 + $0x38] sm:$0xff] %v502
      %528 = vst.msk [vmem:[%s197 + $0x40] sm:$0xff] %vm521, %v503
      %529 = vst.msk [vmem:[%s197 + $0x48] sm:$0xff] %vm518, %v492
      %530 = vst [vmem:[%s197 + $0x50] sm:$0xff] %v504
      %531 = vst.msk [vmem:[%s197 + $0x58] sm:$0xff] %vm521, %v505
      %p532 = scmp.lt.s32.totalorder %s15, 1
      %s533 = scalar_select %p532, %s15, 1
      %s534 = smul.addr %s533, 12
      %s535 = smul.addr %s534, 8
      %s536 = scalar_lea.vmem %s4, %s535
      // Predicated region
      $region37: #{edsr_forward.10} parent=35 // pred_check
        %p537 = pneg %p122
      $region38: #{edsr_forward.10} parent=35 // pred_check_branch
        %539 = sbr.rel (%p537) target = $region40
      $region39: #{edsr_forward.10} parent=35 // pred_region
        _
      $region40: #{edsr_forward.10} parent=35 // pred_fallthru
        _
    $region36: #{edsr_forward.10} parent=5 // pred_fallthru
      _
    %p540 = scmp.le.s32.totalorder 2, %s10
    // Predicated region
    $region41: #{edsr_forward.10} parent=5 // pred_check
      %p541 = pneg %p540
    $region42: #{edsr_forward.10} parent=5 // pred_check_branch
      %543 = sbr.rel (%p541) target = $region44
    $region43: #{edsr_forward.10} parent=5 // pred_region
      %s544 = ssub.s32 %s10, 2
      // Predicated region
      $region45: #{edsr_forward.10} parent=43 // pred_check
        %p545 = pneg %p128
      $region46: #{edsr_forward.10} parent=43 // pred_check_branch
        %547 = sbr.rel (%p545) target = $region48
      $region47: #{edsr_forward.10} parent=43 // pred_region
        %p548 = scmp.lt.s32.totalorder %s16, 1
        %s549 = scalar_select %p548, %s16, 1
        %s550 = smul.addr %s549, 12
        %s551 = smul.addr %s550, 8
        %s552 = scalar_lea.vmem %s4, %s551
      $region48: #{edsr_forward.10} parent=43 // pred_fallthru
        _
    $region44: #{edsr_forward.10} parent=5 // pred_fallthru
      _
  $region6: #{edsr_forward.10} parent=0 // loop_footer
    %s14 = sadd.s32 1, %s10
  $region7: #{edsr_forward.10} parent=0 // loop_footer_branch
    %9 = sbr.rel target = $region3
  $region8: #{edsr_forward.10} parent=0 // loop_exit
    _

// kernel: edsr_forward.11
$region0: #{edsr_forward.11}
  #allocation0 [shape = 'u32[]', space=smem, size = 0x4, offset = 0x4, fixed_abs, tag = 'smem constant byte address 0x4 - core index']
  #allocation1 [shape = 'u32[72,128]{1,0:T(1,128)}', space=vmem, size = 0x9000, scoped, tag = 'internal scratch']
  %s0 = inlined_call_operand.vmem [shape: f32[2,8,1156], index: 0, kind: input, shape index: {}]
  %s1 = inlined_call_operand.vmem [shape: f32[1,1086], index: 1, kind: input, shape index: {}]
  %s2 = inlined_call_operand.vmem [shape: bf16[3,72], index: 2, kind: input, shape index: {}]
  %s3 = inlined_call_operand.vmem [shape: f32[3,1], index: 3, kind: input, shape index: {}]
  %s4 = inlined_call_operand.vmem [shape: f32[2,3,1156], index: 4, kind: output, shape index: {}]
  %s5 = sld [smem:[#allocation0]]
  $region49: #{edsr_forward.11} parent=0
    _
  %s7 = ssub.s32 1, %s5
  %s8 = scalar_select 0, %s7, %s5
  loop: start=0, step=1, limit=4
  $region2: #{edsr_forward.11} parent=0 // loop_pre_header
    _
  $region3: #{edsr_forward.11} parent=0 // loop_header
    %s10 = sphi 0, %s14
    %p11 = scmp.ge.s32.totalorder %s10, 4
    %s20 = sphi 0, %s22
    %s23 = sphi 0, %s20
    %s24 = sphi 0, %s23
    %s40 = sphi 0, %s24
    %s44 = sphi 0, %s44
    %s46 = sphi 0, %s44
    %s47 = sphi 0, %s46
    %s61 = sphi 0, %s47
    %s65 = sphi 0, %s65
    %s67 = sphi 0, %s65
    %s68 = sphi 0, %s67
    %s82 = sphi 0, %s68
    %s86 = sphi 0, %s86
    %s88 = sphi 0, %s86
    %s89 = sphi 0, %s88
    %s103 = sphi 0, %s89
    %s109 = sphi 0, %s111
    %s112 = sphi 0, %s109
    %s113 = sphi 0, %s112
    %s129 = sphi 0, %s113
  $region4: #{edsr_forward.11} parent=0 // loop_header_branch
    %13 = sbr.rel (%p11) target = $region8
  $region5: #{edsr_forward.11} parent=0 // loop_body
    %s15 = ssub.s32 %s10, 1
    %s16 = ssub.s32 %s10, 2
    %s17 = sadd.s32 %s10, 1
    %s18 = ssub.s32 %s10, %s17
    %p19 = scmp.eq.s32.totalorder %s18, 0
    %s21 = sadd.s32 %s20, 1
    %s22 = scalar_select %p19, %s20, %s21
    %p25 = pneg %p19
    %p26 = scmp.eq.s32.totalorder %s10, 1
    %p27 = por %p25, %p26
    %p28 = scmp.ne.s32.totalorder %s20, %s23
    %p29 = scmp.eq.s32.totalorder %s10, 0
    %p30 = por %p28, %p29
    %p31 = scmp.ne.s32.totalorder %s20, %s23
    %p32 = scmp.eq.s32.totalorder %s15, 1
    %p33 = por %p31, %p32
    %p34 = scmp.ne.s32.totalorder %s23, %s24
    %p35 = scmp.eq.s32.totalorder %s15, 0
    %p36 = por %p34, %p35
    %p37 = scmp.ne.s32.totalorder %s23, %s24
    %p38 = scmp.eq.s32.totalorder %s16, 1
    %p39 = por %p37, %p38
    %p41 = scmp.ne.s32.totalorder %s24, %s40
    %p42 = scmp.eq.s32.totalorder %s16, 0
    %p43 = por %p41, %p42
    %s45 = sadd.s32 %s44, 1
    %p48 = scmp.eq.s32.totalorder %s10, 1
    %p49 = scmp.ne.s32.totalorder %s44, %s46
    %p50 = scmp.eq.s32.totalorder %s10, 0
    %p51 = por %p49, %p50
    %p52 = scmp.ne.s32.totalorder %s44, %s46
    %p53 = scmp.eq.s32.totalorder %s15, 1
    %p54 = por %p52, %p53
    %p55 = scmp.ne.s32.totalorder %s46, %s47
    %p56 = scmp.eq.s32.totalorder %s15, 0
    %p57 = por %p55, %p56
    %p58 = scmp.ne.s32.totalorder %s46, %s47
    %p59 = scmp.eq.s32.totalorder %s16, 1
    %p60 = por %p58, %p59
    %p62 = scmp.ne.s32.totalorder %s47, %s61
    %p63 = scmp.eq.s32.totalorder %s16, 0
    %p64 = por %p62, %p63
    %s66 = sadd.s32 %s65, 1
    %p69 = scmp.eq.s32.totalorder %s10, 1
    %p70 = scmp.ne.s32.totalorder %s65, %s67
    %p71 = scmp.eq.s32.totalorder %s10, 0
    %p72 = por %p70, %p71
    %p73 = scmp.ne.s32.totalorder %s65, %s67
    %p74 = scmp.eq.s32.totalorder %s15, 1
    %p75 = por %p73, %p74
    %p76 = scmp.ne.s32.totalorder %s67, %s68
    %p77 = scmp.eq.s32.totalorder %s15, 0
    %p78 = por %p76, %p77
    %p79 = scmp.ne.s32.totalorder %s67, %s68
    %p80 = scmp.eq.s32.totalorder %s16, 1
    %p81 = por %p79, %p80
    %p83 = scmp.ne.s32.totalorder %s68, %s82
    %p84 = scmp.eq.s32.totalorder %s16, 0
    %p85 = por %p83, %p84
    %s87 = sadd.s32 %s86, 1
    %p90 = scmp.eq.s32.totalorder %s10, 1
    %p91 = scmp.ne.s32.totalorder %s86, %s88
    %p92 = scmp.eq.s32.totalorder %s10, 0
    %p93 = por %p91, %p92
    %p94 = scmp.ne.s32.totalorder %s86, %s88
    %p95 = scmp.eq.s32.totalorder %s15, 1
    %p96 = por %p94, %p95
    %p97 = scmp.ne.s32.totalorder %s88, %s89
    %p98 = scmp.eq.s32.totalorder %s15, 0
    %p99 = por %p97, %p98
    %p100 = scmp.ne.s32.totalorder %s88, %s89
    %p101 = scmp.eq.s32.totalorder %s16, 1
    %p102 = por %p100, %p101
    %p104 = scmp.ne.s32.totalorder %s89, %s103
    %p105 = scmp.eq.s32.totalorder %s16, 0
    %p106 = por %p104, %p105
    %s107 = ssub.s32 %s10, %s17
    %p108 = scmp.eq.s32.totalorder %s107, 0
    %s110 = sadd.s32 %s109, 1
    %s111 = scalar_select %p108, %s109, %s110
    %p114 = pneg %p108
    %p115 = scmp.eq.s32.totalorder %s10, 1
    %p116 = por %p114, %p115
    %p117 = scmp.ne.s32.totalorder %s109, %s112
    %p118 = scmp.eq.s32.totalorder %s10, 0
    %p119 = por %p117, %p118
    %p120 = scmp.ne.s32.totalorder %s109, %s112
    %p121 = scmp.eq.s32.totalorder %s15, 1
    %p122 = por %p120, %p121
    %p123 = scmp.ne.s32.totalorder %s112, %s113
    %p124 = scmp.eq.s32.totalorder %s15, 0
    %p125 = por %p123, %p124
    %p126 = scmp.ne.s32.totalorder %s112, %s113
    %p127 = scmp.eq.s32.totalorder %s16, 1
    %p128 = por %p126, %p127
    %p130 = scmp.ne.s32.totalorder %s113, %s129
    %p131 = scmp.eq.s32.totalorder %s16, 0
    %p132 = por %p130, %p131
    %p133 = scmp.le.s32.totalorder 1, %s10
    %p134 = scmp.lt.s32.totalorder %s10, 3
    %p135 = pnand %p133, %p134
    %p136 = pneg %p135
    // Predicated region
    $region9: #{edsr_forward.11} parent=5 // pred_check
      _
    $region10: #{edsr_forward.11} parent=5 // pred_check_branch
      %138 = sbr.rel (%p135) target = $region12
    $region11: #{edsr_forward.11} parent=5 // pred_region
      %s139 = ssub.s32 %s10, 1
      // Predicated region
      $region13: #{edsr_forward.11} parent=11 // pred_check
        %p140 = pneg %p57
      $region14: #{edsr_forward.11} parent=11 // pred_check_branch
        %142 = sbr.rel (%p140) target = $region16
      $region15: #{edsr_forward.11} parent=11 // pred_region
        _
      $region16: #{edsr_forward.11} parent=11 // pred_fallthru
        _
      // Predicated region
      $region17: #{edsr_forward.11} parent=11 // pred_check
        %p143 = pneg %p78
      $region18: #{edsr_forward.11} parent=11 // pred_check_branch
        %145 = sbr.rel (%p143) target = $region20
      $region19: #{edsr_forward.11} parent=11 // pred_region
        _
      $region20: #{edsr_forward.11} parent=11 // pred_fallthru
        _
      // Predicated region
      $region21: #{edsr_forward.11} parent=11 // pred_check
        %p146 = pneg %p99
      $region22: #{edsr_forward.11} parent=11 // pred_check_branch
        %148 = sbr.rel (%p146) target = $region24
      $region23: #{edsr_forward.11} parent=11 // pred_region
        _
      $region24: #{edsr_forward.11} parent=11 // pred_fallthru
        _
    $region12: #{edsr_forward.11} parent=5 // pred_fallthru
      _
    %p149 = scmp.lt.s32.totalorder %s10, 2
    // Predicated region
    $region25: #{edsr_forward.11} parent=5 // pred_check
      %p150 = pneg %p149
    $region26: #{edsr_forward.11} parent=5 // pred_check_branch
      %152 = sbr.rel (%p150) target = $region28
    $region27: #{edsr_forward.11} parent=5 // pred_region
      // Predicated region
      $region29: #{edsr_forward.11} parent=27 // pred_check
        %p153 = pneg %p30
      $region30: #{edsr_forward.11} parent=27 // pred_check_branch
        %155 = sbr.rel (%p153) target = $region32
      $region31: #{edsr_forward.11} parent=27 // pred_region
        %p156 = scmp.lt.s32.totalorder %s10, 1
        %s157 = scalar_select %p156, %s10, 1
        %s158 = smul.addr %s157, 10
        %s159 = smul.addr %s158, 8
        %s160 = scalar_lea.vmem %s0, %s159
      $region32: #{edsr_forward.11} parent=27 // pred_fallthru
        _
    $region28: #{edsr_forward.11} parent=5 // pred_fallthru
      _
    %p161 = scmp.le.s32.totalorder 1, %s10
    %p162 = scmp.lt.s32.totalorder %s10, 3
    %p163 = pnand %p161, %p162
    %p164 = pneg %p163
    // Predicated region
    $region33: #{edsr_forward.11} parent=5 // pred_check
      _
    $region34: #{edsr_forward.11} parent=5 // pred_check_branch
      %166 = sbr.rel (%p163) target = $region36
    $region35: #{edsr_forward.11} parent=5 // pred_region
      %s167 = ssub.s32 %s10, 1
      %p168 = scmp.lt.s32.totalorder %s15, 1
      %s169 = scalar_select %p168, %s15, 1
      %s170 = smul.addr %s169, 10
      %s171 = smul.addr %s170, 8
      %s172 = scalar_lea.vmem %s0, %s171
      %p173 = pneg %p36
      %p174 = pneg %p33
      %p175 = pneg %p57
      %p176 = pneg %p54
      %p177 = pneg %p78
      %p178 = pneg %p75
      %p179 = pneg %p99
      %p180 = pneg %p96
      %p181 = pneg %p125
      %p182 = pneg %p122
      %p183 = scmp.lt.s32.totalorder %s15, 1
      %s184 = scalar_select %p183, %s15, 1
      %s185 = smul.addr %s184, 10
      %s186 = smul.addr %s185, 4
      %s187 = scalar_lea.vmem %s4, %s186
      %p188 = scmp.lt.s32.totalorder %s15, 1
      %s189 = scalar_select %p188, %s15, 1
      %s190 = smul.addr %s189, 10
      %s191 = smul.addr %s190, 8
      %s192 = scalar_lea.vmem %s0, %s191
      %p193 = scmp.lt.s32.totalorder %s15, 1
      %s194 = scalar_select %p193, %s15, 1
      %s195 = smul.addr %s194, 10
      %s196 = smul.addr %s195, 4
      %s197 = scalar_lea.vmem %s4, %s196
      %v199 = vld [vmem:[%s192] sm:$0xff]
      %v200 = vld [vmem:[%s192 + $0x8] sm:$0xff]
      %v201 = vld [vmem:[%s192 + $0x10] sm:$0xff]
      %v202 = vld [vmem:[%s192 + $0x18] sm:$0xff]
      %v203 = vld [vmem:[%s192 + $0x20] sm:$0xff]
      %v204 = vld [vmem:[%s192 + $0x28] sm:$0xff]
      %v205 = vld [vmem:[%s192 + $0x30] sm:$0xff]
      %v206 = vld [vmem:[%s192 + $0x38] sm:$0xff]
      %v207 = vld [vmem:[%s192 + $0x40] sm:$0xff]
      %v208 = vld [vmem:[%s192 + $0x48] sm:$0xff]
      %v209 = vld [vmem:[%s2] sm:$0x3]
      %v210 = vld [vmem:[%s3] sm:$0x7]
      %220 = vrot.lane.b32.xlu0 %v199, 127
      %v221 = vpop.permute.xlu0 %220
      %222 = vrot.lane.b32.xlu0 %v200, 127
      %v223 = vpop.permute.xlu0 %222
      %224 = vrot.lane.b32.xlu0 %v201, 127
      %v225 = vpop.permute.xlu0 %224
      %226 = vrot.lane.b32.xlu0 %v202, 127
      %v227 = vpop.permute.xlu0 %226
      %228 = vrot.lane.b32.xlu0 %v203, 127
      %v229 = vpop.permute.xlu0 %228
      %230 = vrot.lane.b32.xlu0 %v204, 127
      %v231 = vpop.permute.xlu0 %230
      %232 = vrot.lane.b32.xlu0 %v205, 127
      %v233 = vpop.permute.xlu0 %232
      %234 = vrot.lane.b32.xlu0 %v206, 127
      %v235 = vpop.permute.xlu0 %234
      %236 = vrot.lane.b32.xlu0 %v207, 127
      %v237 = vpop.permute.xlu0 %236
      %vm238 = vcmask 1039360
      %v239 = vsel %vm238, %v221, %v223
      %v240 = vsel %vm238, %v223, %v225
      %v241 = vsel %vm238, %v225, %v227
      %v242 = vsel %vm238, %v227, %v229
      %v243 = vsel %vm238, %v229, %v231
      %v244 = vsel %vm238, %v231, %v233
      %v245 = vsel %vm238, %v233, %v235
      %v246 = vsel %vm238, %v235, %v237
      %256 = vrot.lane.b32.xlu0 %v199, 126
      %v257 = vpop.permute.xlu0 %256
      %258 = vrot.lane.b32.xlu0 %v200, 126
      %v259 = vpop.permute.xlu0 %258
      %260 = vrot.lane.b32.xlu0 %v201, 126
      %v261 = vpop.permute.xlu0 %260
      %262 = vrot.lane.b32.xlu0 %v202, 126
      %v263 = vpop.permute.xlu0 %262
      %264 = vrot.lane.b32.xlu0 %v203, 126
      %v265 = vpop.permute.xlu0 %264
      %266 = vrot.lane.b32.xlu0 %v204, 126
      %v267 = vpop.permute.xlu0 %266
      %268 = vrot.lane.b32.xlu0 %v205, 126
      %v269 = vpop.permute.xlu0 %268
      %270 = vrot.lane.b32.xlu0 %v206, 126
      %v271 = vpop.permute.xlu0 %270
      %272 = vrot.lane.b32.xlu0 %v207, 126
      %v273 = vpop.permute.xlu0 %272
      %vm274 = vcmask 1031168
      %v275 = vsel %vm274, %v257, %v259
      %v276 = vsel %vm274, %v259, %v261
      %v277 = vsel %vm274, %v261, %v263
      %v278 = vsel %vm274, %v263, %v265
      %v279 = vsel %vm274, %v265, %v267
      %v280 = vsel %vm274, %v267, %v269
      %v281 = vsel %vm274, %v269, %v271
      %v282 = vsel %vm274, %v271, %v273
      %292 = vrot.lane.b32.xlu0 %v199, 94
      %v293 = vpop.permute.xlu0 %292
      %294 = vrot.lane.b32.xlu0 %v200, 94
      %v295 = vpop.permute.xlu0 %294
      %296 = vrot.lane.b32.xlu0 %v201, 94
      %v297 = vpop.permute.xlu0 %296
      %298 = vrot.lane.b32.xlu0 %v202, 94
      %v299 = vpop.permute.xlu0 %298
      %300 = vrot.lane.b32.xlu0 %v203, 94
      %v301 = vpop.permute.xlu0 %300
      %302 = vrot.lane.b32.xlu0 %v204, 94
      %v303 = vpop.permute.xlu0 %302
      %304 = vrot.lane.b32.xlu0 %v205, 94
      %v305 = vpop.permute.xlu0 %304
      %306 = vrot.lane.b32.xlu0 %v206, 94
      %v307 = vpop.permute.xlu0 %306
      %308 = vrot.lane.b32.xlu0 %v207, 94
      %v309 = vpop.permute.xlu0 %308
      %vm310 = vcmask 769024
      %v311 = vsel %vm310, %v293, %v295
      %v312 = vsel %vm310, %v295, %v297
      %v313 = vsel %vm310, %v297, %v299
      %v314 = vsel %vm310, %v299, %v301
      %v315 = vsel %vm310, %v301, %v303
      %v316 = vsel %vm310, %v303, %v305
      %v317 = vsel %vm310, %v305, %v307
      %v318 = vsel %vm310, %v307, %v309
      %328 = vrot.lane.b32.xlu0 %v199, 93
      %v329 = vpop.permute.xlu0 %328
      %330 = vrot.lane.b32.xlu0 %v200, 93
      %v331 = vpop.permute.xlu0 %330
      %332 = vrot.lane.b32.xlu0 %v201, 93
      %v333 = vpop.permute.xlu0 %332
      %334 = vrot.lane.b32.xlu0 %v202, 93
      %v335 = vpop.permute.xlu0 %334
      %336 = vrot.lane.b32.xlu0 %v203, 93
      %v337 = vpop.permute.xlu0 %336
      %338 = vrot.lane.b32.xlu0 %v204, 93
      %v339 = vpop.permute.xlu0 %338
      %340 = vrot.lane.b32.xlu0 %v205, 93
      %v341 = vpop.permute.xlu0 %340
      %342 = vrot.lane.b32.xlu0 %v206, 93
      %v343 = vpop.permute.xlu0 %342
      %344 = vrot.lane.b32.xlu0 %v207, 93
      %v345 = vpop.permute.xlu0 %344
      %vm346 = vcmask 760832
      %v347 = vsel %vm346, %v329, %v331
      %v348 = vsel %vm346, %v331, %v333
      %v349 = vsel %vm346, %v333, %v335
      %v350 = vsel %vm346, %v335, %v337
      %v351 = vsel %vm346, %v337, %v339
      %v352 = vsel %vm346, %v339, %v341
      %v353 = vsel %vm346, %v341, %v343
      %v354 = vsel %vm346, %v343, %v345
      %364 = vrot.lane.b32.xlu0 %v199, 92
      %v365 = vpop.permute.xlu0 %364
      %366 = vrot.lane.b32.xlu0 %v200, 92
      %v367 = vpop.permute.xlu0 %366
      %368 = vrot.lane.b32.xlu0 %v201, 92
      %v369 = vpop.permute.xlu0 %368
      %370 = vrot.lane.b32.xlu0 %v202, 92
      %v371 = vpop.permute.xlu0 %370
      %372 = vrot.lane.b32.xlu0 %v203, 92
      %v373 = vpop.permute.xlu0 %372
      %374 = vrot.lane.b32.xlu0 %v204, 92
      %v375 = vpop.permute.xlu0 %374
      %376 = vrot.lane.b32.xlu0 %v205, 92
      %v377 = vpop.permute.xlu0 %376
      %378 = vrot.lane.b32.xlu0 %v206, 92
      %v379 = vpop.permute.xlu0 %378
      %380 = vrot.lane.b32.xlu0 %v207, 92
      %v381 = vpop.permute.xlu0 %380
      %vm382 = vcmask 752640
      %v383 = vsel %vm382, %v365, %v367
      %v384 = vsel %vm382, %v367, %v369
      %v385 = vsel %vm382, %v369, %v371
      %v386 = vsel %vm382, %v371, %v373
      %v387 = vsel %vm382, %v373, %v375
      %v388 = vsel %vm382, %v375, %v377
      %v389 = vsel %vm382, %v377, %v379
      %v390 = vsel %vm382, %v379, %v381
      %401 = vrot.lane.b32.xlu0 %v199, 60
      %v402 = vpop.permute.xlu0 %401
      %403 = vrot.lane.b32.xlu0 %v200, 60
      %v404 = vpop.permute.xlu0 %403
      %405 = vrot.lane.b32.xlu0 %v201, 60
      %v406 = vpop.permute.xlu0 %405
      %407 = vrot.lane.b32.xlu0 %v202, 60
      %v408 = vpop.permute.xlu0 %407
      %409 = vrot.lane.b32.xlu0 %v203, 60
      %v410 = vpop.permute.xlu0 %409
      %411 = vrot.lane.b32.xlu0 %v204, 60
      %v412 = vpop.permute.xlu0 %411
      %413 = vrot.lane.b32.xlu0 %v205, 60
      %v414 = vpop.permute.xlu0 %413
      %415 = vrot.lane.b32.xlu0 %v206, 60
      %v416 = vpop.permute.xlu0 %415
      %417 = vrot.lane.b32.xlu0 %v207, 60
      %v418 = vpop.permute.xlu0 %417
      %419 = vrot.lane.b32.xlu0 %v208, 60
      %v420 = vpop.permute.xlu0 %419
      %vm421 = vcmask 490496
      %v422 = vsel %vm421, %v402, %v404
      %v423 = vsel %vm421, %v404, %v406
      %v424 = vsel %vm421, %v406, %v408
      %v425 = vsel %vm421, %v408, %v410
      %v426 = vsel %vm421, %v410, %v412
      %v427 = vsel %vm421, %v412, %v414
      %v428 = vsel %vm421, %v414, %v416
      %v429 = vsel %vm421, %v416, %v418
      %v430 = vsel %vm421, %v418, %v420
      %440 = vrot.lane.b32.xlu0 %v199, 59
      %v441 = vpop.permute.xlu0 %440
      %442 = vrot.lane.b32.xlu0 %v200, 59
      %v443 = vpop.permute.xlu0 %442
      %444 = vrot.lane.b32.xlu0 %v201, 59
      %v445 = vpop.permute.xlu0 %444
      %446 = vrot.lane.b32.xlu0 %v202, 59
      %v447 = vpop.permute.xlu0 %446
      %448 = vrot.lane.b32.xlu0 %v203, 59
      %v449 = vpop.permute.xlu0 %448
      %450 = vrot.lane.b32.xlu0 %v204, 59
      %v451 = vpop.permute.xlu0 %450
      %452 = vrot.lane.b32.xlu0 %v205, 59
      %v453 = vpop.permute.xlu0 %452
      %454 = vrot.lane.b32.xlu0 %v206, 59
      %v455 = vpop.permute.xlu0 %454
      %456 = vrot.lane.b32.xlu0 %v207, 59
      %v457 = vpop.permute.xlu0 %456
      %458 = vrot.lane.b32.xlu0 %v208, 59
      %v459 = vpop.permute.xlu0 %458
      %vm460 = vcmask 482304
      %v461 = vsel %vm460, %v441, %v443
      %v462 = vsel %vm460, %v443, %v445
      %v463 = vsel %vm460, %v445, %v447
      %v464 = vsel %vm460, %v447, %v449
      %v465 = vsel %vm460, %v449, %v451
      %v466 = vsel %vm460, %v451, %v453
      %v467 = vsel %vm460, %v453, %v455
      %v468 = vsel %vm460, %v455, %v457
      %v469 = vsel %vm460, %v457, %v459
      %479 = vrot.lane.b32.xlu0 %v199, 58
      %v480 = vpop.permute.xlu0 %479
      %481 = vrot.lane.b32.xlu0 %v200, 58
      %v482 = vpop.permute.xlu0 %481
      %483 = vrot.lane.b32.xlu0 %v201, 58
      %v484 = vpop.permute.xlu0 %483
      %485 = vrot.lane.b32.xlu0 %v202, 58
      %v486 = vpop.permute.xlu0 %485
      %487 = vrot.lane.b32.xlu0 %v203, 58
      %v488 = vpop.permute.xlu0 %487
      %489 = vrot.lane.b32.xlu0 %v204, 58
      %v490 = vpop.permute.xlu0 %489
      %491 = vrot.lane.b32.xlu0 %v205, 58
      %v492 = vpop.permute.xlu0 %491
      %493 = vrot.lane.b32.xlu0 %v206, 58
      %v494 = vpop.permute.xlu0 %493
      %495 = vrot.lane.b32.xlu0 %v207, 58
      %v496 = vpop.permute.xlu0 %495
      %497 = vrot.lane.b32.xlu0 %v208, 58
      %v498 = vpop.permute.xlu0 %497
      %vm499 = vcmask 474112
      %v500 = vsel %vm499, %v480, %v482
      %v501 = vsel %vm499, %v482, %v484
      %v502 = vsel %vm499, %v484, %v486
      %v503 = vsel %vm499, %v486, %v488
      %v504 = vsel %vm499, %v488, %v490
      %v505 = vsel %vm499, %v490, %v492
      %v506 = vsel %vm499, %v492, %v494
      %v507 = vsel %vm499, %v494, %v496
      %v508 = vsel %vm499, %v496, %v498
      %v518 = vpack.c.bf16 %v239, %v199
      %v519 = vpack.c.bf16 %v240, %v200
      %v520 = vpack.c.bf16 %v241, %v201
      %v521 = vpack.c.bf16 %v242, %v202
      %v522 = vpack.c.bf16 %v243, %v203
      %v523 = vpack.c.bf16 %v244, %v204
      %v524 = vpack.c.bf16 %v245, %v205
      %v525 = vpack.c.bf16 %v246, %v206
      %v526 = vpack.c.bf16 %v237, %v207
      %v527 = vpack.c.bf16 %v311, %v275
      %v528 = vpack.c.bf16 %v312, %v276
      %v529 = vpack.c.bf16 %v313, %v277
      %v530 = vpack.c.bf16 %v314, %v278
      %v531 = vpack.c.bf16 %v315, %v279
      %v532 = vpack.c.bf16 %v316, %v280
      %v533 = vpack.c.bf16 %v317, %v281
      %v534 = vpack.c.bf16 %v318, %v282
      %v535 = vpack.c.bf16 %v309, %v273
      %v536 = vpack.c.bf16 %v383, %v347
      %v537 = vpack.c.bf16 %v384, %v348
      %v538 = vpack.c.bf16 %v385, %v349
      %v539 = vpack.c.bf16 %v386, %v350
      %v540 = vpack.c.bf16 %v387, %v351
      %v541 = vpack.c.bf16 %v388, %v352
      %v542 = vpack.c.bf16 %v389, %v353
      %v543 = vpack.c.bf16 %v390, %v354
      %v544 = vpack.c.bf16 %v381, %v345
      %v545 = vpack.c.bf16 %v461, %v422
      %v546 = vpack.c.bf16 %v462, %v423
      %v547 = vpack.c.bf16 %v463, %v424
      %v548 = vpack.c.bf16 %v464, %v425
      %v549 = vpack.c.bf16 %v465, %v426
      %v550 = vpack.c.bf16 %v466, %v427
      %v551 = vpack.c.bf16 %v467, %v428
      %v552 = vpack.c.bf16 %v468, %v429
      %v553 = vpack.c.bf16 %v469, %v430
      %v554 = vpack.c.bf16 %v500, %v500
      %v555 = vpack.c.bf16 %v501, %v501
      %v556 = vpack.c.bf16 %v502, %v502
      %v557 = vpack.c.bf16 %v503, %v503
      %v558 = vpack.c.bf16 %v504, %v504
      %v559 = vpack.c.bf16 %v505, %v505
      %v560 = vpack.c.bf16 %v506, %v506
      %v561 = vpack.c.bf16 %v507, %v507
      %v562 = vpack.c.bf16 %v508, %v508
      %564 = vset.pattern.permute.xlu0 0
      %565 = vperm.xlu0 %564, %v210
      %v566 = vpop.permute.xlu0 %565
      %vm568 = vcmask 588800
      %v570 = vsel %vm568, %v209, 0
      %vm572 = vcmask 1043456
      %v574 = vsel %vm572, %v554, 0
      %v577 = vsel %vm572, %v555, 0
      %v580 = vsel %vm572, %v556, 0
      %v583 = vsel %vm572, %v557, 0
      %v586 = vsel %vm572, %v558, 0
      %v589 = vsel %vm572, %v559, 0
      %v592 = vsel %vm572, %v560, 0
      %v595 = vsel %vm572, %v561, 0
      %v598 = vsel %vm572, %v562, 0
      %600 = vmatpush.bf16.msra.mxu0 0
      %601 = vmatpush.bf16.msra.mxu0 0
      %602 = vmatpush.bf16.msra.mxu0 0
      %603 = vmatpush.bf16.msra.mxu0 %v574
      %604 = vmatpush.bf16.msra.mxu0 %v545
      %605 = vmatpush.bf16.msra.mxu0 %v536
      %606 = vmatpush.bf16.msra.mxu0 %v527
      %607 = vmatpush.bf16.msra.mxu0 %v518
      %608 = vmatmul.bf16.gmra.mxu0 %v570
      %v609 = vpop.f32.mrf.mxu0
      %v610 = vadd.f32 %v566, %v609
      %v611 = vpop.f32.mrf.mxu0
      %612 = vdwg.mxu0
      %613 = vmatpush.bf16.msra.mxu0 0
      %614 = vmatpush.bf16.msra.mxu0 0
      %615 = vmatpush.bf16.msra.mxu0 0
      %616 = vmatpush.bf16.msra.mxu0 %v577
      %617 = vmatpush.bf16.msra.mxu0 %v546
      %618 = vmatpush.bf16.msra.mxu0 %v537
      %619 = vmatpush.bf16.msra.mxu0 %v528
      %620 = vmatpush.bf16.msra.mxu0 %v519
      %621 = vmatmul.bf16.gmra.mxu0 %v570
      %v622 = vpop.f32.mrf.mxu0
      %v623 = vadd.f32 %v566, %v622
      %v624 = vpop.f32.mrf.mxu0
      %625 = vdwg.mxu0
      %626 = vmatpush.bf16.msra.mxu0 0
      %627 = vmatpush.bf16.msra.mxu0 0
      %628 = vmatpush.bf16.msra.mxu0 0
      %629 = vmatpush.bf16.msra.mxu0 %v580
      %630 = vmatpush.bf16.msra.mxu0 %v547
      %631 = vmatpush.bf16.msra.mxu0 %v538
      %632 = vmatpush.bf16.msra.mxu0 %v529
      %633 = vmatpush.bf16.msra.mxu0 %v520
      %634 = vmatmul.bf16.gmra.mxu0 %v570
      %v635 = vpop.f32.mrf.mxu0
      %v636 = vadd.f32 %v566, %v635
      %v637 = vpop.f32.mrf.mxu0
      %638 = vdwg.mxu0
      %639 = vmatpush.bf16.msra.mxu0 0
      %640 = vmatpush.bf16.msra.mxu0 0
      %641 = vmatpush.bf16.msra.mxu0 0
      %642 = vmatpush.bf16.msra.mxu0 %v583
      %643 = vmatpush.bf16.msra.mxu0 %v548
      %644 = vmatpush.bf16.msra.mxu0 %v539
      %645 = vmatpush.bf16.msra.mxu0 %v530
      %646 = vmatpush.bf16.msra.mxu0 %v521
      %647 = vmatmul.bf16.gmra.mxu0 %v570
      %v648 = vpop.f32.mrf.mxu0
      %v649 = vadd.f32 %v566, %v648
      %v650 = vpop.f32.mrf.mxu0
      %651 = vdwg.mxu0
      %652 = vmatpush.bf16.msra.mxu0 0
      %653 = vmatpush.bf16.msra.mxu0 0
      %654 = vmatpush.bf16.msra.mxu0 0
      %655 = vmatpush.bf16.msra.mxu0 %v586
      %656 = vmatpush.bf16.msra.mxu0 %v549
      %657 = vmatpush.bf16.msra.mxu0 %v540
      %658 = vmatpush.bf16.msra.mxu0 %v531
      %659 = vmatpush.bf16.msra.mxu0 %v522
      %660 = vmatmul.bf16.gmra.mxu0 %v570
      %v661 = vpop.f32.mrf.mxu0
      %v662 = vadd.f32 %v566, %v661
      %v663 = vpop.f32.mrf.mxu0
      %664 = vdwg.mxu0
      %665 = vmatpush.bf16.msra.mxu0 0
      %666 = vmatpush.bf16.msra.mxu0 0
      %667 = vmatpush.bf16.msra.mxu0 0
      %668 = vmatpush.bf16.msra.mxu0 %v589
      %669 = vmatpush.bf16.msra.mxu0 %v550
      %670 = vmatpush.bf16.msra.mxu0 %v541
      %671 = vmatpush.bf16.msra.mxu0 %v532
      %672 = vmatpush.bf16.msra.mxu0 %v523
      %673 = vmatmul.bf16.gmra.mxu0 %v570
      %v674 = vpop.f32.mrf.mxu0
      %v675 = vadd.f32 %v566, %v674
      %v676 = vpop.f32.mrf.mxu0
      %677 = vdwg.mxu0
      %678 = vmatpush.bf16.msra.mxu0 0
      %679 = vmatpush.bf16.msra.mxu0 0
      %680 = vmatpush.bf16.msra.mxu0 0
      %681 = vmatpush.bf16.msra.mxu0 %v592
      %682 = vmatpush.bf16.msra.mxu0 %v551
      %683 = vmatpush.bf16.msra.mxu0 %v542
      %684 = vmatpush.bf16.msra.mxu0 %v533
      %685 = vmatpush.bf16.msra.mxu0 %v524
      %686 = vmatmul.bf16.gmra.mxu0 %v570
      %v687 = vpop.f32.mrf.mxu0
      %v688 = vadd.f32 %v566, %v687
      %v689 = vpop.f32.mrf.mxu0
      %690 = vdwg.mxu0
      %691 = vmatpush.bf16.msra.mxu0 0
      %692 = vmatpush.bf16.msra.mxu0 0
      %693 = vmatpush.bf16.msra.mxu0 0
      %694 = vmatpush.bf16.msra.mxu0 %v595
      %695 = vmatpush.bf16.msra.mxu0 %v552
      %696 = vmatpush.bf16.msra.mxu0 %v543
      %697 = vmatpush.bf16.msra.mxu0 %v534
      %698 = vmatpush.bf16.msra.mxu0 %v525
      %699 = vmatmul.bf16.gmra.mxu0 %v570
      %v700 = vpop.f32.mrf.mxu0
      %v701 = vadd.f32 %v566, %v700
      %v702 = vpop.f32.mrf.mxu0
      %703 = vdwg.mxu0
      %704 = vmatpush.bf16.msra.mxu0 0
      %705 = vmatpush.bf16.msra.mxu0 0
      %706 = vmatpush.bf16.msra.mxu0 0
      %707 = vmatpush.bf16.msra.mxu0 %v598
      %708 = vmatpush.bf16.msra.mxu0 %v553
      %709 = vmatpush.bf16.msra.mxu0 %v544
      %710 = vmatpush.bf16.msra.mxu0 %v535
      %711 = vmatpush.bf16.msra.mxu0 %v526
      %712 = vmatmul.bf16.gmra.mxu0 %v570
      %v713 = vpop.f32.mrf.mxu0
      %v714 = vadd.f32 %v566, %v713
      %v715 = vpop.f32.mrf.mxu0
      %716 = vdwg.mxu0
      %v717 = vld [vmem:[%s1] sm:$0xff]
      %v718 = vld [vmem:[%s1 + $0x8] sm:$0x1]
      %v721 = vperm.slane %v717, 0
      %v722 = vperm.slane %v717, 1
      %v723 = vperm.slane %v717, 2
      %v724 = vperm.slane %v717, 3
      %v725 = vperm.slane %v717, 4
      %v726 = vperm.slane %v717, 5
      %v727 = vperm.slane %v717, 6
      %v728 = vperm.slane %v717, 7
      %v729 = vperm.slane %v718, 0
      %v739 = vmul.f32 %v610, %v721
      %v740 = vmul.f32 %v623, %v722
      %v741 = vmul.f32 %v636, %v723
      %v742 = vmul.f32 %v649, %v724
      %v743 = vmul.f32 %v662, %v725
      %v744 = vmul.f32 %v675, %v726
      %v745 = vmul.f32 %v688, %v727
      %v746 = vmul.f32 %v701, %v728
      %v747 = vmul.f32 %v714, %v729
      %748 = vst [vmem:[%s197] sm:$0x77] 0.0
      %749 = vst [vmem:[%s197 + $0x8] sm:$0x77] 0.0
      %750 = vst [vmem:[%s197 + $0x10] sm:$0x77] 0.0
      %751 = vst [vmem:[%s197 + $0x18] sm:$0x77] 0.0
      %vm752 = vcmask 1042432
      %vm753 = vcmask 30724
      %vm754 = vmor %vm753, %vm752
      %755 = vst.msk [vmem:[%s197 + $0x20] sm:$0x77] %vm754, 0.0
      %v765 = vrot.slane %v740, 4
      %v766 = vrot.slane %v742, 4
      %v767 = vrot.slane %v744, 4
      %v768 = vrot.slane %v746, 4
      %v769 = vsel %vm572, %v739, %v765
      %v770 = vsel %vm572, %v741, %v766
      %v771 = vsel %vm572, %v743, %v767
      %v772 = vsel %vm572, %v745, %v768
      %773 = vrot.lane.b32.xlu0 %v769, 35
      %v774 = vpop.permute.xlu0 %773
      %775 = vrot.lane.b32.xlu0 %v770, 35
      %v776 = vpop.permute.xlu0 %775
      %777 = vrot.lane.b32.xlu0 %v771, 35
      %v778 = vpop.permute.xlu0 %777
      %779 = vrot.lane.b32.xlu0 %v772, 35
      %v780 = vpop.permute.xlu0 %779
      %781 = vrot.lane.b32.xlu0 %v747, 35
      %v782 = vpop.permute.xlu0 %781
      %v783 = vrot.slane %v774, 4
      %v784 = vrot.slane %v776, 4
      %v785 = vrot.slane %v778, 4
      %v786 = vrot.slane %v780, 4
      %vm787 = vcmask 285696
      %v788 = vsel %vm787, %v783, %v774
      %v789 = vsel %vm572, %v783, %v784
      %v790 = vsel %vm787, %v789, %v776
      %v791 = vsel %vm572, %v784, %v785
      %v792 = vsel %vm787, %v791, %v778
      %v793 = vsel %vm572, %v785, %v786
      %v794 = vsel %vm787, %v793, %v780
      %v795 = vsel %vm787, %v786, %v782
      %vm801 = vcmask 1042712
      %vm802 = vcmask 1046532
      %vm803 = vmor %vm802, %vm801
      %804 = vst.msk [vmem:[%s197] sm:$0x77] %vm803, %v788
      %805 = vst [vmem:[%s197 + $0x8] sm:$0x77] %v790
      %806 = vst [vmem:[%s197 + $0x10] sm:$0x77] %v792
      %807 = vst [vmem:[%s197 + $0x18] sm:$0x77] %v794
      %vm808 = vcmask 788480
      %809 = vst.msk [vmem:[%s197 + $0x20] sm:$0x7] %vm808, %v795
      %p810 = scmp.lt.s32.totalorder %s15, 1
      %s811 = scalar_select %p810, %s15, 1
      %s812 = smul.addr %s811, 10
      %s813 = smul.addr %s812, 4
      %s814 = scalar_lea.vmem %s4, %s813
      // Predicated region
      $region37: #{edsr_forward.11} parent=35 // pred_check
        %p815 = pneg %p122
      $region38: #{edsr_forward.11} parent=35 // pred_check_branch
        %817 = sbr.rel (%p815) target = $region40
      $region39: #{edsr_forward.11} parent=35 // pred_region
        _
      $region40: #{edsr_forward.11} parent=35 // pred_fallthru
        _
    $region36: #{edsr_forward.11} parent=5 // pred_fallthru
      _
    %p818 = scmp.le.s32.totalorder 2, %s10
    // Predicated region
    $region41: #{edsr_forward.11} parent=5 // pred_check
      %p819 = pneg %p818
    $region42: #{edsr_forward.11} parent=5 // pred_check_branch
      %821 = sbr.rel (%p819) target = $region44
    $region43: #{edsr_forward.11} parent=5 // pred_region
      %s822 = ssub.s32 %s10, 2
      // Predicated region
      $region45: #{edsr_forward.11} parent=43 // pred_check
        %p823 = pneg %p128
      $region46: #{edsr_forward.11} parent=43 // pred_check_branch
        %825 = sbr.rel (%p823) target = $region48
      $region47: #{edsr_forward.11} parent=43 // pred_region
        %p826 = scmp.lt.s32.totalorder %s16, 1
        %s827 = scalar_select %p826, %s16, 1
        %s828 = smul.addr %s827, 10
        %s829 = smul.addr %s828, 4
        %s830 = scalar_lea.vmem %s4, %s829
      $region48: #{edsr_forward.11} parent=43 // pred_fallthru
        _
    $region44: #{edsr_forward.11} parent=5 // pred_fallthru
      _
  $region6: #{edsr_forward.11} parent=0 // loop_footer
    %s14 = sadd.s32 1, %s10
  $region7: #{edsr_forward.11} parent=0 // loop_footer_branch
    %9 = sbr.rel target = $region3
  $region8: #{edsr_forward.11} parent=0 // loop_exit
    _

</llo_original>
